<compile_context>
chip_gen: v7x
topology: tpu7x:2x2x1
jax: 0.10.0
libtpu: 0.0.40
codegen_flags: <defaults>
</compile_context>

<pallas_src>
import jax
import jax.numpy as jnp
import numpy as np
from jax.experimental import pallas as pl
from jax.experimental.pallas import tpu as pltpu


IN_PLANES = 1536
HIDDEN = 1024
OUT_DIM = 2
OUT_PAD = 128          # lane-dense output slab width (min full-lane store width)
BN_EPS = 1e-5


def _round_up(n, m):
    return ((n + m - 1) // m) * m


def discriminator_kernel(x_ref, w1_ref, scale_ref, shift_ref, w2_ref, o_ref):
    # x_ref:     (TB, IN)       bf16   streamed per grid step
    # w1_ref:    (IN, HIDDEN)   bf16   resident across grid steps
    # scale_ref: (1, HIDDEN)    f32    folded BN scale              (resident)
    # shift_ref: (1, HIDDEN)    f32    folded BN shift + Linear-1 bias (resident)
    # w2_ref:    (HIDDEN, 128)  bf16   tail weight, zero-padded to 128 cols (resident)
    # o_ref:     (TB, 128)      f32    lane-dense output slab
    h = jnp.dot(x_ref[...], w1_ref[...], preferred_element_type=jnp.float32)
    h = h * scale_ref[...] + shift_ref[...]          # BatchNorm1d (eval) + bias, fused
    h = jnp.where(h > 0, h, 0.2 * h)                 # LeakyReLU(0.2)
    o_ref[...] = jnp.dot(h.astype(w2_ref.dtype), w2_ref[...],
                         preferred_element_type=jnp.float32)


def discriminator_forward(x, params, *, tb=512):
    """x: (B, IN_PLANES) f32. params: (w1, b1, gamma, beta, running_mean, running_var, w2).

    w1 stored (in, out); w2 stored (in, out); b1/gamma/beta/mean/var are (HIDDEN,).
    """
    w1, b1, gamma, beta, mean, var, w2 = params
    B, IN = x.shape
    H = w1.shape[1]

    # Fold BatchNorm (running stats) + first-layer bias into per-feature scale/shift:
    #   BN(x@W1 + b1) = (x@W1 + b1 - mean) * gamma/sqrt(var+eps) + beta
    #                 = (x@W1) * scale + (beta + (b1 - mean) * scale)
    scale_1d = gamma / jnp.sqrt(var + BN_EPS)
    shift_1d = beta + (b1 - mean) * scale_1d
    scale = scale_1d.reshape(1, H).astype(jnp.float32)
    shift = shift_1d.reshape(1, H).astype(jnp.float32)

    # Lane-dense tail: pad the 2-wide output weight to 128 columns (zeros elsewhere).
    w2_pad = jnp.zeros((H, OUT_PAD), jnp.float32).at[:, :OUT_DIM].set(w2)

    # bf16 streaming operands, f32 accumulation inside the kernel.
    x_bf = x.astype(jnp.bfloat16)
    w1_bf = w1.astype(jnp.bfloat16)
    w2_bf = w2_pad.astype(jnp.bfloat16)

    # Batch tiling: TB rows per grid step (sublane-aligned); pad ragged batches so the
    # final block needs no masking.
    TB = min(tb, _round_up(B, 8))
    Bp = _round_up(B, TB)
    if Bp != B:
        x_bf = jnp.pad(x_bf, ((0, Bp - B), (0, 0)))
    grid = (Bp // TB,)

    cost = pl.CostEstimate(
        flops=2 * Bp * (IN * H + H * OUT_PAD),
        transcendentals=0,
        bytes_accessed=(Bp * IN * 2 + IN * H * 2 + H * OUT_PAD * 2
                        + 2 * H * 4 + Bp * OUT_PAD * 4),
    )

    out = pl.pallas_call(
        discriminator_kernel,
        out_shape=jax.ShapeDtypeStruct((Bp, OUT_PAD), jnp.float32),
        grid=grid,
        in_specs=[
            pl.BlockSpec((TB, IN), lambda i: (i, 0)),        # x: streamed per step
            pl.BlockSpec((IN, H), lambda i: (0, 0)),         # W1: resident
            pl.BlockSpec((1, H), lambda i: (0, 0)),          # BN scale: resident
            pl.BlockSpec((1, H), lambda i: (0, 0)),          # BN shift: resident
            pl.BlockSpec((H, OUT_PAD), lambda i: (0, 0)),    # W2 (padded): resident
        ],
        out_specs=pl.BlockSpec((TB, OUT_PAD), lambda i: (i, 0)),
        compiler_params=pltpu.CompilerParams(
            dimension_semantics=("parallel",),
            vmem_limit_bytes=32 * 1024 * 1024,
        ),
        cost_estimate=cost,
    )(x_bf, w1_bf, scale, shift, w2_bf)

    return out[:B, :OUT_DIM]


def init_params(key):
    """Mimics nn.Linear init; BN params randomized to exercise the running-stats path."""
    k1, k2, k3, k4, k5, k6, k7 = jax.random.split(key, 7)
    bound1 = 1.0 / np.sqrt(IN_PLANES)
    w1 = jax.random.uniform(k1, (IN_PLANES, HIDDEN), jnp.float32, -bound1, bound1)
    b1 = jax.random.uniform(k2, (HIDDEN,), jnp.float32, -bound1, bound1)
    gamma = jax.random.uniform(k3, (HIDDEN,), jnp.float32, 0.5, 1.5)
    beta = 0.1 * jax.random.normal(k4, (HIDDEN,), jnp.float32)
    mean = 0.1 * jax.random.normal(k5, (HIDDEN,), jnp.float32)
    var = jax.random.uniform(k6, (HIDDEN,), jnp.float32, 0.5, 1.5)
    bound2 = 1.0 / np.sqrt(HIDDEN)
    w2 = jax.random.uniform(k7, (HIDDEN, OUT_DIM), jnp.float32, -bound2, bound2)
    return (w1, b1, gamma, beta, mean, var, w2)


def discriminator_reference(x, params):
    """Plain-JAX mirror of the kernel's numerics (bf16 operands, f32 accumulation)."""
    w1, b1, gamma, beta, mean, var, w2 = params
    scale = gamma / jnp.sqrt(var + BN_EPS)
    shift = beta + (b1 - mean) * scale
    x_bf = x.astype(jnp.bfloat16).astype(jnp.float32)
    w1_bf = w1.astype(jnp.bfloat16).astype(jnp.float32)
    w2_bf = w2.astype(jnp.bfloat16).astype(jnp.float32)
    h = x_bf @ w1_bf
    h = h * scale[None, :] + shift[None, :]
    h = jnp.where(h > 0, h, 0.2 * h)
    h = h.astype(jnp.bfloat16).astype(jnp.float32)
    return h @ w2_bf


if __name__ == "__main__":
    key = jax.random.PRNGKey(0)
    kx, kp = jax.random.split(key)
    params = init_params(kp)

    # Test 1: small ragged batch (exercises the batch-padding path, single grid step).
    B = 10
    x = jax.random.normal(kx, (B, IN_PLANES), dtype=jnp.float32)
    out = jax.block_until_ready(discriminator_forward(x, params))
    assert out.shape == (B, OUT_DIM)
    ref = discriminator_reference(x, params)
    np.testing.assert_allclose(np.asarray(out), np.asarray(ref), rtol=2e-2, atol=2e-2)

    # Test 2: multi-step grid (ragged batch, small tile) to exercise the pipelined path.
    B2 = 20
    x2 = jax.random.normal(jax.random.fold_in(kx, 1), (B2, IN_PLANES), dtype=jnp.float32)
    out2 = jax.block_until_ready(discriminator_forward(x2, params, tb=8))
    assert out2.shape == (B2, OUT_DIM)
    ref2 = discriminator_reference(x2, params)
    np.testing.assert_allclose(np.asarray(out2), np.asarray(ref2), rtol=2e-2, atol=2e-2)

    print("KERNEL_OK")
</pallas_src>

<mosaic_0001>
module attributes {stable_mosaic.version = 11 : i64} {
  func.func @discriminator_kernel(%arg0: i32, %arg1: memref<16x1536xbf16, #tpu.memory_space<vmem>>, %arg2: memref<1536x1024xbf16, #tpu.memory_space<vmem>>, %arg3: memref<1x1024xf32, #tpu.memory_space<vmem>>, %arg4: memref<1x1024xf32, #tpu.memory_space<vmem>>, %arg5: memref<1024x128xbf16, #tpu.memory_space<vmem>>, %arg6: memref<16x128xf32, #tpu.memory_space<vmem>>) attributes {dimension_semantics = [#tpu.dimension_semantics<parallel>], iteration_bounds = array<i64: 1>, scalar_prefetch = 0 : i64, scratch_operands = 0 : i64, tpu.core_type = #tpu.core_type<tc>, window_params = [{transform_indices = @transform_0, window_bounds = array<i64: 16, 1536>}, {pipeline_mode = #tpu.pipeline_mode<synchronous>, transform_indices = @transform_1, window_bounds = array<i64: 1536, 1024>}, {pipeline_mode = #tpu.pipeline_mode<synchronous>, transform_indices = @transform_2, window_bounds = array<i64: 1, 1024>}, {pipeline_mode = #tpu.pipeline_mode<synchronous>, transform_indices = @transform_3, window_bounds = array<i64: 1, 1024>}, {pipeline_mode = #tpu.pipeline_mode<synchronous>, transform_indices = @transform_4, window_bounds = array<i64: 1024, 128>}, {transform_indices = @transform_5, window_bounds = array<i64: 16, 128>}]} {
    %c0 = arith.constant 0 : index
    %c0_0 = arith.constant 0 : index
    %0 = vector.load %arg1[%c0, %c0_0] : memref<16x1536xbf16, #tpu.memory_space<vmem>>, vector<16x1536xbf16>
    %c0_1 = arith.constant 0 : index
    %c0_2 = arith.constant 0 : index
    %1 = vector.load %arg2[%c0_1, %c0_2] : memref<1536x1024xbf16, #tpu.memory_space<vmem>>, vector<1536x1024xbf16>
    %cst = arith.constant dense<0.000000e+00> : vector<16x1024xf32>
    %2 = tpu.matmul %0, %1, %cst {dimension_numbers = #tpu.dot_dimension_numbers<[1], [0], [0], [1], [0, 0, 1, 1], [], []>} : vector<16x1536xbf16>, vector<1536x1024xbf16>, vector<16x1024xf32> -> vector<16x1024xf32>
    %c0_3 = arith.constant 0 : index
    %c0_4 = arith.constant 0 : index
    %3 = vector.load %arg3[%c0_3, %c0_4] : memref<1x1024xf32, #tpu.memory_space<vmem>>, vector<1x1024xf32>
    %4 = vector.broadcast %3 : vector<1x1024xf32> to vector<16x1024xf32>
    %5 = arith.mulf %2, %4 : vector<16x1024xf32>
    %c0_5 = arith.constant 0 : index
    %c0_6 = arith.constant 0 : index
    %6 = vector.load %arg4[%c0_5, %c0_6] : memref<1x1024xf32, #tpu.memory_space<vmem>>, vector<1x1024xf32>
    %7 = vector.broadcast %6 : vector<1x1024xf32> to vector<16x1024xf32>
    %8 = arith.addf %5, %7 : vector<16x1024xf32>
    %cst_7 = arith.constant 0.000000e+00 : f32
    %9 = vector.broadcast %cst_7 : f32 to vector<16x1024xf32>
    %10 = arith.cmpf ogt, %8, %9 : vector<16x1024xf32>
    %cst_8 = arith.constant 2.000000e-01 : f32
    %11 = vector.broadcast %cst_8 : f32 to vector<16x1024xf32>
    %12 = arith.mulf %11, %8 : vector<16x1024xf32>
    %13 = arith.select %10, %8, %12 : vector<16x1024xi1>, vector<16x1024xf32>
    %14 = arith.truncf %13 : vector<16x1024xf32> to vector<16x1024xbf16>
    %c0_9 = arith.constant 0 : index
    %c0_10 = arith.constant 0 : index
    %15 = vector.load %arg5[%c0_9, %c0_10] : memref<1024x128xbf16, #tpu.memory_space<vmem>>, vector<1024x128xbf16>
    %cst_11 = arith.constant dense<0.000000e+00> : vector<16x128xf32>
    %16 = tpu.matmul %14, %15, %cst_11 {dimension_numbers = #tpu.dot_dimension_numbers<[1], [0], [0], [1], [0, 0, 1, 1], [], []>} : vector<16x1024xbf16>, vector<1024x128xbf16>, vector<16x128xf32> -> vector<16x128xf32>
    %c0_12 = arith.constant 0 : index
    %c0_13 = arith.constant 0 : index
    %17 = vector.load %arg6[%c0_12, %c0_13] : memref<16x128xf32, #tpu.memory_space<vmem>>, vector<16x128xf32>
    tpu.vector_store %arg6[%c0_12, %c0_13], %16 {strides = array<i32>} : memref<16x128xf32, #tpu.memory_space<vmem>>, vector<16x128xf32>,
    return
  }
  func.func @transform_0(%arg0: i32) -> (i32, i32) {
    %c0_i32 = arith.constant 0 : i32
    %c0_i32_0 = arith.constant 0 : i32
    return %arg0, %c0_i32 : i32, i32
  }
  func.func @transform_1(%arg0: i32) -> (i32, i32) {
    %c0_i32 = arith.constant 0 : i32
    %c0_i32_0 = arith.constant 0 : i32
    %c0_i32_1 = arith.constant 0 : i32
    return %c0_i32, %c0_i32_0 : i32, i32
  }
  func.func @transform_2(%arg0: i32) -> (i32, i32) {
    %c0_i32 = arith.constant 0 : i32
    %c0_i32_0 = arith.constant 0 : i32
    %c0_i32_1 = arith.constant 0 : i32
    return %c0_i32, %c0_i32_0 : i32, i32
  }
  func.func @transform_3(%arg0: i32) -> (i32, i32) {
    %c0_i32 = arith.constant 0 : i32
    %c0_i32_0 = arith.constant 0 : i32
    %c0_i32_1 = arith.constant 0 : i32
    return %c0_i32, %c0_i32_0 : i32, i32
  }
  func.func @transform_4(%arg0: i32) -> (i32, i32) {
    %c0_i32 = arith.constant 0 : i32
    %c0_i32_0 = arith.constant 0 : i32
    %c0_i32_1 = arith.constant 0 : i32
    return %c0_i32, %c0_i32_0 : i32, i32
  }
  func.func @transform_5(%arg0: i32) -> (i32, i32) {
    %c0_i32 = arith.constant 0 : i32
    %c0_i32_0 = arith.constant 0 : i32
    return %arg0, %c0_i32 : i32, i32
  }
}

</mosaic_0001>

<llo_original>
// kernel: tpu_custom_call.1
$region0: #{tpu_custom_call.1}
  #allocation0 [shape = 'u32[]', space=smem, size = 0x4, offset = 0x4, fixed_abs, tag = 'smem constant byte address 0x4 - core index']
  #allocation1 [shape = 'u32[144,128]{1,0:T(1,128)}', space=vmem, size = 0x12000, scoped, tag = 'internal scratch']
  %s0 = inlined_call_operand.hbm [shape: bf16[16,1536], index: 0, kind: input, shape index: {}]
  %s1 = inlined_call_operand.hbm [shape: bf16[1536,1024], index: 1, kind: input, shape index: {}]
  %s2 = inlined_call_operand.hbm [shape: f32[1,1024], index: 2, kind: input, shape index: {}]
  %s3 = inlined_call_operand.hbm [shape: f32[1,1024], index: 3, kind: input, shape index: {}]
  %s4 = inlined_call_operand.hbm [shape: bf16[1024,128], index: 4, kind: input, shape index: {}]
  %s5 = inlined_call_operand.hbm [shape: f32[16,128], index: 5, kind: output, shape index: {}]
  %s6 = sld [smem:[#allocation0]]
  $region50: #{tpu_custom_call.1} parent=0
    _
  %s8 = ssub.s32 1, %s6
  %s9 = scalar_select 0, %s8, %s6
  $region1: #{tpu_custom_call.1} parent=0
    #allocation2 [shape = 'u8[49152]{0}', space=vmem, size = 0xc000, scoped, tag = 'input window, operand 0, single buffered']
    #allocation3 [shape = 's32[1]{0}', space=sflag, size = 0x4, scoped, tag = 'scoped memory for tpu_custom_call.1']
    #allocation4 [shape = 's32[1]{0}', space=sflag, size = 0x4, scoped, tag = 'scoped memory for tpu_custom_call.1']
    #allocation5 [shape = 'u8[3145728]{0}', space=vmem, size = 0x300000, scoped, tag = 'input window, operand 1, single buffered']
    #allocation6 [shape = 's32[1]{0}', space=sflag, size = 0x4, scoped, tag = 'scoped memory for tpu_custom_call.1']
    #allocation7 [shape = 'u8[4096]{0}', space=vmem, size = 0x1000, scoped, tag = 'input window, operand 2, single buffered']
    #allocation8 [shape = 'u8[4096]{0}', space=vmem, size = 0x1000, scoped, tag = 'input window, operand 3, single buffered']
    #allocation9 [shape = 's32[1]{0}', space=sflag, size = 0x4, scoped, tag = 'scoped memory for tpu_custom_call.1']
    #allocation10 [shape = 'u8[262144]{0}', space=vmem, size = 0x40000, scoped, tag = 'input window, operand 4, single buffered']
    #allocation11 [shape = 'u8[8192]{0}', space=vmem, size = 0x2000, scoped, tag = 'output window, operand 0, single buffered']
    %10 = vsyncpa [#allocation3], 0
    %11 = vsyncpa [#allocation6], 0
    %12 = vsyncpa [#allocation9], 0
    %13 = vsyncpa [#allocation4], 0
    // Predicated region
    $region2: #{tpu_custom_call.1} parent=1 // pred_check
      _
    $region3: #{tpu_custom_call.1} parent=1 // pred_check_branch
      %15 = sbr.rel (0) target = $region5
    $region4: #{tpu_custom_call.1} parent=1 // pred_region
      %s17 = ssub.s32 1536, 1536
      %18 = vsyncadd [#allocation3], %s17
      %s19 = sshll.u32 [#allocation2], 4
      %s20 = int_to_ptr.vmem [resolvable:$true] %s19
      %25 = dma.hbm_to_vmem [thread:$0]  %s0, 1536, %s20, [#allocation3], 768, 768, 48
    $region5: #{tpu_custom_call.1} parent=1 // pred_fallthru
      _
    // Predicated region
    $region6: #{tpu_custom_call.1} parent=1 // pred_check
      _
    $region7: #{tpu_custom_call.1} parent=1 // pred_check_branch
      %27 = sbr.rel (0) target = $region9
    $region8: #{tpu_custom_call.1} parent=1 // pred_region
      %s29 = ssub.s32 98304, 98304
      %30 = vsyncadd [#allocation6], %s29
      %s31 = sshll.u32 [#allocation5], 4
      %s32 = int_to_ptr.vmem [resolvable:$true] %s31
      %37 = dma.hbm_to_vmem [thread:$0]  %s1, 98304, %s32, [#allocation6], 512, 512, 32
    $region9: #{tpu_custom_call.1} parent=1 // pred_fallthru
      _
    // Predicated region
    $region10: #{tpu_custom_call.1} parent=1 // pred_check
      _
    $region11: #{tpu_custom_call.1} parent=1 // pred_check_branch
      %39 = sbr.rel (0) target = $region13
    $region12: #{tpu_custom_call.1} parent=1 // pred_region
      %s41 = ssub.s32 128, 128
      %42 = vsyncadd [#allocation6], %s41
      %s44 = sshll.u32 [#allocation7], 4
      %s45 = int_to_ptr.vmem [resolvable:$true] %s44
      %47 = dma.hbm_to_vmem [thread:$0]  %s2, 128, %s45, [#allocation6]
    $region13: #{tpu_custom_call.1} parent=1 // pred_fallthru
      _
    // Predicated region
    $region14: #{tpu_custom_call.1} parent=1 // pred_check
      _
    $region15: #{tpu_custom_call.1} parent=1 // pred_check_branch
      %49 = sbr.rel (0) target = $region17
    $region16: #{tpu_custom_call.1} parent=1 // pred_region
      %s51 = ssub.s32 128, 128
      %52 = vsyncadd [#allocation9], %s51
      %s54 = sshll.u32 [#allocation8], 4
      %s55 = int_to_ptr.vmem [resolvable:$true] %s54
      %57 = dma.hbm_to_vmem [thread:$0]  %s3, 128, %s55, [#allocation9]
    $region17: #{tpu_custom_call.1} parent=1 // pred_fallthru
      _
    // Predicated region
    $region18: #{tpu_custom_call.1} parent=1 // pred_check
      _
    $region19: #{tpu_custom_call.1} parent=1 // pred_check_branch
      %59 = sbr.rel (0) target = $region21
    $region20: #{tpu_custom_call.1} parent=1 // pred_region
      %s61 = ssub.s32 8192, 8192
      %62 = vsyncadd [#allocation9], %s61
      %s63 = sshll.u32 [#allocation10], 4
      %s64 = int_to_ptr.vmem [resolvable:$true] %s63
      %69 = dma.hbm_to_vmem [thread:$0]  %s4, 8192, %s64, [#allocation9], 64, 64, 4
    $region21: #{tpu_custom_call.1} parent=1 // pred_fallthru
      _
    // Predicated region
    $region22: #{tpu_custom_call.1} parent=1 // pred_check
      _
    $region23: #{tpu_custom_call.1} parent=1 // pred_check_branch
      %71 = sbr.rel (0) target = $region25
    $region24: #{tpu_custom_call.1} parent=1 // pred_region
      %72 = dma.done [#allocation3], 1536
    $region25: #{tpu_custom_call.1} parent=1 // pred_fallthru
      _
    // Predicated region
    $region26: #{tpu_custom_call.1} parent=1 // pred_check
      _
    $region27: #{tpu_custom_call.1} parent=1 // pred_check_branch
      %74 = sbr.rel (0) target = $region29
    $region28: #{tpu_custom_call.1} parent=1 // pred_region
      %75 = dma.done [#allocation6], 98304
    $region29: #{tpu_custom_call.1} parent=1 // pred_fallthru
      _
    // Predicated region
    $region30: #{tpu_custom_call.1} parent=1 // pred_check
      _
    $region31: #{tpu_custom_call.1} parent=1 // pred_check_branch
      %77 = sbr.rel (0) target = $region33
    $region32: #{tpu_custom_call.1} parent=1 // pred_region
      %78 = dma.done [#allocation6], 128
    $region33: #{tpu_custom_call.1} parent=1 // pred_fallthru
      _
    // Predicated region
    $region34: #{tpu_custom_call.1} parent=1 // pred_check
      _
    $region35: #{tpu_custom_call.1} parent=1 // pred_check_branch
      %80 = sbr.rel (0) target = $region37
    $region36: #{tpu_custom_call.1} parent=1 // pred_region
      %81 = dma.done [#allocation9], 128
    $region37: #{tpu_custom_call.1} parent=1 // pred_fallthru
      _
    // Predicated region
    $region38: #{tpu_custom_call.1} parent=1 // pred_check
      _
    $region39: #{tpu_custom_call.1} parent=1 // pred_check_branch
      %83 = sbr.rel (0) target = $region41
    $region40: #{tpu_custom_call.1} parent=1 // pred_region
      %84 = dma.done [#allocation9], 8192
    $region41: #{tpu_custom_call.1} parent=1 // pred_fallthru
      _
    %v86 = vld [vmem:[#allocation2] sm:$0xff]
    %v87 = vld [vmem:[#allocation2 + $0x8] sm:$0xff]
    %v88 = vld [vmem:[#allocation2 + $0x10] sm:$0xff]
    %v89 = vld [vmem:[#allocation2 + $0x18] sm:$0xff]
    %v90 = vld [vmem:[#allocation2 + $0x20] sm:$0xff]
    %v91 = vld [vmem:[#allocation2 + $0x28] sm:$0xff]
    %v92 = vld [vmem:[#allocation2 + $0x30] sm:$0xff]
    %v93 = vld [vmem:[#allocation2 + $0x38] sm:$0xff]
    %v94 = vld [vmem:[#allocation2 + $0x40] sm:$0xff]
    %v95 = vld [vmem:[#allocation2 + $0x48] sm:$0xff]
    %v96 = vld [vmem:[#allocation2 + $0x50] sm:$0xff]
    %v97 = vld [vmem:[#allocation2 + $0x58] sm:$0xff]
    %v98 = vld [vmem:[#allocation5] sm:$0xff]
    %v99 = vld [vmem:[#allocation5 + $0x8] sm:$0xff]
    %v100 = vld [vmem:[#allocation5 + $0x10] sm:$0xff]
    %v101 = vld [vmem:[#allocation5 + $0x18] sm:$0xff]
    %v102 = vld [vmem:[#allocation5 + $0x20] sm:$0xff]
    %v103 = vld [vmem:[#allocation5 + $0x28] sm:$0xff]
    %v104 = vld [vmem:[#allocation5 + $0x30] sm:$0xff]
    %v105 = vld [vmem:[#allocation5 + $0x38] sm:$0xff]
    %v106 = vld [vmem:[#allocation5 + $0x40] sm:$0xff]
    %v107 = vld [vmem:[#allocation5 + $0x48] sm:$0xff]
    %v108 = vld [vmem:[#allocation5 + $0x50] sm:$0xff]
    %v109 = vld [vmem:[#allocation5 + $0x58] sm:$0xff]
    %v110 = vld [vmem:[#allocation5 + $0x60] sm:$0xff]
    %v111 = vld [vmem:[#allocation5 + $0x68] sm:$0xff]
    %v112 = vld [vmem:[#allocation5 + $0x70] sm:$0xff]
    %v113 = vld [vmem:[#allocation5 + $0x78] sm:$0xff]
    %v114 = vld [vmem:[#allocation5 + $0x80] sm:$0xff]
    %v115 = vld [vmem:[#allocation5 + $0x88] sm:$0xff]
    %v116 = vld [vmem:[#allocation5 + $0x90] sm:$0xff]
    %v117 = vld [vmem:[#allocation5 + $0x98] sm:$0xff]
    %v118 = vld [vmem:[#allocation5 + $0xa0] sm:$0xff]
    %v119 = vld [vmem:[#allocation5 + $0xa8] sm:$0xff]
    %v120 = vld [vmem:[#allocation5 + $0xb0] sm:$0xff]
    %v121 = vld [vmem:[#allocation5 + $0xb8] sm:$0xff]
    %v122 = vld [vmem:[#allocation5 + $0xc0] sm:$0xff]
    %v123 = vld [vmem:[#allocation5 + $0xc8] sm:$0xff]
    %v124 = vld [vmem:[#allocation5 + $0xd0] sm:$0xff]
    %v125 = vld [vmem:[#allocation5 + $0xd8] sm:$0xff]
    %v126 = vld [vmem:[#allocation5 + $0xe0] sm:$0xff]
    %v127 = vld [vmem:[#allocation5 + $0xe8] sm:$0xff]
    %v128 = vld [vmem:[#allocation5 + $0xf0] sm:$0xff]
    %v129 = vld [vmem:[#allocation5 + $0xf8] sm:$0xff]
    %v130 = vld [vmem:[#allocation5 + $0x100] sm:$0xff]
    %v131 = vld [vmem:[#allocation5 + $0x108] sm:$0xff]
    %v132 = vld [vmem:[#allocation5 + $0x110] sm:$0xff]
    %v133 = vld [vmem:[#allocation5 + $0x118] sm:$0xff]
    %v134 = vld [vmem:[#allocation5 + $0x120] sm:$0xff]
    %v135 = vld [vmem:[#allocation5 + $0x128] sm:$0xff]
    %v136 = vld [vmem:[#allocation5 + $0x130] sm:$0xff]
    %v137 = vld [vmem:[#allocation5 + $0x138] sm:$0xff]
    %v138 = vld [vmem:[#allocation5 + $0x140] sm:$0xff]
    %v139 = vld [vmem:[#allocation5 + $0x148] sm:$0xff]
    %v140 = vld [vmem:[#allocation5 + $0x150] sm:$0xff]
    %v141 = vld [vmem:[#allocation5 + $0x158] sm:$0xff]
    %v142 = vld [vmem:[#allocation5 + $0x160] sm:$0xff]
    %v143 = vld [vmem:[#allocation5 + $0x168] sm:$0xff]
    %v144 = vld [vmem:[#allocation5 + $0x170] sm:$0xff]
    %v145 = vld [vmem:[#allocation5 + $0x178] sm:$0xff]
    %v146 = vld [vmem:[#allocation5 + $0x180] sm:$0xff]
    %v147 = vld [vmem:[#allocation5 + $0x188] sm:$0xff]
    %v148 = vld [vmem:[#allocation5 + $0x190] sm:$0xff]
    %v149 = vld [vmem:[#allocation5 + $0x198] sm:$0xff]
    %v150 = vld [vmem:[#allocation5 + $0x1a0] sm:$0xff]
    %v151 = vld [vmem:[#allocation5 + $0x1a8] sm:$0xff]
    %v152 = vld [vmem:[#allocation5 + $0x1b0] sm:$0xff]
    %v153 = vld [vmem:[#allocation5 + $0x1b8] sm:$0xff]
    %v154 = vld [vmem:[#allocation5 + $0x1c0] sm:$0xff]
    %v155 = vld [vmem:[#allocation5 + $0x1c8] sm:$0xff]
    %v156 = vld [vmem:[#allocation5 + $0x1d0] sm:$0xff]
    %v157 = vld [vmem:[#allocation5 + $0x1d8] sm:$0xff]
    %v158 = vld [vmem:[#allocation5 + $0x1e0] sm:$0xff]
    %v159 = vld [vmem:[#allocation5 + $0x1e8] sm:$0xff]
    %v160 = vld [vmem:[#allocation5 + $0x1f0] sm:$0xff]
    %v161 = vld [vmem:[#allocation5 + $0x1f8] sm:$0xff]
    %v162 = vld [vmem:[#allocation5 + $0x200] sm:$0xff]
    %v163 = vld [vmem:[#allocation5 + $0x208] sm:$0xff]
    %v164 = vld [vmem:[#allocation5 + $0x210] sm:$0xff]
    %v165 = vld [vmem:[#allocation5 + $0x218] sm:$0xff]
    %v166 = vld [vmem:[#allocation5 + $0x220] sm:$0xff]
    %v167 = vld [vmem:[#allocation5 + $0x228] sm:$0xff]
    %v168 = vld [vmem:[#allocation5 + $0x230] sm:$0xff]
    %v169 = vld [vmem:[#allocation5 + $0x238] sm:$0xff]
    %v170 = vld [vmem:[#allocation5 + $0x240] sm:$0xff]
    %v171 = vld [vmem:[#allocation5 + $0x248] sm:$0xff]
    %v172 = vld [vmem:[#allocation5 + $0x250] sm:$0xff]
    %v173 = vld [vmem:[#allocation5 + $0x258] sm:$0xff]
    %v174 = vld [vmem:[#allocation5 + $0x260] sm:$0xff]
    %v175 = vld [vmem:[#allocation5 + $0x268] sm:$0xff]
    %v176 = vld [vmem:[#allocation5 + $0x270] sm:$0xff]
    %v177 = vld [vmem:[#allocation5 + $0x278] sm:$0xff]
    %v178 = vld [vmem:[#allocation5 + $0x280] sm:$0xff]
    %v179 = vld [vmem:[#allocation5 + $0x288] sm:$0xff]
    %v180 = vld [vmem:[#allocation5 + $0x290] sm:$0xff]
    %v181 = vld [vmem:[#allocation5 + $0x298] sm:$0xff]
    %v182 = vld [vmem:[#allocation5 + $0x2a0] sm:$0xff]
    %v183 = vld [vmem:[#allocation5 + $0x2a8] sm:$0xff]
    %v184 = vld [vmem:[#allocation5 + $0x2b0] sm:$0xff]
    %v185 = vld [vmem:[#allocation5 + $0x2b8] sm:$0xff]
    %v186 = vld [vmem:[#allocation5 + $0x2c0] sm:$0xff]
    %v187 = vld [vmem:[#allocation5 + $0x2c8] sm:$0xff]
    %v188 = vld [vmem:[#allocation5 + $0x2d0] sm:$0xff]
    %v189 = vld [vmem:[#allocation5 + $0x2d8] sm:$0xff]
    %v190 = vld [vmem:[#allocation5 + $0x2e0] sm:$0xff]
    %v191 = vld [vmem:[#allocation5 + $0x2e8] sm:$0xff]
    %v192 = vld [vmem:[#allocation5 + $0x2f0] sm:$0xff]
    %v193 = vld [vmem:[#allocation5 + $0x2f8] sm:$0xff]
    %v194 = vld [vmem:[#allocation5 + $0x300] sm:$0xff]
    %v195 = vld [vmem:[#allocation5 + $0x308] sm:$0xff]
    %v196 = vld [vmem:[#allocation5 + $0x310] sm:$0xff]
    %v197 = vld [vmem:[#allocation5 + $0x318] sm:$0xff]
    %v198 = vld [vmem:[#allocation5 + $0x320] sm:$0xff]
    %v199 = vld [vmem:[#allocation5 + $0x328] sm:$0xff]
    %v200 = vld [vmem:[#allocation5 + $0x330] sm:$0xff]
    %v201 = vld [vmem:[#allocation5 + $0x338] sm:$0xff]
    %v202 = vld [vmem:[#allocation5 + $0x340] sm:$0xff]
    %v203 = vld [vmem:[#allocation5 + $0x348] sm:$0xff]
    %v204 = vld [vmem:[#allocation5 + $0x350] sm:$0xff]
    %v205 = vld [vmem:[#allocation5 + $0x358] sm:$0xff]
    %v206 = vld [vmem:[#allocation5 + $0x360] sm:$0xff]
    %v207 = vld [vmem:[#allocation5 + $0x368] sm:$0xff]
    %v208 = vld [vmem:[#allocation5 + $0x370] sm:$0xff]
    %v209 = vld [vmem:[#allocation5 + $0x378] sm:$0xff]
    %v210 = vld [vmem:[#allocation5 + $0x380] sm:$0xff]
    %v211 = vld [vmem:[#allocation5 + $0x388] sm:$0xff]
    %v212 = vld [vmem:[#allocation5 + $0x390] sm:$0xff]
    %v213 = vld [vmem:[#allocation5 + $0x398] sm:$0xff]
    %v214 = vld [vmem:[#allocation5 + $0x3a0] sm:$0xff]
    %v215 = vld [vmem:[#allocation5 + $0x3a8] sm:$0xff]
    %v216 = vld [vmem:[#allocation5 + $0x3b0] sm:$0xff]
    %v217 = vld [vmem:[#allocation5 + $0x3b8] sm:$0xff]
    %v218 = vld [vmem:[#allocation5 + $0x3c0] sm:$0xff]
    %v219 = vld [vmem:[#allocation5 + $0x3c8] sm:$0xff]
    %v220 = vld [vmem:[#allocation5 + $0x3d0] sm:$0xff]
    %v221 = vld [vmem:[#allocation5 + $0x3d8] sm:$0xff]
    %v222 = vld [vmem:[#allocation5 + $0x3e0] sm:$0xff]
    %v223 = vld [vmem:[#allocation5 + $0x3e8] sm:$0xff]
    %v224 = vld [vmem:[#allocation5 + $0x3f0] sm:$0xff]
    %v225 = vld [vmem:[#allocation5 + $0x3f8] sm:$0xff]
    %v226 = vld [vmem:[#allocation5 + $0x400] sm:$0xff]
    %v227 = vld [vmem:[#allocation5 + $0x408] sm:$0xff]
    %v228 = vld [vmem:[#allocation5 + $0x410] sm:$0xff]
    %v229 = vld [vmem:[#allocation5 + $0x418] sm:$0xff]
    %v230 = vld [vmem:[#allocation5 + $0x420] sm:$0xff]
    %v231 = vld [vmem:[#allocation5 + $0x428] sm:$0xff]
    %v232 = vld [vmem:[#allocation5 + $0x430] sm:$0xff]
    %v233 = vld [vmem:[#allocation5 + $0x438] sm:$0xff]
    %v234 = vld [vmem:[#allocation5 + $0x440] sm:$0xff]
    %v235 = vld [vmem:[#allocation5 + $0x448] sm:$0xff]
    %v236 = vld [vmem:[#allocation5 + $0x450] sm:$0xff]
    %v237 = vld [vmem:[#allocation5 + $0x458] sm:$0xff]
    %v238 = vld [vmem:[#allocation5 + $0x460] sm:$0xff]
    %v239 = vld [vmem:[#allocation5 + $0x468] sm:$0xff]
    %v240 = vld [vmem:[#allocation5 + $0x470] sm:$0xff]
    %v241 = vld [vmem:[#allocation5 + $0x478] sm:$0xff]
    %v242 = vld [vmem:[#allocation5 + $0x480] sm:$0xff]
    %v243 = vld [vmem:[#allocation5 + $0x488] sm:$0xff]
    %v244 = vld [vmem:[#allocation5 + $0x490] sm:$0xff]
    %v245 = vld [vmem:[#allocation5 + $0x498] sm:$0xff]
    %v246 = vld [vmem:[#allocation5 + $0x4a0] sm:$0xff]
    %v247 = vld [vmem:[#allocation5 + $0x4a8] sm:$0xff]
    %v248 = vld [vmem:[#allocation5 + $0x4b0] sm:$0xff]
    %v249 = vld [vmem:[#allocation5 + $0x4b8] sm:$0xff]
    %v250 = vld [vmem:[#allocation5 + $0x4c0] sm:$0xff]
    %v251 = vld [vmem:[#allocation5 + $0x4c8] sm:$0xff]
    %v252 = vld [vmem:[#allocation5 + $0x4d0] sm:$0xff]
    %v253 = vld [vmem:[#allocation5 + $0x4d8] sm:$0xff]
    %v254 = vld [vmem:[#allocation5 + $0x4e0] sm:$0xff]
    %v255 = vld [vmem:[#allocation5 + $0x4e8] sm:$0xff]
    %v256 = vld [vmem:[#allocation5 + $0x4f0] sm:$0xff]
    %v257 = vld [vmem:[#allocation5 + $0x4f8] sm:$0xff]
    %v258 = vld [vmem:[#allocation5 + $0x500] sm:$0xff]
    %v259 = vld [vmem:[#allocation5 + $0x508] sm:$0xff]
    %v260 = vld [vmem:[#allocation5 + $0x510] sm:$0xff]
    %v261 = vld [vmem:[#allocation5 + $0x518] sm:$0xff]
    %v262 = vld [vmem:[#allocation5 + $0x520] sm:$0xff]
    %v263 = vld [vmem:[#allocation5 + $0x528] sm:$0xff]
    %v264 = vld [vmem:[#allocation5 + $0x530] sm:$0xff]
    %v265 = vld [vmem:[#allocation5 + $0x538] sm:$0xff]
    %v266 = vld [vmem:[#allocation5 + $0x540] sm:$0xff]
    %v267 = vld [vmem:[#allocation5 + $0x548] sm:$0xff]
    %v268 = vld [vmem:[#allocation5 + $0x550] sm:$0xff]
    %v269 = vld [vmem:[#allocation5 + $0x558] sm:$0xff]
    %v270 = vld [vmem:[#allocation5 + $0x560] sm:$0xff]
    %v271 = vld [vmem:[#allocation5 + $0x568] sm:$0xff]
    %v272 = vld [vmem:[#allocation5 + $0x570] sm:$0xff]
    %v273 = vld [vmem:[#allocation5 + $0x578] sm:$0xff]
    %v274 = vld [vmem:[#allocation5 + $0x580] sm:$0xff]
    %v275 = vld [vmem:[#allocation5 + $0x588] sm:$0xff]
    %v276 = vld [vmem:[#allocation5 + $0x590] sm:$0xff]
    %v277 = vld [vmem:[#allocation5 + $0x598] sm:$0xff]
    %v278 = vld [vmem:[#allocation5 + $0x5a0] sm:$0xff]
    %v279 = vld [vmem:[#allocation5 + $0x5a8] sm:$0xff]
    %v280 = vld [vmem:[#allocation5 + $0x5b0] sm:$0xff]
    %v281 = vld [vmem:[#allocation5 + $0x5b8] sm:$0xff]
    %v282 = vld [vmem:[#allocation5 + $0x5c0] sm:$0xff]
    %v283 = vld [vmem:[#allocation5 + $0x5c8] sm:$0xff]
    %v284 = vld [vmem:[#allocation5 + $0x5d0] sm:$0xff]
    %v285 = vld [vmem:[#allocation5 + $0x5d8] sm:$0xff]
    %v286 = vld [vmem:[#allocation5 + $0x5e0] sm:$0xff]
    %v287 = vld [vmem:[#allocation5 + $0x5e8] sm:$0xff]
    %v288 = vld [vmem:[#allocation5 + $0x5f0] sm:$0xff]
    %v289 = vld [vmem:[#allocation5 + $0x5f8] sm:$0xff]
    %v290 = vld [vmem:[#allocation5 + $0x600] sm:$0xff]
    %v291 = vld [vmem:[#allocation5 + $0x608] sm:$0xff]
    %v292 = vld [vmem:[#allocation5 + $0x610] sm:$0xff]
    %v293 = vld [vmem:[#allocation5 + $0x618] sm:$0xff]
    %v294 = vld [vmem:[#allocation5 + $0x620] sm:$0xff]
    %v295 = vld [vmem:[#allocation5 + $0x628] sm:$0xff]
    %v296 = vld [vmem:[#allocation5 + $0x630] sm:$0xff]
    %v297 = vld [vmem:[#allocation5 + $0x638] sm:$0xff]
    %v298 = vld [vmem:[#allocation5 + $0x640] sm:$0xff]
    %v299 = vld [vmem:[#allocation5 + $0x648] sm:$0xff]
    %v300 = vld [vmem:[#allocation5 + $0x650] sm:$0xff]
    %v301 = vld [vmem:[#allocation5 + $0x658] sm:$0xff]
    %v302 = vld [vmem:[#allocation5 + $0x660] sm:$0xff]
    %v303 = vld [vmem:[#allocation5 + $0x668] sm:$0xff]
    %v304 = vld [vmem:[#allocation5 + $0x670] sm:$0xff]
    %v305 = vld [vmem:[#allocation5 + $0x678] sm:$0xff]
    %v306 = vld [vmem:[#allocation5 + $0x680] sm:$0xff]
    %v307 = vld [vmem:[#allocation5 + $0x688] sm:$0xff]
    %v308 = vld [vmem:[#allocation5 + $0x690] sm:$0xff]
    %v309 = vld [vmem:[#allocation5 + $0x698] sm:$0xff]
    %v310 = vld [vmem:[#allocation5 + $0x6a0] sm:$0xff]
    %v311 = vld [vmem:[#allocation5 + $0x6a8] sm:$0xff]
    %v312 = vld [vmem:[#allocation5 + $0x6b0] sm:$0xff]
    %v313 = vld [vmem:[#allocation5 + $0x6b8] sm:$0xff]
    %v314 = vld [vmem:[#allocation5 + $0x6c0] sm:$0xff]
    %v315 = vld [vmem:[#allocation5 + $0x6c8] sm:$0xff]
    %v316 = vld [vmem:[#allocation5 + $0x6d0] sm:$0xff]
    %v317 = vld [vmem:[#allocation5 + $0x6d8] sm:$0xff]
    %v318 = vld [vmem:[#allocation5 + $0x6e0] sm:$0xff]
    %v319 = vld [vmem:[#allocation5 + $0x6e8] sm:$0xff]
    %v320 = vld [vmem:[#allocation5 + $0x6f0] sm:$0xff]
    %v321 = vld [vmem:[#allocation5 + $0x6f8] sm:$0xff]
    %v322 = vld [vmem:[#allocation5 + $0x700] sm:$0xff]
    %v323 = vld [vmem:[#allocation5 + $0x708] sm:$0xff]
    %v324 = vld [vmem:[#allocation5 + $0x710] sm:$0xff]
    %v325 = vld [vmem:[#allocation5 + $0x718] sm:$0xff]
    %v326 = vld [vmem:[#allocation5 + $0x720] sm:$0xff]
    %v327 = vld [vmem:[#allocation5 + $0x728] sm:$0xff]
    %v328 = vld [vmem:[#allocation5 + $0x730] sm:$0xff]
    %v329 = vld [vmem:[#allocation5 + $0x738] sm:$0xff]
    %v330 = vld [vmem:[#allocation5 + $0x740] sm:$0xff]
    %v331 = vld [vmem:[#allocation5 + $0x748] sm:$0xff]
    %v332 = vld [vmem:[#allocation5 + $0x750] sm:$0xff]
    %v333 = vld [vmem:[#allocation5 + $0x758] sm:$0xff]
    %v334 = vld [vmem:[#allocation5 + $0x760] sm:$0xff]
    %v335 = vld [vmem:[#allocation5 + $0x768] sm:$0xff]
    %v336 = vld [vmem:[#allocation5 + $0x770] sm:$0xff]
    %v337 = vld [vmem:[#allocation5 + $0x778] sm:$0xff]
    %v338 = vld [vmem:[#allocation5 + $0x780] sm:$0xff]
    %v339 = vld [vmem:[#allocation5 + $0x788] sm:$0xff]
    %v340 = vld [vmem:[#allocation5 + $0x790] sm:$0xff]
    %v341 = vld [vmem:[#allocation5 + $0x798] sm:$0xff]
    %v342 = vld [vmem:[#allocation5 + $0x7a0] sm:$0xff]
    %v343 = vld [vmem:[#allocation5 + $0x7a8] sm:$0xff]
    %v344 = vld [vmem:[#allocation5 + $0x7b0] sm:$0xff]
    %v345 = vld [vmem:[#allocation5 + $0x7b8] sm:$0xff]
    %v346 = vld [vmem:[#allocation5 + $0x7c0] sm:$0xff]
    %v347 = vld [vmem:[#allocation5 + $0x7c8] sm:$0xff]
    %v348 = vld [vmem:[#allocation5 + $0x7d0] sm:$0xff]
    %v349 = vld [vmem:[#allocation5 + $0x7d8] sm:$0xff]
    %v350 = vld [vmem:[#allocation5 + $0x7e0] sm:$0xff]
    %v351 = vld [vmem:[#allocation5 + $0x7e8] sm:$0xff]
    %v352 = vld [vmem:[#allocation5 + $0x7f0] sm:$0xff]
    %v353 = vld [vmem:[#allocation5 + $0x7f8] sm:$0xff]
    %v354 = vld [vmem:[#allocation5 + $0x800] sm:$0xff]
    %v355 = vld [vmem:[#allocation5 + $0x808] sm:$0xff]
    %v356 = vld [vmem:[#allocation5 + $0x810] sm:$0xff]
    %v357 = vld [vmem:[#allocation5 + $0x818] sm:$0xff]
    %v358 = vld [vmem:[#allocation5 + $0x820] sm:$0xff]
    %v359 = vld [vmem:[#allocation5 + $0x828] sm:$0xff]
    %v360 = vld [vmem:[#allocation5 + $0x830] sm:$0xff]
    %v361 = vld [vmem:[#allocation5 + $0x838] sm:$0xff]
    %v362 = vld [vmem:[#allocation5 + $0x840] sm:$0xff]
    %v363 = vld [vmem:[#allocation5 + $0x848] sm:$0xff]
    %v364 = vld [vmem:[#allocation5 + $0x850] sm:$0xff]
    %v365 = vld [vmem:[#allocation5 + $0x858] sm:$0xff]
    %v366 = vld [vmem:[#allocation5 + $0x860] sm:$0xff]
    %v367 = vld [vmem:[#allocation5 + $0x868] sm:$0xff]
    %v368 = vld [vmem:[#allocation5 + $0x870] sm:$0xff]
    %v369 = vld [vmem:[#allocation5 + $0x878] sm:$0xff]
    %v370 = vld [vmem:[#allocation5 + $0x880] sm:$0xff]
    %v371 = vld [vmem:[#allocation5 + $0x888] sm:$0xff]
    %v372 = vld [vmem:[#allocation5 + $0x890] sm:$0xff]
    %v373 = vld [vmem:[#allocation5 + $0x898] sm:$0xff]
    %v374 = vld [vmem:[#allocation5 + $0x8a0] sm:$0xff]
    %v375 = vld [vmem:[#allocation5 + $0x8a8] sm:$0xff]
    %v376 = vld [vmem:[#allocation5 + $0x8b0] sm:$0xff]
    %v377 = vld [vmem:[#allocation5 + $0x8b8] sm:$0xff]
    %v378 = vld [vmem:[#allocation5 + $0x8c0] sm:$0xff]
    %v379 = vld [vmem:[#allocation5 + $0x8c8] sm:$0xff]
    %v380 = vld [vmem:[#allocation5 + $0x8d0] sm:$0xff]
    %v381 = vld [vmem:[#allocation5 + $0x8d8] sm:$0xff]
    %v382 = vld [vmem:[#allocation5 + $0x8e0] sm:$0xff]
    %v383 = vld [vmem:[#allocation5 + $0x8e8] sm:$0xff]
    %v384 = vld [vmem:[#allocation5 + $0x8f0] sm:$0xff]
    %v385 = vld [vmem:[#allocation5 + $0x8f8] sm:$0xff]
    %v386 = vld [vmem:[#allocation5 + $0x900] sm:$0xff]
    %v387 = vld [vmem:[#allocation5 + $0x908] sm:$0xff]
    %v388 = vld [vmem:[#allocation5 + $0x910] sm:$0xff]
    %v389 = vld [vmem:[#allocation5 + $0x918] sm:$0xff]
    %v390 = vld [vmem:[#allocation5 + $0x920] sm:$0xff]
    %v391 = vld [vmem:[#allocation5 + $0x928] sm:$0xff]
    %v392 = vld [vmem:[#allocation5 + $0x930] sm:$0xff]
    %v393 = vld [vmem:[#allocation5 + $0x938] sm:$0xff]
    %v394 = vld [vmem:[#allocation5 + $0x940] sm:$0xff]
    %v395 = vld [vmem:[#allocation5 + $0x948] sm:$0xff]
    %v396 = vld [vmem:[#allocation5 + $0x950] sm:$0xff]
    %v397 = vld [vmem:[#allocation5 + $0x958] sm:$0xff]
    %v398 = vld [vmem:[#allocation5 + $0x960] sm:$0xff]
    %v399 = vld [vmem:[#allocation5 + $0x968] sm:$0xff]
    %v400 = vld [vmem:[#allocation5 + $0x970] sm:$0xff]
    %v401 = vld [vmem:[#allocation5 + $0x978] sm:$0xff]
    %v402 = vld [vmem:[#allocation5 + $0x980] sm:$0xff]
    %v403 = vld [vmem:[#allocation5 + $0x988] sm:$0xff]
    %v404 = vld [vmem:[#allocation5 + $0x990] sm:$0xff]
    %v405 = vld [vmem:[#allocation5 + $0x998] sm:$0xff]
    %v406 = vld [vmem:[#allocation5 + $0x9a0] sm:$0xff]
    %v407 = vld [vmem:[#allocation5 + $0x9a8] sm:$0xff]
    %v408 = vld [vmem:[#allocation5 + $0x9b0] sm:$0xff]
    %v409 = vld [vmem:[#allocation5 + $0x9b8] sm:$0xff]
    %v410 = vld [vmem:[#allocation5 + $0x9c0] sm:$0xff]
    %v411 = vld [vmem:[#allocation5 + $0x9c8] sm:$0xff]
    %v412 = vld [vmem:[#allocation5 + $0x9d0] sm:$0xff]
    %v413 = vld [vmem:[#allocation5 + $0x9d8] sm:$0xff]
    %v414 = vld [vmem:[#allocation5 + $0x9e0] sm:$0xff]
    %v415 = vld [vmem:[#allocation5 + $0x9e8] sm:$0xff]
    %v416 = vld [vmem:[#allocation5 + $0x9f0] sm:$0xff]
    %v417 = vld [vmem:[#allocation5 + $0x9f8] sm:$0xff]
    %v418 = vld [vmem:[#allocation5 + $0xa00] sm:$0xff]
    %v419 = vld [vmem:[#allocation5 + $0xa08] sm:$0xff]
    %v420 = vld [vmem:[#allocation5 + $0xa10] sm:$0xff]
    %v421 = vld [vmem:[#allocation5 + $0xa18] sm:$0xff]
    %v422 = vld [vmem:[#allocation5 + $0xa20] sm:$0xff]
    %v423 = vld [vmem:[#allocation5 + $0xa28] sm:$0xff]
    %v424 = vld [vmem:[#allocation5 + $0xa30] sm:$0xff]
    %v425 = vld [vmem:[#allocation5 + $0xa38] sm:$0xff]
    %v426 = vld [vmem:[#allocation5 + $0xa40] sm:$0xff]
    %v427 = vld [vmem:[#allocation5 + $0xa48] sm:$0xff]
    %v428 = vld [vmem:[#allocation5 + $0xa50] sm:$0xff]
    %v429 = vld [vmem:[#allocation5 + $0xa58] sm:$0xff]
    %v430 = vld [vmem:[#allocation5 + $0xa60] sm:$0xff]
    %v431 = vld [vmem:[#allocation5 + $0xa68] sm:$0xff]
    %v432 = vld [vmem:[#allocation5 + $0xa70] sm:$0xff]
    %v433 = vld [vmem:[#allocation5 + $0xa78] sm:$0xff]
    %v434 = vld [vmem:[#allocation5 + $0xa80] sm:$0xff]
    %v435 = vld [vmem:[#allocation5 + $0xa88] sm:$0xff]
    %v436 = vld [vmem:[#allocation5 + $0xa90] sm:$0xff]
    %v437 = vld [vmem:[#allocation5 + $0xa98] sm:$0xff]
    %v438 = vld [vmem:[#allocation5 + $0xaa0] sm:$0xff]
    %v439 = vld [vmem:[#allocation5 + $0xaa8] sm:$0xff]
    %v440 = vld [vmem:[#allocation5 + $0xab0] sm:$0xff]
    %v441 = vld [vmem:[#allocation5 + $0xab8] sm:$0xff]
    %v442 = vld [vmem:[#allocation5 + $0xac0] sm:$0xff]
    %v443 = vld [vmem:[#allocation5 + $0xac8] sm:$0xff]
    %v444 = vld [vmem:[#allocation5 + $0xad0] sm:$0xff]
    %v445 = vld [vmem:[#allocation5 + $0xad8] sm:$0xff]
    %v446 = vld [vmem:[#allocation5 + $0xae0] sm:$0xff]
    %v447 = vld [vmem:[#allocation5 + $0xae8] sm:$0xff]
    %v448 = vld [vmem:[#allocation5 + $0xaf0] sm:$0xff]
    %v449 = vld [vmem:[#allocation5 + $0xaf8] sm:$0xff]
    %v450 = vld [vmem:[#allocation5 + $0xb00] sm:$0xff]
    %v451 = vld [vmem:[#allocation5 + $0xb08] sm:$0xff]
    %v452 = vld [vmem:[#allocation5 + $0xb10] sm:$0xff]
    %v453 = vld [vmem:[#allocation5 + $0xb18] sm:$0xff]
    %v454 = vld [vmem:[#allocation5 + $0xb20] sm:$0xff]
    %v455 = vld [vmem:[#allocation5 + $0xb28] sm:$0xff]
    %v456 = vld [vmem:[#allocation5 + $0xb30] sm:$0xff]
    %v457 = vld [vmem:[#allocation5 + $0xb38] sm:$0xff]
    %v458 = vld [vmem:[#allocation5 + $0xb40] sm:$0xff]
    %v459 = vld [vmem:[#allocation5 + $0xb48] sm:$0xff]
    %v460 = vld [vmem:[#allocation5 + $0xb50] sm:$0xff]
    %v461 = vld [vmem:[#allocation5 + $0xb58] sm:$0xff]
    %v462 = vld [vmem:[#allocation5 + $0xb60] sm:$0xff]
    %v463 = vld [vmem:[#allocation5 + $0xb68] sm:$0xff]
    %v464 = vld [vmem:[#allocation5 + $0xb70] sm:$0xff]
    %v465 = vld [vmem:[#allocation5 + $0xb78] sm:$0xff]
    %v466 = vld [vmem:[#allocation5 + $0xb80] sm:$0xff]
    %v467 = vld [vmem:[#allocation5 + $0xb88] sm:$0xff]
    %v468 = vld [vmem:[#allocation5 + $0xb90] sm:$0xff]
    %v469 = vld [vmem:[#allocation5 + $0xb98] sm:$0xff]
    %v470 = vld [vmem:[#allocation5 + $0xba0] sm:$0xff]
    %v471 = vld [vmem:[#allocation5 + $0xba8] sm:$0xff]
    %v472 = vld [vmem:[#allocation5 + $0xbb0] sm:$0xff]
    %v473 = vld [vmem:[#allocation5 + $0xbb8] sm:$0xff]
    %v474 = vld [vmem:[#allocation5 + $0xbc0] sm:$0xff]
    %v475 = vld [vmem:[#allocation5 + $0xbc8] sm:$0xff]
    %v476 = vld [vmem:[#allocation5 + $0xbd0] sm:$0xff]
    %v477 = vld [vmem:[#allocation5 + $0xbd8] sm:$0xff]
    %v478 = vld [vmem:[#allocation5 + $0xbe0] sm:$0xff]
    %v479 = vld [vmem:[#allocation5 + $0xbe8] sm:$0xff]
    %v480 = vld [vmem:[#allocation5 + $0xbf0] sm:$0xff]
    %v481 = vld [vmem:[#allocation5 + $0xbf8] sm:$0xff]
    %v482 = vld [vmem:[#allocation5 + $0xc00] sm:$0xff]
    %v483 = vld [vmem:[#allocation5 + $0xc08] sm:$0xff]
    %v484 = vld [vmem:[#allocation5 + $0xc10] sm:$0xff]
    %v485 = vld [vmem:[#allocation5 + $0xc18] sm:$0xff]
    %v486 = vld [vmem:[#allocation5 + $0xc20] sm:$0xff]
    %v487 = vld [vmem:[#allocation5 + $0xc28] sm:$0xff]
    %v488 = vld [vmem:[#allocation5 + $0xc30] sm:$0xff]
    %v489 = vld [vmem:[#allocation5 + $0xc38] sm:$0xff]
    %v490 = vld [vmem:[#allocation5 + $0xc40] sm:$0xff]
    %v491 = vld [vmem:[#allocation5 + $0xc48] sm:$0xff]
    %v492 = vld [vmem:[#allocation5 + $0xc50] sm:$0xff]
    %v493 = vld [vmem:[#allocation5 + $0xc58] sm:$0xff]
    %v494 = vld [vmem:[#allocation5 + $0xc60] sm:$0xff]
    %v495 = vld [vmem:[#allocation5 + $0xc68] sm:$0xff]
    %v496 = vld [vmem:[#allocation5 + $0xc70] sm:$0xff]
    %v497 = vld [vmem:[#allocation5 + $0xc78] sm:$0xff]
    %v498 = vld [vmem:[#allocation5 + $0xc80] sm:$0xff]
    %v499 = vld [vmem:[#allocation5 + $0xc88] sm:$0xff]
    %v500 = vld [vmem:[#allocation5 + $0xc90] sm:$0xff]
    %v501 = vld [vmem:[#allocation5 + $0xc98] sm:$0xff]
    %v502 = vld [vmem:[#allocation5 + $0xca0] sm:$0xff]
    %v503 = vld [vmem:[#allocation5 + $0xca8] sm:$0xff]
    %v504 = vld [vmem:[#allocation5 + $0xcb0] sm:$0xff]
    %v505 = vld [vmem:[#allocation5 + $0xcb8] sm:$0xff]
    %v506 = vld [vmem:[#allocation5 + $0xcc0] sm:$0xff]
    %v507 = vld [vmem:[#allocation5 + $0xcc8] sm:$0xff]
    %v508 = vld [vmem:[#allocation5 + $0xcd0] sm:$0xff]
    %v509 = vld [vmem:[#allocation5 + $0xcd8] sm:$0xff]
    %v510 = vld [vmem:[#allocation5 + $0xce0] sm:$0xff]
    %v511 = vld [vmem:[#allocation5 + $0xce8] sm:$0xff]
    %v512 = vld [vmem:[#allocation5 + $0xcf0] sm:$0xff]
    %v513 = vld [vmem:[#allocation5 + $0xcf8] sm:$0xff]
    %v514 = vld [vmem:[#allocation5 + $0xd00] sm:$0xff]
    %v515 = vld [vmem:[#allocation5 + $0xd08] sm:$0xff]
    %v516 = vld [vmem:[#allocation5 + $0xd10] sm:$0xff]
    %v517 = vld [vmem:[#allocation5 + $0xd18] sm:$0xff]
    %v518 = vld [vmem:[#allocation5 + $0xd20] sm:$0xff]
    %v519 = vld [vmem:[#allocation5 + $0xd28] sm:$0xff]
    %v520 = vld [vmem:[#allocation5 + $0xd30] sm:$0xff]
    %v521 = vld [vmem:[#allocation5 + $0xd38] sm:$0xff]
    %v522 = vld [vmem:[#allocation5 + $0xd40] sm:$0xff]
    %v523 = vld [vmem:[#allocation5 + $0xd48] sm:$0xff]
    %v524 = vld [vmem:[#allocation5 + $0xd50] sm:$0xff]
    %v525 = vld [vmem:[#allocation5 + $0xd58] sm:$0xff]
    %v526 = vld [vmem:[#allocation5 + $0xd60] sm:$0xff]
    %v527 = vld [vmem:[#allocation5 + $0xd68] sm:$0xff]
    %v528 = vld [vmem:[#allocation5 + $0xd70] sm:$0xff]
    %v529 = vld [vmem:[#allocation5 + $0xd78] sm:$0xff]
    %v530 = vld [vmem:[#allocation5 + $0xd80] sm:$0xff]
    %v531 = vld [vmem:[#allocation5 + $0xd88] sm:$0xff]
    %v532 = vld [vmem:[#allocation5 + $0xd90] sm:$0xff]
    %v533 = vld [vmem:[#allocation5 + $0xd98] sm:$0xff]
    %v534 = vld [vmem:[#allocation5 + $0xda0] sm:$0xff]
    %v535 = vld [vmem:[#allocation5 + $0xda8] sm:$0xff]
    %v536 = vld [vmem:[#allocation5 + $0xdb0] sm:$0xff]
    %v537 = vld [vmem:[#allocation5 + $0xdb8] sm:$0xff]
    %v538 = vld [vmem:[#allocation5 + $0xdc0] sm:$0xff]
    %v539 = vld [vmem:[#allocation5 + $0xdc8] sm:$0xff]
    %v540 = vld [vmem:[#allocation5 + $0xdd0] sm:$0xff]
    %v541 = vld [vmem:[#allocation5 + $0xdd8] sm:$0xff]
    %v542 = vld [vmem:[#allocation5 + $0xde0] sm:$0xff]
    %v543 = vld [vmem:[#allocation5 + $0xde8] sm:$0xff]
    %v544 = vld [vmem:[#allocation5 + $0xdf0] sm:$0xff]
    %v545 = vld [vmem:[#allocation5 + $0xdf8] sm:$0xff]
    %v546 = vld [vmem:[#allocation5 + $0xe00] sm:$0xff]
    %v547 = vld [vmem:[#allocation5 + $0xe08] sm:$0xff]
    %v548 = vld [vmem:[#allocation5 + $0xe10] sm:$0xff]
    %v549 = vld [vmem:[#allocation5 + $0xe18] sm:$0xff]
    %v550 = vld [vmem:[#allocation5 + $0xe20] sm:$0xff]
    %v551 = vld [vmem:[#allocation5 + $0xe28] sm:$0xff]
    %v552 = vld [vmem:[#allocation5 + $0xe30] sm:$0xff]
    %v553 = vld [vmem:[#allocation5 + $0xe38] sm:$0xff]
    %v554 = vld [vmem:[#allocation5 + $0xe40] sm:$0xff]
    %v555 = vld [vmem:[#allocation5 + $0xe48] sm:$0xff]
    %v556 = vld [vmem:[#allocation5 + $0xe50] sm:$0xff]
    %v557 = vld [vmem:[#allocation5 + $0xe58] sm:$0xff]
    %v558 = vld [vmem:[#allocation5 + $0xe60] sm:$0xff]
    %v559 = vld [vmem:[#allocation5 + $0xe68] sm:$0xff]
    %v560 = vld [vmem:[#allocation5 + $0xe70] sm:$0xff]
    %v561 = vld [vmem:[#allocation5 + $0xe78] sm:$0xff]
    %v562 = vld [vmem:[#allocation5 + $0xe80] sm:$0xff]
    %v563 = vld [vmem:[#allocation5 + $0xe88] sm:$0xff]
    %v564 = vld [vmem:[#allocation5 + $0xe90] sm:$0xff]
    %v565 = vld [vmem:[#allocation5 + $0xe98] sm:$0xff]
    %v566 = vld [vmem:[#allocation5 + $0xea0] sm:$0xff]
    %v567 = vld [vmem:[#allocation5 + $0xea8] sm:$0xff]
    %v568 = vld [vmem:[#allocation5 + $0xeb0] sm:$0xff]
    %v569 = vld [vmem:[#allocation5 + $0xeb8] sm:$0xff]
    %v570 = vld [vmem:[#allocation5 + $0xec0] sm:$0xff]
    %v571 = vld [vmem:[#allocation5 + $0xec8] sm:$0xff]
    %v572 = vld [vmem:[#allocation5 + $0xed0] sm:$0xff]
    %v573 = vld [vmem:[#allocation5 + $0xed8] sm:$0xff]
    %v574 = vld [vmem:[#allocation5 + $0xee0] sm:$0xff]
    %v575 = vld [vmem:[#allocation5 + $0xee8] sm:$0xff]
    %v576 = vld [vmem:[#allocation5 + $0xef0] sm:$0xff]
    %v577 = vld [vmem:[#allocation5 + $0xef8] sm:$0xff]
    %v578 = vld [vmem:[#allocation5 + $0xf00] sm:$0xff]
    %v579 = vld [vmem:[#allocation5 + $0xf08] sm:$0xff]
    %v580 = vld [vmem:[#allocation5 + $0xf10] sm:$0xff]
    %v581 = vld [vmem:[#allocation5 + $0xf18] sm:$0xff]
    %v582 = vld [vmem:[#allocation5 + $0xf20] sm:$0xff]
    %v583 = vld [vmem:[#allocation5 + $0xf28] sm:$0xff]
    %v584 = vld [vmem:[#allocation5 + $0xf30] sm:$0xff]
    %v585 = vld [vmem:[#allocation5 + $0xf38] sm:$0xff]
    %v586 = vld [vmem:[#allocation5 + $0xf40] sm:$0xff]
    %v587 = vld [vmem:[#allocation5 + $0xf48] sm:$0xff]
    %v588 = vld [vmem:[#allocation5 + $0xf50] sm:$0xff]
    %v589 = vld [vmem:[#allocation5 + $0xf58] sm:$0xff]
    %v590 = vld [vmem:[#allocation5 + $0xf60] sm:$0xff]
    %v591 = vld [vmem:[#allocation5 + $0xf68] sm:$0xff]
    %v592 = vld [vmem:[#allocation5 + $0xf70] sm:$0xff]
    %v593 = vld [vmem:[#allocation5 + $0xf78] sm:$0xff]
    %v594 = vld [vmem:[#allocation5 + $0xf80] sm:$0xff]
    %v595 = vld [vmem:[#allocation5 + $0xf88] sm:$0xff]
    %v596 = vld [vmem:[#allocation5 + $0xf90] sm:$0xff]
    %v597 = vld [vmem:[#allocation5 + $0xf98] sm:$0xff]
    %v598 = vld [vmem:[#allocation5 + $0xfa0] sm:$0xff]
    %v599 = vld [vmem:[#allocation5 + $0xfa8] sm:$0xff]
    %v600 = vld [vmem:[#allocation5 + $0xfb0] sm:$0xff]
    %v601 = vld [vmem:[#allocation5 + $0xfb8] sm:$0xff]
    %v602 = vld [vmem:[#allocation5 + $0xfc0] sm:$0xff]
    %v603 = vld [vmem:[#allocation5 + $0xfc8] sm:$0xff]
    %v604 = vld [vmem:[#allocation5 + $0xfd0] sm:$0xff]
    %v605 = vld [vmem:[#allocation5 + $0xfd8] sm:$0xff]
    %v606 = vld [vmem:[#allocation5 + $0xfe0] sm:$0xff]
    %v607 = vld [vmem:[#allocation5 + $0xfe8] sm:$0xff]
    %v608 = vld [vmem:[#allocation5 + $0xff0] sm:$0xff]
    %v609 = vld [vmem:[#allocation5 + $0xff8] sm:$0xff]
    %v610 = vld [vmem:[#allocation5 + $0x1000] sm:$0xff]
    %v611 = vld [vmem:[#allocation5 + $0x1008] sm:$0xff]
    %v612 = vld [vmem:[#allocation5 + $0x1010] sm:$0xff]
    %v613 = vld [vmem:[#allocation5 + $0x1018] sm:$0xff]
    %v614 = vld [vmem:[#allocation5 + $0x1020] sm:$0xff]
    %v615 = vld [vmem:[#allocation5 + $0x1028] sm:$0xff]
    %v616 = vld [vmem:[#allocation5 + $0x1030] sm:$0xff]
    %v617 = vld [vmem:[#allocation5 + $0x1038] sm:$0xff]
    %v618 = vld [vmem:[#allocation5 + $0x1040] sm:$0xff]
    %v619 = vld [vmem:[#allocation5 + $0x1048] sm:$0xff]
    %v620 = vld [vmem:[#allocation5 + $0x1050] sm:$0xff]
    %v621 = vld [vmem:[#allocation5 + $0x1058] sm:$0xff]
    %v622 = vld [vmem:[#allocation5 + $0x1060] sm:$0xff]
    %v623 = vld [vmem:[#allocation5 + $0x1068] sm:$0xff]
    %v624 = vld [vmem:[#allocation5 + $0x1070] sm:$0xff]
    %v625 = vld [vmem:[#allocation5 + $0x1078] sm:$0xff]
    %v626 = vld [vmem:[#allocation5 + $0x1080] sm:$0xff]
    %v627 = vld [vmem:[#allocation5 + $0x1088] sm:$0xff]
    %v628 = vld [vmem:[#allocation5 + $0x1090] sm:$0xff]
    %v629 = vld [vmem:[#allocation5 + $0x1098] sm:$0xff]
    %v630 = vld [vmem:[#allocation5 + $0x10a0] sm:$0xff]
    %v631 = vld [vmem:[#allocation5 + $0x10a8] sm:$0xff]
    %v632 = vld [vmem:[#allocation5 + $0x10b0] sm:$0xff]
    %v633 = vld [vmem:[#allocation5 + $0x10b8] sm:$0xff]
    %v634 = vld [vmem:[#allocation5 + $0x10c0] sm:$0xff]
    %v635 = vld [vmem:[#allocation5 + $0x10c8] sm:$0xff]
    %v636 = vld [vmem:[#allocation5 + $0x10d0] sm:$0xff]
    %v637 = vld [vmem:[#allocation5 + $0x10d8] sm:$0xff]
    %v638 = vld [vmem:[#allocation5 + $0x10e0] sm:$0xff]
    %v639 = vld [vmem:[#allocation5 + $0x10e8] sm:$0xff]
    %v640 = vld [vmem:[#allocation5 + $0x10f0] sm:$0xff]
    %v641 = vld [vmem:[#allocation5 + $0x10f8] sm:$0xff]
    %v642 = vld [vmem:[#allocation5 + $0x1100] sm:$0xff]
    %v643 = vld [vmem:[#allocation5 + $0x1108] sm:$0xff]
    %v644 = vld [vmem:[#allocation5 + $0x1110] sm:$0xff]
    %v645 = vld [vmem:[#allocation5 + $0x1118] sm:$0xff]
    %v646 = vld [vmem:[#allocation5 + $0x1120] sm:$0xff]
    %v647 = vld [vmem:[#allocation5 + $0x1128] sm:$0xff]
    %v648 = vld [vmem:[#allocation5 + $0x1130] sm:$0xff]
    %v649 = vld [vmem:[#allocation5 + $0x1138] sm:$0xff]
    %v650 = vld [vmem:[#allocation5 + $0x1140] sm:$0xff]
    %v651 = vld [vmem:[#allocation5 + $0x1148] sm:$0xff]
    %v652 = vld [vmem:[#allocation5 + $0x1150] sm:$0xff]
    %v653 = vld [vmem:[#allocation5 + $0x1158] sm:$0xff]
    %v654 = vld [vmem:[#allocation5 + $0x1160] sm:$0xff]
    %v655 = vld [vmem:[#allocation5 + $0x1168] sm:$0xff]
    %v656 = vld [vmem:[#allocation5 + $0x1170] sm:$0xff]
    %v657 = vld [vmem:[#allocation5 + $0x1178] sm:$0xff]
    %v658 = vld [vmem:[#allocation5 + $0x1180] sm:$0xff]
    %v659 = vld [vmem:[#allocation5 + $0x1188] sm:$0xff]
    %v660 = vld [vmem:[#allocation5 + $0x1190] sm:$0xff]
    %v661 = vld [vmem:[#allocation5 + $0x1198] sm:$0xff]
    %v662 = vld [vmem:[#allocation5 + $0x11a0] sm:$0xff]
    %v663 = vld [vmem:[#allocation5 + $0x11a8] sm:$0xff]
    %v664 = vld [vmem:[#allocation5 + $0x11b0] sm:$0xff]
    %v665 = vld [vmem:[#allocation5 + $0x11b8] sm:$0xff]
    %v666 = vld [vmem:[#allocation5 + $0x11c0] sm:$0xff]
    %v667 = vld [vmem:[#allocation5 + $0x11c8] sm:$0xff]
    %v668 = vld [vmem:[#allocation5 + $0x11d0] sm:$0xff]
    %v669 = vld [vmem:[#allocation5 + $0x11d8] sm:$0xff]
    %v670 = vld [vmem:[#allocation5 + $0x11e0] sm:$0xff]
    %v671 = vld [vmem:[#allocation5 + $0x11e8] sm:$0xff]
    %v672 = vld [vmem:[#allocation5 + $0x11f0] sm:$0xff]
    %v673 = vld [vmem:[#allocation5 + $0x11f8] sm:$0xff]
    %v674 = vld [vmem:[#allocation5 + $0x1200] sm:$0xff]
    %v675 = vld [vmem:[#allocation5 + $0x1208] sm:$0xff]
    %v676 = vld [vmem:[#allocation5 + $0x1210] sm:$0xff]
    %v677 = vld [vmem:[#allocation5 + $0x1218] sm:$0xff]
    %v678 = vld [vmem:[#allocation5 + $0x1220] sm:$0xff]
    %v679 = vld [vmem:[#allocation5 + $0x1228] sm:$0xff]
    %v680 = vld [vmem:[#allocation5 + $0x1230] sm:$0xff]
    %v681 = vld [vmem:[#allocation5 + $0x1238] sm:$0xff]
    %v682 = vld [vmem:[#allocation5 + $0x1240] sm:$0xff]
    %v683 = vld [vmem:[#allocation5 + $0x1248] sm:$0xff]
    %v684 = vld [vmem:[#allocation5 + $0x1250] sm:$0xff]
    %v685 = vld [vmem:[#allocation5 + $0x1258] sm:$0xff]
    %v686 = vld [vmem:[#allocation5 + $0x1260] sm:$0xff]
    %v687 = vld [vmem:[#allocation5 + $0x1268] sm:$0xff]
    %v688 = vld [vmem:[#allocation5 + $0x1270] sm:$0xff]
    %v689 = vld [vmem:[#allocation5 + $0x1278] sm:$0xff]
    %v690 = vld [vmem:[#allocation5 + $0x1280] sm:$0xff]
    %v691 = vld [vmem:[#allocation5 + $0x1288] sm:$0xff]
    %v692 = vld [vmem:[#allocation5 + $0x1290] sm:$0xff]
    %v693 = vld [vmem:[#allocation5 + $0x1298] sm:$0xff]
    %v694 = vld [vmem:[#allocation5 + $0x12a0] sm:$0xff]
    %v695 = vld [vmem:[#allocation5 + $0x12a8] sm:$0xff]
    %v696 = vld [vmem:[#allocation5 + $0x12b0] sm:$0xff]
    %v697 = vld [vmem:[#allocation5 + $0x12b8] sm:$0xff]
    %v698 = vld [vmem:[#allocation5 + $0x12c0] sm:$0xff]
    %v699 = vld [vmem:[#allocation5 + $0x12c8] sm:$0xff]
    %v700 = vld [vmem:[#allocation5 + $0x12d0] sm:$0xff]
    %v701 = vld [vmem:[#allocation5 + $0x12d8] sm:$0xff]
    %v702 = vld [vmem:[#allocation5 + $0x12e0] sm:$0xff]
    %v703 = vld [vmem:[#allocation5 + $0x12e8] sm:$0xff]
    %v704 = vld [vmem:[#allocation5 + $0x12f0] sm:$0xff]
    %v705 = vld [vmem:[#allocation5 + $0x12f8] sm:$0xff]
    %v706 = vld [vmem:[#allocation5 + $0x1300] sm:$0xff]
    %v707 = vld [vmem:[#allocation5 + $0x1308] sm:$0xff]
    %v708 = vld [vmem:[#allocation5 + $0x1310] sm:$0xff]
    %v709 = vld [vmem:[#allocation5 + $0x1318] sm:$0xff]
    %v710 = vld [vmem:[#allocation5 + $0x1320] sm:$0xff]
    %v711 = vld [vmem:[#allocation5 + $0x1328] sm:$0xff]
    %v712 = vld [vmem:[#allocation5 + $0x1330] sm:$0xff]
    %v713 = vld [vmem:[#allocation5 + $0x1338] sm:$0xff]
    %v714 = vld [vmem:[#allocation5 + $0x1340] sm:$0xff]
    %v715 = vld [vmem:[#allocation5 + $0x1348] sm:$0xff]
    %v716 = vld [vmem:[#allocation5 + $0x1350] sm:$0xff]
    %v717 = vld [vmem:[#allocation5 + $0x1358] sm:$0xff]
    %v718 = vld [vmem:[#allocation5 + $0x1360] sm:$0xff]
    %v719 = vld [vmem:[#allocation5 + $0x1368] sm:$0xff]
    %v720 = vld [vmem:[#allocation5 + $0x1370] sm:$0xff]
    %v721 = vld [vmem:[#allocation5 + $0x1378] sm:$0xff]
    %v722 = vld [vmem:[#allocation5 + $0x1380] sm:$0xff]
    %v723 = vld [vmem:[#allocation5 + $0x1388] sm:$0xff]
    %v724 = vld [vmem:[#allocation5 + $0x1390] sm:$0xff]
    %v725 = vld [vmem:[#allocation5 + $0x1398] sm:$0xff]
    %v726 = vld [vmem:[#allocation5 + $0x13a0] sm:$0xff]
    %v727 = vld [vmem:[#allocation5 + $0x13a8] sm:$0xff]
    %v728 = vld [vmem:[#allocation5 + $0x13b0] sm:$0xff]
    %v729 = vld [vmem:[#allocation5 + $0x13b8] sm:$0xff]
    %v730 = vld [vmem:[#allocation5 + $0x13c0] sm:$0xff]
    %v731 = vld [vmem:[#allocation5 + $0x13c8] sm:$0xff]
    %v732 = vld [vmem:[#allocation5 + $0x13d0] sm:$0xff]
    %v733 = vld [vmem:[#allocation5 + $0x13d8] sm:$0xff]
    %v734 = vld [vmem:[#allocation5 + $0x13e0] sm:$0xff]
    %v735 = vld [vmem:[#allocation5 + $0x13e8] sm:$0xff]
    %v736 = vld [vmem:[#allocation5 + $0x13f0] sm:$0xff]
    %v737 = vld [vmem:[#allocation5 + $0x13f8] sm:$0xff]
    %v738 = vld [vmem:[#allocation5 + $0x1400] sm:$0xff]
    %v739 = vld [vmem:[#allocation5 + $0x1408] sm:$0xff]
    %v740 = vld [vmem:[#allocation5 + $0x1410] sm:$0xff]
    %v741 = vld [vmem:[#allocation5 + $0x1418] sm:$0xff]
    %v742 = vld [vmem:[#allocation5 + $0x1420] sm:$0xff]
    %v743 = vld [vmem:[#allocation5 + $0x1428] sm:$0xff]
    %v744 = vld [vmem:[#allocation5 + $0x1430] sm:$0xff]
    %v745 = vld [vmem:[#allocation5 + $0x1438] sm:$0xff]
    %v746 = vld [vmem:[#allocation5 + $0x1440] sm:$0xff]
    %v747 = vld [vmem:[#allocation5 + $0x1448] sm:$0xff]
    %v748 = vld [vmem:[#allocation5 + $0x1450] sm:$0xff]
    %v749 = vld [vmem:[#allocation5 + $0x1458] sm:$0xff]
    %v750 = vld [vmem:[#allocation5 + $0x1460] sm:$0xff]
    %v751 = vld [vmem:[#allocation5 + $0x1468] sm:$0xff]
    %v752 = vld [vmem:[#allocation5 + $0x1470] sm:$0xff]
    %v753 = vld [vmem:[#allocation5 + $0x1478] sm:$0xff]
    %v754 = vld [vmem:[#allocation5 + $0x1480] sm:$0xff]
    %v755 = vld [vmem:[#allocation5 + $0x1488] sm:$0xff]
    %v756 = vld [vmem:[#allocation5 + $0x1490] sm:$0xff]
    %v757 = vld [vmem:[#allocation5 + $0x1498] sm:$0xff]
    %v758 = vld [vmem:[#allocation5 + $0x14a0] sm:$0xff]
    %v759 = vld [vmem:[#allocation5 + $0x14a8] sm:$0xff]
    %v760 = vld [vmem:[#allocation5 + $0x14b0] sm:$0xff]
    %v761 = vld [vmem:[#allocation5 + $0x14b8] sm:$0xff]
    %v762 = vld [vmem:[#allocation5 + $0x14c0] sm:$0xff]
    %v763 = vld [vmem:[#allocation5 + $0x14c8] sm:$0xff]
    %v764 = vld [vmem:[#allocation5 + $0x14d0] sm:$0xff]
    %v765 = vld [vmem:[#allocation5 + $0x14d8] sm:$0xff]
    %v766 = vld [vmem:[#allocation5 + $0x14e0] sm:$0xff]
    %v767 = vld [vmem:[#allocation5 + $0x14e8] sm:$0xff]
    %v768 = vld [vmem:[#allocation5 + $0x14f0] sm:$0xff]
    %v769 = vld [vmem:[#allocation5 + $0x14f8] sm:$0xff]
    %v770 = vld [vmem:[#allocation5 + $0x1500] sm:$0xff]
    %v771 = vld [vmem:[#allocation5 + $0x1508] sm:$0xff]
    %v772 = vld [vmem:[#allocation5 + $0x1510] sm:$0xff]
    %v773 = vld [vmem:[#allocation5 + $0x1518] sm:$0xff]
    %v774 = vld [vmem:[#allocation5 + $0x1520] sm:$0xff]
    %v775 = vld [vmem:[#allocation5 + $0x1528] sm:$0xff]
    %v776 = vld [vmem:[#allocation5 + $0x1530] sm:$0xff]
    %v777 = vld [vmem:[#allocation5 + $0x1538] sm:$0xff]
    %v778 = vld [vmem:[#allocation5 + $0x1540] sm:$0xff]
    %v779 = vld [vmem:[#allocation5 + $0x1548] sm:$0xff]
    %v780 = vld [vmem:[#allocation5 + $0x1550] sm:$0xff]
    %v781 = vld [vmem:[#allocation5 + $0x1558] sm:$0xff]
    %v782 = vld [vmem:[#allocation5 + $0x1560] sm:$0xff]
    %v783 = vld [vmem:[#allocation5 + $0x1568] sm:$0xff]
    %v784 = vld [vmem:[#allocation5 + $0x1570] sm:$0xff]
    %v785 = vld [vmem:[#allocation5 + $0x1578] sm:$0xff]
    %v786 = vld [vmem:[#allocation5 + $0x1580] sm:$0xff]
    %v787 = vld [vmem:[#allocation5 + $0x1588] sm:$0xff]
    %v788 = vld [vmem:[#allocation5 + $0x1590] sm:$0xff]
    %v789 = vld [vmem:[#allocation5 + $0x1598] sm:$0xff]
    %v790 = vld [vmem:[#allocation5 + $0x15a0] sm:$0xff]
    %v791 = vld [vmem:[#allocation5 + $0x15a8] sm:$0xff]
    %v792 = vld [vmem:[#allocation5 + $0x15b0] sm:$0xff]
    %v793 = vld [vmem:[#allocation5 + $0x15b8] sm:$0xff]
    %v794 = vld [vmem:[#allocation5 + $0x15c0] sm:$0xff]
    %v795 = vld [vmem:[#allocation5 + $0x15c8] sm:$0xff]
    %v796 = vld [vmem:[#allocation5 + $0x15d0] sm:$0xff]
    %v797 = vld [vmem:[#allocation5 + $0x15d8] sm:$0xff]
    %v798 = vld [vmem:[#allocation5 + $0x15e0] sm:$0xff]
    %v799 = vld [vmem:[#allocation5 + $0x15e8] sm:$0xff]
    %v800 = vld [vmem:[#allocation5 + $0x15f0] sm:$0xff]
    %v801 = vld [vmem:[#allocation5 + $0x15f8] sm:$0xff]
    %v802 = vld [vmem:[#allocation5 + $0x1600] sm:$0xff]
    %v803 = vld [vmem:[#allocation5 + $0x1608] sm:$0xff]
    %v804 = vld [vmem:[#allocation5 + $0x1610] sm:$0xff]
    %v805 = vld [vmem:[#allocation5 + $0x1618] sm:$0xff]
    %v806 = vld [vmem:[#allocation5 + $0x1620] sm:$0xff]
    %v807 = vld [vmem:[#allocation5 + $0x1628] sm:$0xff]
    %v808 = vld [vmem:[#allocation5 + $0x1630] sm:$0xff]
    %v809 = vld [vmem:[#allocation5 + $0x1638] sm:$0xff]
    %v810 = vld [vmem:[#allocation5 + $0x1640] sm:$0xff]
    %v811 = vld [vmem:[#allocation5 + $0x1648] sm:$0xff]
    %v812 = vld [vmem:[#allocation5 + $0x1650] sm:$0xff]
    %v813 = vld [vmem:[#allocation5 + $0x1658] sm:$0xff]
    %v814 = vld [vmem:[#allocation5 + $0x1660] sm:$0xff]
    %v815 = vld [vmem:[#allocation5 + $0x1668] sm:$0xff]
    %v816 = vld [vmem:[#allocation5 + $0x1670] sm:$0xff]
    %v817 = vld [vmem:[#allocation5 + $0x1678] sm:$0xff]
    %v818 = vld [vmem:[#allocation5 + $0x1680] sm:$0xff]
    %v819 = vld [vmem:[#allocation5 + $0x1688] sm:$0xff]
    %v820 = vld [vmem:[#allocation5 + $0x1690] sm:$0xff]
    %v821 = vld [vmem:[#allocation5 + $0x1698] sm:$0xff]
    %v822 = vld [vmem:[#allocation5 + $0x16a0] sm:$0xff]
    %v823 = vld [vmem:[#allocation5 + $0x16a8] sm:$0xff]
    %v824 = vld [vmem:[#allocation5 + $0x16b0] sm:$0xff]
    %v825 = vld [vmem:[#allocation5 + $0x16b8] sm:$0xff]
    %v826 = vld [vmem:[#allocation5 + $0x16c0] sm:$0xff]
    %v827 = vld [vmem:[#allocation5 + $0x16c8] sm:$0xff]
    %v828 = vld [vmem:[#allocation5 + $0x16d0] sm:$0xff]
    %v829 = vld [vmem:[#allocation5 + $0x16d8] sm:$0xff]
    %v830 = vld [vmem:[#allocation5 + $0x16e0] sm:$0xff]
    %v831 = vld [vmem:[#allocation5 + $0x16e8] sm:$0xff]
    %v832 = vld [vmem:[#allocation5 + $0x16f0] sm:$0xff]
    %v833 = vld [vmem:[#allocation5 + $0x16f8] sm:$0xff]
    %v834 = vld [vmem:[#allocation5 + $0x1700] sm:$0xff]
    %v835 = vld [vmem:[#allocation5 + $0x1708] sm:$0xff]
    %v836 = vld [vmem:[#allocation5 + $0x1710] sm:$0xff]
    %v837 = vld [vmem:[#allocation5 + $0x1718] sm:$0xff]
    %v838 = vld [vmem:[#allocation5 + $0x1720] sm:$0xff]
    %v839 = vld [vmem:[#allocation5 + $0x1728] sm:$0xff]
    %v840 = vld [vmem:[#allocation5 + $0x1730] sm:$0xff]
    %v841 = vld [vmem:[#allocation5 + $0x1738] sm:$0xff]
    %v842 = vld [vmem:[#allocation5 + $0x1740] sm:$0xff]
    %v843 = vld [vmem:[#allocation5 + $0x1748] sm:$0xff]
    %v844 = vld [vmem:[#allocation5 + $0x1750] sm:$0xff]
    %v845 = vld [vmem:[#allocation5 + $0x1758] sm:$0xff]
    %v846 = vld [vmem:[#allocation5 + $0x1760] sm:$0xff]
    %v847 = vld [vmem:[#allocation5 + $0x1768] sm:$0xff]
    %v848 = vld [vmem:[#allocation5 + $0x1770] sm:$0xff]
    %v849 = vld [vmem:[#allocation5 + $0x1778] sm:$0xff]
    %v850 = vld [vmem:[#allocation5 + $0x1780] sm:$0xff]
    %v851 = vld [vmem:[#allocation5 + $0x1788] sm:$0xff]
    %v852 = vld [vmem:[#allocation5 + $0x1790] sm:$0xff]
    %v853 = vld [vmem:[#allocation5 + $0x1798] sm:$0xff]
    %v854 = vld [vmem:[#allocation5 + $0x17a0] sm:$0xff]
    %v855 = vld [vmem:[#allocation5 + $0x17a8] sm:$0xff]
    %v856 = vld [vmem:[#allocation5 + $0x17b0] sm:$0xff]
    %v857 = vld [vmem:[#allocation5 + $0x17b8] sm:$0xff]
    %v858 = vld [vmem:[#allocation5 + $0x17c0] sm:$0xff]
    %v859 = vld [vmem:[#allocation5 + $0x17c8] sm:$0xff]
    %v860 = vld [vmem:[#allocation5 + $0x17d0] sm:$0xff]
    %v861 = vld [vmem:[#allocation5 + $0x17d8] sm:$0xff]
    %v862 = vld [vmem:[#allocation5 + $0x17e0] sm:$0xff]
    %v863 = vld [vmem:[#allocation5 + $0x17e8] sm:$0xff]
    %v864 = vld [vmem:[#allocation5 + $0x17f0] sm:$0xff]
    %v865 = vld [vmem:[#allocation5 + $0x17f8] sm:$0xff]
    %v878 = vunpack.c.l.b16 %v86
    %v879 = vunpack.c.h.b16 %v86
    %v880 = vunpack.c.l.b16 %v87
    %v881 = vunpack.c.h.b16 %v87
    %v882 = vunpack.c.l.b16 %v88
    %v883 = vunpack.c.h.b16 %v88
    %v884 = vunpack.c.l.b16 %v89
    %v885 = vunpack.c.h.b16 %v89
    %v886 = vunpack.c.l.b16 %v90
    %v887 = vunpack.c.h.b16 %v90
    %v888 = vunpack.c.l.b16 %v91
    %v889 = vunpack.c.h.b16 %v91
    %v890 = vunpack.c.l.b16 %v92
    %v891 = vunpack.c.h.b16 %v92
    %v892 = vunpack.c.l.b16 %v93
    %v893 = vunpack.c.h.b16 %v93
    %v894 = vunpack.c.l.b16 %v94
    %v895 = vunpack.c.h.b16 %v94
    %v896 = vunpack.c.l.b16 %v95
    %v897 = vunpack.c.h.b16 %v95
    %v898 = vunpack.c.l.b16 %v96
    %v899 = vunpack.c.h.b16 %v96
    %v900 = vunpack.c.l.b16 %v97
    %v901 = vunpack.c.h.b16 %v97
    %v902 = vpack.c.b16 %v890, %v878
    %v903 = vpack.c.b16 %v891, %v879
    %v904 = vpack.c.b16 %v892, %v880
    %v905 = vpack.c.b16 %v893, %v881
    %v906 = vpack.c.b16 %v894, %v882
    %v907 = vpack.c.b16 %v895, %v883
    %v908 = vpack.c.b16 %v896, %v884
    %v909 = vpack.c.b16 %v897, %v885
    %v910 = vpack.c.b16 %v898, %v886
    %v911 = vpack.c.b16 %v899, %v887
    %v912 = vpack.c.b16 %v900, %v888
    %v913 = vpack.c.b16 %v901, %v889
    %v1694 = vunpack.c.l.b16 %v98
    %v1695 = vunpack.c.h.b16 %v98
    %v1696 = vunpack.c.l.b16 %v99
    %v1697 = vunpack.c.h.b16 %v99
    %v1698 = vunpack.c.l.b16 %v100
    %v1699 = vunpack.c.h.b16 %v100
    %v1700 = vunpack.c.l.b16 %v101
    %v1701 = vunpack.c.h.b16 %v101
    %v1702 = vunpack.c.l.b16 %v102
    %v1703 = vunpack.c.h.b16 %v102
    %v1704 = vunpack.c.l.b16 %v103
    %v1705 = vunpack.c.h.b16 %v103
    %v1706 = vunpack.c.l.b16 %v104
    %v1707 = vunpack.c.h.b16 %v104
    %v1708 = vunpack.c.l.b16 %v105
    %v1709 = vunpack.c.h.b16 %v105
    %v1710 = vunpack.c.l.b16 %v106
    %v1711 = vunpack.c.h.b16 %v106
    %v1712 = vunpack.c.l.b16 %v107
    %v1713 = vunpack.c.h.b16 %v107
    %v1714 = vunpack.c.l.b16 %v108
    %v1715 = vunpack.c.h.b16 %v108
    %v1716 = vunpack.c.l.b16 %v109
    %v1717 = vunpack.c.h.b16 %v109
    %v1718 = vunpack.c.l.b16 %v110
    %v1719 = vunpack.c.h.b16 %v110
    %v1720 = vunpack.c.l.b16 %v111
    %v1721 = vunpack.c.h.b16 %v111
    %v1722 = vunpack.c.l.b16 %v112
    %v1723 = vunpack.c.h.b16 %v112
    %v1724 = vunpack.c.l.b16 %v113
    %v1725 = vunpack.c.h.b16 %v113
    %v1726 = vunpack.c.l.b16 %v114
    %v1727 = vunpack.c.h.b16 %v114
    %v1728 = vunpack.c.l.b16 %v115
    %v1729 = vunpack.c.h.b16 %v115
    %v1730 = vunpack.c.l.b16 %v116
    %v1731 = vunpack.c.h.b16 %v116
    %v1732 = vunpack.c.l.b16 %v117
    %v1733 = vunpack.c.h.b16 %v117
    %v1734 = vunpack.c.l.b16 %v118
    %v1735 = vunpack.c.h.b16 %v118
    %v1736 = vunpack.c.l.b16 %v119
    %v1737 = vunpack.c.h.b16 %v119
    %v1738 = vunpack.c.l.b16 %v120
    %v1739 = vunpack.c.h.b16 %v120
    %v1740 = vunpack.c.l.b16 %v121
    %v1741 = vunpack.c.h.b16 %v121
    %v1742 = vunpack.c.l.b16 %v122
    %v1743 = vunpack.c.h.b16 %v122
    %v1744 = vunpack.c.l.b16 %v123
    %v1745 = vunpack.c.h.b16 %v123
    %v1746 = vunpack.c.l.b16 %v124
    %v1747 = vunpack.c.h.b16 %v124
    %v1748 = vunpack.c.l.b16 %v125
    %v1749 = vunpack.c.h.b16 %v125
    %v1750 = vunpack.c.l.b16 %v126
    %v1751 = vunpack.c.h.b16 %v126
    %v1752 = vunpack.c.l.b16 %v127
    %v1753 = vunpack.c.h.b16 %v127
    %v1754 = vunpack.c.l.b16 %v128
    %v1755 = vunpack.c.h.b16 %v128
    %v1756 = vunpack.c.l.b16 %v129
    %v1757 = vunpack.c.h.b16 %v129
    %v1758 = vunpack.c.l.b16 %v130
    %v1759 = vunpack.c.h.b16 %v130
    %v1760 = vunpack.c.l.b16 %v131
    %v1761 = vunpack.c.h.b16 %v131
    %v1762 = vunpack.c.l.b16 %v132
    %v1763 = vunpack.c.h.b16 %v132
    %v1764 = vunpack.c.l.b16 %v133
    %v1765 = vunpack.c.h.b16 %v133
    %v1766 = vunpack.c.l.b16 %v134
    %v1767 = vunpack.c.h.b16 %v134
    %v1768 = vunpack.c.l.b16 %v135
    %v1769 = vunpack.c.h.b16 %v135
    %v1770 = vunpack.c.l.b16 %v136
    %v1771 = vunpack.c.h.b16 %v136
    %v1772 = vunpack.c.l.b16 %v137
    %v1773 = vunpack.c.h.b16 %v137
    %v1774 = vunpack.c.l.b16 %v138
    %v1775 = vunpack.c.h.b16 %v138
    %v1776 = vunpack.c.l.b16 %v139
    %v1777 = vunpack.c.h.b16 %v139
    %v1778 = vunpack.c.l.b16 %v140
    %v1779 = vunpack.c.h.b16 %v140
    %v1780 = vunpack.c.l.b16 %v141
    %v1781 = vunpack.c.h.b16 %v141
    %v1782 = vunpack.c.l.b16 %v142
    %v1783 = vunpack.c.h.b16 %v142
    %v1784 = vunpack.c.l.b16 %v143
    %v1785 = vunpack.c.h.b16 %v143
    %v1786 = vunpack.c.l.b16 %v144
    %v1787 = vunpack.c.h.b16 %v144
    %v1788 = vunpack.c.l.b16 %v145
    %v1789 = vunpack.c.h.b16 %v145
    %v1790 = vunpack.c.l.b16 %v146
    %v1791 = vunpack.c.h.b16 %v146
    %v1792 = vunpack.c.l.b16 %v147
    %v1793 = vunpack.c.h.b16 %v147
    %v1794 = vunpack.c.l.b16 %v148
    %v1795 = vunpack.c.h.b16 %v148
    %v1796 = vunpack.c.l.b16 %v149
    %v1797 = vunpack.c.h.b16 %v149
    %v1798 = vunpack.c.l.b16 %v150
    %v1799 = vunpack.c.h.b16 %v150
    %v1800 = vunpack.c.l.b16 %v151
    %v1801 = vunpack.c.h.b16 %v151
    %v1802 = vunpack.c.l.b16 %v152
    %v1803 = vunpack.c.h.b16 %v152
    %v1804 = vunpack.c.l.b16 %v153
    %v1805 = vunpack.c.h.b16 %v153
    %v1806 = vunpack.c.l.b16 %v154
    %v1807 = vunpack.c.h.b16 %v154
    %v1808 = vunpack.c.l.b16 %v155
    %v1809 = vunpack.c.h.b16 %v155
    %v1810 = vunpack.c.l.b16 %v156
    %v1811 = vunpack.c.h.b16 %v156
    %v1812 = vunpack.c.l.b16 %v157
    %v1813 = vunpack.c.h.b16 %v157
    %v1814 = vunpack.c.l.b16 %v158
    %v1815 = vunpack.c.h.b16 %v158
    %v1816 = vunpack.c.l.b16 %v159
    %v1817 = vunpack.c.h.b16 %v159
    %v1818 = vunpack.c.l.b16 %v160
    %v1819 = vunpack.c.h.b16 %v160
    %v1820 = vunpack.c.l.b16 %v161
    %v1821 = vunpack.c.h.b16 %v161
    %v1822 = vunpack.c.l.b16 %v162
    %v1823 = vunpack.c.h.b16 %v162
    %v1824 = vunpack.c.l.b16 %v163
    %v1825 = vunpack.c.h.b16 %v163
    %v1826 = vunpack.c.l.b16 %v164
    %v1827 = vunpack.c.h.b16 %v164
    %v1828 = vunpack.c.l.b16 %v165
    %v1829 = vunpack.c.h.b16 %v165
    %v1830 = vunpack.c.l.b16 %v166
    %v1831 = vunpack.c.h.b16 %v166
    %v1832 = vunpack.c.l.b16 %v167
    %v1833 = vunpack.c.h.b16 %v167
    %v1834 = vunpack.c.l.b16 %v168
    %v1835 = vunpack.c.h.b16 %v168
    %v1836 = vunpack.c.l.b16 %v169
    %v1837 = vunpack.c.h.b16 %v169
    %v1838 = vunpack.c.l.b16 %v170
    %v1839 = vunpack.c.h.b16 %v170
    %v1840 = vunpack.c.l.b16 %v171
    %v1841 = vunpack.c.h.b16 %v171
    %v1842 = vunpack.c.l.b16 %v172
    %v1843 = vunpack.c.h.b16 %v172
    %v1844 = vunpack.c.l.b16 %v173
    %v1845 = vunpack.c.h.b16 %v173
    %v1846 = vunpack.c.l.b16 %v174
    %v1847 = vunpack.c.h.b16 %v174
    %v1848 = vunpack.c.l.b16 %v175
    %v1849 = vunpack.c.h.b16 %v175
    %v1850 = vunpack.c.l.b16 %v176
    %v1851 = vunpack.c.h.b16 %v176
    %v1852 = vunpack.c.l.b16 %v177
    %v1853 = vunpack.c.h.b16 %v177
    %v1854 = vunpack.c.l.b16 %v178
    %v1855 = vunpack.c.h.b16 %v178
    %v1856 = vunpack.c.l.b16 %v179
    %v1857 = vunpack.c.h.b16 %v179
    %v1858 = vunpack.c.l.b16 %v180
    %v1859 = vunpack.c.h.b16 %v180
    %v1860 = vunpack.c.l.b16 %v181
    %v1861 = vunpack.c.h.b16 %v181
    %v1862 = vunpack.c.l.b16 %v182
    %v1863 = vunpack.c.h.b16 %v182
    %v1864 = vunpack.c.l.b16 %v183
    %v1865 = vunpack.c.h.b16 %v183
    %v1866 = vunpack.c.l.b16 %v184
    %v1867 = vunpack.c.h.b16 %v184
    %v1868 = vunpack.c.l.b16 %v185
    %v1869 = vunpack.c.h.b16 %v185
    %v1870 = vunpack.c.l.b16 %v186
    %v1871 = vunpack.c.h.b16 %v186
    %v1872 = vunpack.c.l.b16 %v187
    %v1873 = vunpack.c.h.b16 %v187
    %v1874 = vunpack.c.l.b16 %v188
    %v1875 = vunpack.c.h.b16 %v188
    %v1876 = vunpack.c.l.b16 %v189
    %v1877 = vunpack.c.h.b16 %v189
    %v1878 = vunpack.c.l.b16 %v190
    %v1879 = vunpack.c.h.b16 %v190
    %v1880 = vunpack.c.l.b16 %v191
    %v1881 = vunpack.c.h.b16 %v191
    %v1882 = vunpack.c.l.b16 %v192
    %v1883 = vunpack.c.h.b16 %v192
    %v1884 = vunpack.c.l.b16 %v193
    %v1885 = vunpack.c.h.b16 %v193
    %v1886 = vunpack.c.l.b16 %v194
    %v1887 = vunpack.c.h.b16 %v194
    %v1888 = vunpack.c.l.b16 %v195
    %v1889 = vunpack.c.h.b16 %v195
    %v1890 = vunpack.c.l.b16 %v196
    %v1891 = vunpack.c.h.b16 %v196
    %v1892 = vunpack.c.l.b16 %v197
    %v1893 = vunpack.c.h.b16 %v197
    %v1894 = vunpack.c.l.b16 %v198
    %v1895 = vunpack.c.h.b16 %v198
    %v1896 = vunpack.c.l.b16 %v199
    %v1897 = vunpack.c.h.b16 %v199
    %v1898 = vunpack.c.l.b16 %v200
    %v1899 = vunpack.c.h.b16 %v200
    %v1900 = vunpack.c.l.b16 %v201
    %v1901 = vunpack.c.h.b16 %v201
    %v1902 = vunpack.c.l.b16 %v202
    %v1903 = vunpack.c.h.b16 %v202
    %v1904 = vunpack.c.l.b16 %v203
    %v1905 = vunpack.c.h.b16 %v203
    %v1906 = vunpack.c.l.b16 %v204
    %v1907 = vunpack.c.h.b16 %v204
    %v1908 = vunpack.c.l.b16 %v205
    %v1909 = vunpack.c.h.b16 %v205
    %v1910 = vunpack.c.l.b16 %v206
    %v1911 = vunpack.c.h.b16 %v206
    %v1912 = vunpack.c.l.b16 %v207
    %v1913 = vunpack.c.h.b16 %v207
    %v1914 = vunpack.c.l.b16 %v208
    %v1915 = vunpack.c.h.b16 %v208
    %v1916 = vunpack.c.l.b16 %v209
    %v1917 = vunpack.c.h.b16 %v209
    %v1918 = vunpack.c.l.b16 %v210
    %v1919 = vunpack.c.h.b16 %v210
    %v1920 = vunpack.c.l.b16 %v211
    %v1921 = vunpack.c.h.b16 %v211
    %v1922 = vunpack.c.l.b16 %v212
    %v1923 = vunpack.c.h.b16 %v212
    %v1924 = vunpack.c.l.b16 %v213
    %v1925 = vunpack.c.h.b16 %v213
    %v1926 = vunpack.c.l.b16 %v214
    %v1927 = vunpack.c.h.b16 %v214
    %v1928 = vunpack.c.l.b16 %v215
    %v1929 = vunpack.c.h.b16 %v215
    %v1930 = vunpack.c.l.b16 %v216
    %v1931 = vunpack.c.h.b16 %v216
    %v1932 = vunpack.c.l.b16 %v217
    %v1933 = vunpack.c.h.b16 %v217
    %v1934 = vunpack.c.l.b16 %v218
    %v1935 = vunpack.c.h.b16 %v218
    %v1936 = vunpack.c.l.b16 %v219
    %v1937 = vunpack.c.h.b16 %v219
    %v1938 = vunpack.c.l.b16 %v220
    %v1939 = vunpack.c.h.b16 %v220
    %v1940 = vunpack.c.l.b16 %v221
    %v1941 = vunpack.c.h.b16 %v221
    %v1942 = vunpack.c.l.b16 %v222
    %v1943 = vunpack.c.h.b16 %v222
    %v1944 = vunpack.c.l.b16 %v223
    %v1945 = vunpack.c.h.b16 %v223
    %v1946 = vunpack.c.l.b16 %v224
    %v1947 = vunpack.c.h.b16 %v224
    %v1948 = vunpack.c.l.b16 %v225
    %v1949 = vunpack.c.h.b16 %v225
    %v1950 = vunpack.c.l.b16 %v226
    %v1951 = vunpack.c.h.b16 %v226
    %v1952 = vunpack.c.l.b16 %v227
    %v1953 = vunpack.c.h.b16 %v227
    %v1954 = vunpack.c.l.b16 %v228
    %v1955 = vunpack.c.h.b16 %v228
    %v1956 = vunpack.c.l.b16 %v229
    %v1957 = vunpack.c.h.b16 %v229
    %v1958 = vunpack.c.l.b16 %v230
    %v1959 = vunpack.c.h.b16 %v230
    %v1960 = vunpack.c.l.b16 %v231
    %v1961 = vunpack.c.h.b16 %v231
    %v1962 = vunpack.c.l.b16 %v232
    %v1963 = vunpack.c.h.b16 %v232
    %v1964 = vunpack.c.l.b16 %v233
    %v1965 = vunpack.c.h.b16 %v233
    %v1966 = vunpack.c.l.b16 %v234
    %v1967 = vunpack.c.h.b16 %v234
    %v1968 = vunpack.c.l.b16 %v235
    %v1969 = vunpack.c.h.b16 %v235
    %v1970 = vunpack.c.l.b16 %v236
    %v1971 = vunpack.c.h.b16 %v236
    %v1972 = vunpack.c.l.b16 %v237
    %v1973 = vunpack.c.h.b16 %v237
    %v1974 = vunpack.c.l.b16 %v238
    %v1975 = vunpack.c.h.b16 %v238
    %v1976 = vunpack.c.l.b16 %v239
    %v1977 = vunpack.c.h.b16 %v239
    %v1978 = vunpack.c.l.b16 %v240
    %v1979 = vunpack.c.h.b16 %v240
    %v1980 = vunpack.c.l.b16 %v241
    %v1981 = vunpack.c.h.b16 %v241
    %v1982 = vunpack.c.l.b16 %v242
    %v1983 = vunpack.c.h.b16 %v242
    %v1984 = vunpack.c.l.b16 %v243
    %v1985 = vunpack.c.h.b16 %v243
    %v1986 = vunpack.c.l.b16 %v244
    %v1987 = vunpack.c.h.b16 %v244
    %v1988 = vunpack.c.l.b16 %v245
    %v1989 = vunpack.c.h.b16 %v245
    %v1990 = vunpack.c.l.b16 %v246
    %v1991 = vunpack.c.h.b16 %v246
    %v1992 = vunpack.c.l.b16 %v247
    %v1993 = vunpack.c.h.b16 %v247
    %v1994 = vunpack.c.l.b16 %v248
    %v1995 = vunpack.c.h.b16 %v248
    %v1996 = vunpack.c.l.b16 %v249
    %v1997 = vunpack.c.h.b16 %v249
    %v1998 = vunpack.c.l.b16 %v250
    %v1999 = vunpack.c.h.b16 %v250
    %v2000 = vunpack.c.l.b16 %v251
    %v2001 = vunpack.c.h.b16 %v251
    %v2002 = vunpack.c.l.b16 %v252
    %v2003 = vunpack.c.h.b16 %v252
    %v2004 = vunpack.c.l.b16 %v253
    %v2005 = vunpack.c.h.b16 %v253
    %v2006 = vunpack.c.l.b16 %v254
    %v2007 = vunpack.c.h.b16 %v254
    %v2008 = vunpack.c.l.b16 %v255
    %v2009 = vunpack.c.h.b16 %v255
    %v2010 = vunpack.c.l.b16 %v256
    %v2011 = vunpack.c.h.b16 %v256
    %v2012 = vunpack.c.l.b16 %v257
    %v2013 = vunpack.c.h.b16 %v257
    %v2014 = vunpack.c.l.b16 %v258
    %v2015 = vunpack.c.h.b16 %v258
    %v2016 = vunpack.c.l.b16 %v259
    %v2017 = vunpack.c.h.b16 %v259
    %v2018 = vunpack.c.l.b16 %v260
    %v2019 = vunpack.c.h.b16 %v260
    %v2020 = vunpack.c.l.b16 %v261
    %v2021 = vunpack.c.h.b16 %v261
    %v2022 = vunpack.c.l.b16 %v262
    %v2023 = vunpack.c.h.b16 %v262
    %v2024 = vunpack.c.l.b16 %v263
    %v2025 = vunpack.c.h.b16 %v263
    %v2026 = vunpack.c.l.b16 %v264
    %v2027 = vunpack.c.h.b16 %v264
    %v2028 = vunpack.c.l.b16 %v265
    %v2029 = vunpack.c.h.b16 %v265
    %v2030 = vunpack.c.l.b16 %v266
    %v2031 = vunpack.c.h.b16 %v266
    %v2032 = vunpack.c.l.b16 %v267
    %v2033 = vunpack.c.h.b16 %v267
    %v2034 = vunpack.c.l.b16 %v268
    %v2035 = vunpack.c.h.b16 %v268
    %v2036 = vunpack.c.l.b16 %v269
    %v2037 = vunpack.c.h.b16 %v269
    %v2038 = vunpack.c.l.b16 %v270
    %v2039 = vunpack.c.h.b16 %v270
    %v2040 = vunpack.c.l.b16 %v271
    %v2041 = vunpack.c.h.b16 %v271
    %v2042 = vunpack.c.l.b16 %v272
    %v2043 = vunpack.c.h.b16 %v272
    %v2044 = vunpack.c.l.b16 %v273
    %v2045 = vunpack.c.h.b16 %v273
    %v2046 = vunpack.c.l.b16 %v274
    %v2047 = vunpack.c.h.b16 %v274
    %v2048 = vunpack.c.l.b16 %v275
    %v2049 = vunpack.c.h.b16 %v275
    %v2050 = vunpack.c.l.b16 %v276
    %v2051 = vunpack.c.h.b16 %v276
    %v2052 = vunpack.c.l.b16 %v277
    %v2053 = vunpack.c.h.b16 %v277
    %v2054 = vunpack.c.l.b16 %v278
    %v2055 = vunpack.c.h.b16 %v278
    %v2056 = vunpack.c.l.b16 %v279
    %v2057 = vunpack.c.h.b16 %v279
    %v2058 = vunpack.c.l.b16 %v280
    %v2059 = vunpack.c.h.b16 %v280
    %v2060 = vunpack.c.l.b16 %v281
    %v2061 = vunpack.c.h.b16 %v281
    %v2062 = vunpack.c.l.b16 %v282
    %v2063 = vunpack.c.h.b16 %v282
    %v2064 = vunpack.c.l.b16 %v283
    %v2065 = vunpack.c.h.b16 %v283
    %v2066 = vunpack.c.l.b16 %v284
    %v2067 = vunpack.c.h.b16 %v284
    %v2068 = vunpack.c.l.b16 %v285
    %v2069 = vunpack.c.h.b16 %v285
    %v2070 = vunpack.c.l.b16 %v286
    %v2071 = vunpack.c.h.b16 %v286
    %v2072 = vunpack.c.l.b16 %v287
    %v2073 = vunpack.c.h.b16 %v287
    %v2074 = vunpack.c.l.b16 %v288
    %v2075 = vunpack.c.h.b16 %v288
    %v2076 = vunpack.c.l.b16 %v289
    %v2077 = vunpack.c.h.b16 %v289
    %v2078 = vunpack.c.l.b16 %v290
    %v2079 = vunpack.c.h.b16 %v290
    %v2080 = vunpack.c.l.b16 %v291
    %v2081 = vunpack.c.h.b16 %v291
    %v2082 = vunpack.c.l.b16 %v292
    %v2083 = vunpack.c.h.b16 %v292
    %v2084 = vunpack.c.l.b16 %v293
    %v2085 = vunpack.c.h.b16 %v293
    %v2086 = vunpack.c.l.b16 %v294
    %v2087 = vunpack.c.h.b16 %v294
    %v2088 = vunpack.c.l.b16 %v295
    %v2089 = vunpack.c.h.b16 %v295
    %v2090 = vunpack.c.l.b16 %v296
    %v2091 = vunpack.c.h.b16 %v296
    %v2092 = vunpack.c.l.b16 %v297
    %v2093 = vunpack.c.h.b16 %v297
    %v2094 = vunpack.c.l.b16 %v298
    %v2095 = vunpack.c.h.b16 %v298
    %v2096 = vunpack.c.l.b16 %v299
    %v2097 = vunpack.c.h.b16 %v299
    %v2098 = vunpack.c.l.b16 %v300
    %v2099 = vunpack.c.h.b16 %v300
    %v2100 = vunpack.c.l.b16 %v301
    %v2101 = vunpack.c.h.b16 %v301
    %v2102 = vunpack.c.l.b16 %v302
    %v2103 = vunpack.c.h.b16 %v302
    %v2104 = vunpack.c.l.b16 %v303
    %v2105 = vunpack.c.h.b16 %v303
    %v2106 = vunpack.c.l.b16 %v304
    %v2107 = vunpack.c.h.b16 %v304
    %v2108 = vunpack.c.l.b16 %v305
    %v2109 = vunpack.c.h.b16 %v305
    %v2110 = vunpack.c.l.b16 %v306
    %v2111 = vunpack.c.h.b16 %v306
    %v2112 = vunpack.c.l.b16 %v307
    %v2113 = vunpack.c.h.b16 %v307
    %v2114 = vunpack.c.l.b16 %v308
    %v2115 = vunpack.c.h.b16 %v308
    %v2116 = vunpack.c.l.b16 %v309
    %v2117 = vunpack.c.h.b16 %v309
    %v2118 = vunpack.c.l.b16 %v310
    %v2119 = vunpack.c.h.b16 %v310
    %v2120 = vunpack.c.l.b16 %v311
    %v2121 = vunpack.c.h.b16 %v311
    %v2122 = vunpack.c.l.b16 %v312
    %v2123 = vunpack.c.h.b16 %v312
    %v2124 = vunpack.c.l.b16 %v313
    %v2125 = vunpack.c.h.b16 %v313
    %v2126 = vunpack.c.l.b16 %v314
    %v2127 = vunpack.c.h.b16 %v314
    %v2128 = vunpack.c.l.b16 %v315
    %v2129 = vunpack.c.h.b16 %v315
    %v2130 = vunpack.c.l.b16 %v316
    %v2131 = vunpack.c.h.b16 %v316
    %v2132 = vunpack.c.l.b16 %v317
    %v2133 = vunpack.c.h.b16 %v317
    %v2134 = vunpack.c.l.b16 %v318
    %v2135 = vunpack.c.h.b16 %v318
    %v2136 = vunpack.c.l.b16 %v319
    %v2137 = vunpack.c.h.b16 %v319
    %v2138 = vunpack.c.l.b16 %v320
    %v2139 = vunpack.c.h.b16 %v320
    %v2140 = vunpack.c.l.b16 %v321
    %v2141 = vunpack.c.h.b16 %v321
    %v2142 = vunpack.c.l.b16 %v322
    %v2143 = vunpack.c.h.b16 %v322
    %v2144 = vunpack.c.l.b16 %v323
    %v2145 = vunpack.c.h.b16 %v323
    %v2146 = vunpack.c.l.b16 %v324
    %v2147 = vunpack.c.h.b16 %v324
    %v2148 = vunpack.c.l.b16 %v325
    %v2149 = vunpack.c.h.b16 %v325
    %v2150 = vunpack.c.l.b16 %v326
    %v2151 = vunpack.c.h.b16 %v326
    %v2152 = vunpack.c.l.b16 %v327
    %v2153 = vunpack.c.h.b16 %v327
    %v2154 = vunpack.c.l.b16 %v328
    %v2155 = vunpack.c.h.b16 %v328
    %v2156 = vunpack.c.l.b16 %v329
    %v2157 = vunpack.c.h.b16 %v329
    %v2158 = vunpack.c.l.b16 %v330
    %v2159 = vunpack.c.h.b16 %v330
    %v2160 = vunpack.c.l.b16 %v331
    %v2161 = vunpack.c.h.b16 %v331
    %v2162 = vunpack.c.l.b16 %v332
    %v2163 = vunpack.c.h.b16 %v332
    %v2164 = vunpack.c.l.b16 %v333
    %v2165 = vunpack.c.h.b16 %v333
    %v2166 = vunpack.c.l.b16 %v334
    %v2167 = vunpack.c.h.b16 %v334
    %v2168 = vunpack.c.l.b16 %v335
    %v2169 = vunpack.c.h.b16 %v335
    %v2170 = vunpack.c.l.b16 %v336
    %v2171 = vunpack.c.h.b16 %v336
    %v2172 = vunpack.c.l.b16 %v337
    %v2173 = vunpack.c.h.b16 %v337
    %v2174 = vunpack.c.l.b16 %v338
    %v2175 = vunpack.c.h.b16 %v338
    %v2176 = vunpack.c.l.b16 %v339
    %v2177 = vunpack.c.h.b16 %v339
    %v2178 = vunpack.c.l.b16 %v340
    %v2179 = vunpack.c.h.b16 %v340
    %v2180 = vunpack.c.l.b16 %v341
    %v2181 = vunpack.c.h.b16 %v341
    %v2182 = vunpack.c.l.b16 %v342
    %v2183 = vunpack.c.h.b16 %v342
    %v2184 = vunpack.c.l.b16 %v343
    %v2185 = vunpack.c.h.b16 %v343
    %v2186 = vunpack.c.l.b16 %v344
    %v2187 = vunpack.c.h.b16 %v344
    %v2188 = vunpack.c.l.b16 %v345
    %v2189 = vunpack.c.h.b16 %v345
    %v2190 = vunpack.c.l.b16 %v346
    %v2191 = vunpack.c.h.b16 %v346
    %v2192 = vunpack.c.l.b16 %v347
    %v2193 = vunpack.c.h.b16 %v347
    %v2194 = vunpack.c.l.b16 %v348
    %v2195 = vunpack.c.h.b16 %v348
    %v2196 = vunpack.c.l.b16 %v349
    %v2197 = vunpack.c.h.b16 %v349
    %v2198 = vunpack.c.l.b16 %v350
    %v2199 = vunpack.c.h.b16 %v350
    %v2200 = vunpack.c.l.b16 %v351
    %v2201 = vunpack.c.h.b16 %v351
    %v2202 = vunpack.c.l.b16 %v352
    %v2203 = vunpack.c.h.b16 %v352
    %v2204 = vunpack.c.l.b16 %v353
    %v2205 = vunpack.c.h.b16 %v353
    %v2206 = vunpack.c.l.b16 %v354
    %v2207 = vunpack.c.h.b16 %v354
    %v2208 = vunpack.c.l.b16 %v355
    %v2209 = vunpack.c.h.b16 %v355
    %v2210 = vunpack.c.l.b16 %v356
    %v2211 = vunpack.c.h.b16 %v356
    %v2212 = vunpack.c.l.b16 %v357
    %v2213 = vunpack.c.h.b16 %v357
    %v2214 = vunpack.c.l.b16 %v358
    %v2215 = vunpack.c.h.b16 %v358
    %v2216 = vunpack.c.l.b16 %v359
    %v2217 = vunpack.c.h.b16 %v359
    %v2218 = vunpack.c.l.b16 %v360
    %v2219 = vunpack.c.h.b16 %v360
    %v2220 = vunpack.c.l.b16 %v361
    %v2221 = vunpack.c.h.b16 %v361
    %v2222 = vunpack.c.l.b16 %v362
    %v2223 = vunpack.c.h.b16 %v362
    %v2224 = vunpack.c.l.b16 %v363
    %v2225 = vunpack.c.h.b16 %v363
    %v2226 = vunpack.c.l.b16 %v364
    %v2227 = vunpack.c.h.b16 %v364
    %v2228 = vunpack.c.l.b16 %v365
    %v2229 = vunpack.c.h.b16 %v365
    %v2230 = vunpack.c.l.b16 %v366
    %v2231 = vunpack.c.h.b16 %v366
    %v2232 = vunpack.c.l.b16 %v367
    %v2233 = vunpack.c.h.b16 %v367
    %v2234 = vunpack.c.l.b16 %v368
    %v2235 = vunpack.c.h.b16 %v368
    %v2236 = vunpack.c.l.b16 %v369
    %v2237 = vunpack.c.h.b16 %v369
    %v2238 = vunpack.c.l.b16 %v370
    %v2239 = vunpack.c.h.b16 %v370
    %v2240 = vunpack.c.l.b16 %v371
    %v2241 = vunpack.c.h.b16 %v371
    %v2242 = vunpack.c.l.b16 %v372
    %v2243 = vunpack.c.h.b16 %v372
    %v2244 = vunpack.c.l.b16 %v373
    %v2245 = vunpack.c.h.b16 %v373
    %v2246 = vunpack.c.l.b16 %v374
    %v2247 = vunpack.c.h.b16 %v374
    %v2248 = vunpack.c.l.b16 %v375
    %v2249 = vunpack.c.h.b16 %v375
    %v2250 = vunpack.c.l.b16 %v376
    %v2251 = vunpack.c.h.b16 %v376
    %v2252 = vunpack.c.l.b16 %v377
    %v2253 = vunpack.c.h.b16 %v377
    %v2254 = vunpack.c.l.b16 %v378
    %v2255 = vunpack.c.h.b16 %v378
    %v2256 = vunpack.c.l.b16 %v379
    %v2257 = vunpack.c.h.b16 %v379
    %v2258 = vunpack.c.l.b16 %v380
    %v2259 = vunpack.c.h.b16 %v380
    %v2260 = vunpack.c.l.b16 %v381
    %v2261 = vunpack.c.h.b16 %v381
    %v2262 = vunpack.c.l.b16 %v382
    %v2263 = vunpack.c.h.b16 %v382
    %v2264 = vunpack.c.l.b16 %v383
    %v2265 = vunpack.c.h.b16 %v383
    %v2266 = vunpack.c.l.b16 %v384
    %v2267 = vunpack.c.h.b16 %v384
    %v2268 = vunpack.c.l.b16 %v385
    %v2269 = vunpack.c.h.b16 %v385
    %v2270 = vunpack.c.l.b16 %v386
    %v2271 = vunpack.c.h.b16 %v386
    %v2272 = vunpack.c.l.b16 %v387
    %v2273 = vunpack.c.h.b16 %v387
    %v2274 = vunpack.c.l.b16 %v388
    %v2275 = vunpack.c.h.b16 %v388
    %v2276 = vunpack.c.l.b16 %v389
    %v2277 = vunpack.c.h.b16 %v389
    %v2278 = vunpack.c.l.b16 %v390
    %v2279 = vunpack.c.h.b16 %v390
    %v2280 = vunpack.c.l.b16 %v391
    %v2281 = vunpack.c.h.b16 %v391
    %v2282 = vunpack.c.l.b16 %v392
    %v2283 = vunpack.c.h.b16 %v392
    %v2284 = vunpack.c.l.b16 %v393
    %v2285 = vunpack.c.h.b16 %v393
    %v2286 = vunpack.c.l.b16 %v394
    %v2287 = vunpack.c.h.b16 %v394
    %v2288 = vunpack.c.l.b16 %v395
    %v2289 = vunpack.c.h.b16 %v395
    %v2290 = vunpack.c.l.b16 %v396
    %v2291 = vunpack.c.h.b16 %v396
    %v2292 = vunpack.c.l.b16 %v397
    %v2293 = vunpack.c.h.b16 %v397
    %v2294 = vunpack.c.l.b16 %v398
    %v2295 = vunpack.c.h.b16 %v398
    %v2296 = vunpack.c.l.b16 %v399
    %v2297 = vunpack.c.h.b16 %v399
    %v2298 = vunpack.c.l.b16 %v400
    %v2299 = vunpack.c.h.b16 %v400
    %v2300 = vunpack.c.l.b16 %v401
    %v2301 = vunpack.c.h.b16 %v401
    %v2302 = vunpack.c.l.b16 %v402
    %v2303 = vunpack.c.h.b16 %v402
    %v2304 = vunpack.c.l.b16 %v403
    %v2305 = vunpack.c.h.b16 %v403
    %v2306 = vunpack.c.l.b16 %v404
    %v2307 = vunpack.c.h.b16 %v404
    %v2308 = vunpack.c.l.b16 %v405
    %v2309 = vunpack.c.h.b16 %v405
    %v2310 = vunpack.c.l.b16 %v406
    %v2311 = vunpack.c.h.b16 %v406
    %v2312 = vunpack.c.l.b16 %v407
    %v2313 = vunpack.c.h.b16 %v407
    %v2314 = vunpack.c.l.b16 %v408
    %v2315 = vunpack.c.h.b16 %v408
    %v2316 = vunpack.c.l.b16 %v409
    %v2317 = vunpack.c.h.b16 %v409
    %v2318 = vunpack.c.l.b16 %v410
    %v2319 = vunpack.c.h.b16 %v410
    %v2320 = vunpack.c.l.b16 %v411
    %v2321 = vunpack.c.h.b16 %v411
    %v2322 = vunpack.c.l.b16 %v412
    %v2323 = vunpack.c.h.b16 %v412
    %v2324 = vunpack.c.l.b16 %v413
    %v2325 = vunpack.c.h.b16 %v413
    %v2326 = vunpack.c.l.b16 %v414
    %v2327 = vunpack.c.h.b16 %v414
    %v2328 = vunpack.c.l.b16 %v415
    %v2329 = vunpack.c.h.b16 %v415
    %v2330 = vunpack.c.l.b16 %v416
    %v2331 = vunpack.c.h.b16 %v416
    %v2332 = vunpack.c.l.b16 %v417
    %v2333 = vunpack.c.h.b16 %v417
    %v2334 = vunpack.c.l.b16 %v418
    %v2335 = vunpack.c.h.b16 %v418
    %v2336 = vunpack.c.l.b16 %v419
    %v2337 = vunpack.c.h.b16 %v419
    %v2338 = vunpack.c.l.b16 %v420
    %v2339 = vunpack.c.h.b16 %v420
    %v2340 = vunpack.c.l.b16 %v421
    %v2341 = vunpack.c.h.b16 %v421
    %v2342 = vunpack.c.l.b16 %v422
    %v2343 = vunpack.c.h.b16 %v422
    %v2344 = vunpack.c.l.b16 %v423
    %v2345 = vunpack.c.h.b16 %v423
    %v2346 = vunpack.c.l.b16 %v424
    %v2347 = vunpack.c.h.b16 %v424
    %v2348 = vunpack.c.l.b16 %v425
    %v2349 = vunpack.c.h.b16 %v425
    %v2350 = vunpack.c.l.b16 %v426
    %v2351 = vunpack.c.h.b16 %v426
    %v2352 = vunpack.c.l.b16 %v427
    %v2353 = vunpack.c.h.b16 %v427
    %v2354 = vunpack.c.l.b16 %v428
    %v2355 = vunpack.c.h.b16 %v428
    %v2356 = vunpack.c.l.b16 %v429
    %v2357 = vunpack.c.h.b16 %v429
    %v2358 = vunpack.c.l.b16 %v430
    %v2359 = vunpack.c.h.b16 %v430
    %v2360 = vunpack.c.l.b16 %v431
    %v2361 = vunpack.c.h.b16 %v431
    %v2362 = vunpack.c.l.b16 %v432
    %v2363 = vunpack.c.h.b16 %v432
    %v2364 = vunpack.c.l.b16 %v433
    %v2365 = vunpack.c.h.b16 %v433
    %v2366 = vunpack.c.l.b16 %v434
    %v2367 = vunpack.c.h.b16 %v434
    %v2368 = vunpack.c.l.b16 %v435
    %v2369 = vunpack.c.h.b16 %v435
    %v2370 = vunpack.c.l.b16 %v436
    %v2371 = vunpack.c.h.b16 %v436
    %v2372 = vunpack.c.l.b16 %v437
    %v2373 = vunpack.c.h.b16 %v437
    %v2374 = vunpack.c.l.b16 %v438
    %v2375 = vunpack.c.h.b16 %v438
    %v2376 = vunpack.c.l.b16 %v439
    %v2377 = vunpack.c.h.b16 %v439
    %v2378 = vunpack.c.l.b16 %v440
    %v2379 = vunpack.c.h.b16 %v440
    %v2380 = vunpack.c.l.b16 %v441
    %v2381 = vunpack.c.h.b16 %v441
    %v2382 = vunpack.c.l.b16 %v442
    %v2383 = vunpack.c.h.b16 %v442
    %v2384 = vunpack.c.l.b16 %v443
    %v2385 = vunpack.c.h.b16 %v443
    %v2386 = vunpack.c.l.b16 %v444
    %v2387 = vunpack.c.h.b16 %v444
    %v2388 = vunpack.c.l.b16 %v445
    %v2389 = vunpack.c.h.b16 %v445
    %v2390 = vunpack.c.l.b16 %v446
    %v2391 = vunpack.c.h.b16 %v446
    %v2392 = vunpack.c.l.b16 %v447
    %v2393 = vunpack.c.h.b16 %v447
    %v2394 = vunpack.c.l.b16 %v448
    %v2395 = vunpack.c.h.b16 %v448
    %v2396 = vunpack.c.l.b16 %v449
    %v2397 = vunpack.c.h.b16 %v449
    %v2398 = vunpack.c.l.b16 %v450
    %v2399 = vunpack.c.h.b16 %v450
    %v2400 = vunpack.c.l.b16 %v451
    %v2401 = vunpack.c.h.b16 %v451
    %v2402 = vunpack.c.l.b16 %v452
    %v2403 = vunpack.c.h.b16 %v452
    %v2404 = vunpack.c.l.b16 %v453
    %v2405 = vunpack.c.h.b16 %v453
    %v2406 = vunpack.c.l.b16 %v454
    %v2407 = vunpack.c.h.b16 %v454
    %v2408 = vunpack.c.l.b16 %v455
    %v2409 = vunpack.c.h.b16 %v455
    %v2410 = vunpack.c.l.b16 %v456
    %v2411 = vunpack.c.h.b16 %v456
    %v2412 = vunpack.c.l.b16 %v457
    %v2413 = vunpack.c.h.b16 %v457
    %v2414 = vunpack.c.l.b16 %v458
    %v2415 = vunpack.c.h.b16 %v458
    %v2416 = vunpack.c.l.b16 %v459
    %v2417 = vunpack.c.h.b16 %v459
    %v2418 = vunpack.c.l.b16 %v460
    %v2419 = vunpack.c.h.b16 %v460
    %v2420 = vunpack.c.l.b16 %v461
    %v2421 = vunpack.c.h.b16 %v461
    %v2422 = vunpack.c.l.b16 %v462
    %v2423 = vunpack.c.h.b16 %v462
    %v2424 = vunpack.c.l.b16 %v463
    %v2425 = vunpack.c.h.b16 %v463
    %v2426 = vunpack.c.l.b16 %v464
    %v2427 = vunpack.c.h.b16 %v464
    %v2428 = vunpack.c.l.b16 %v465
    %v2429 = vunpack.c.h.b16 %v465
    %v2430 = vunpack.c.l.b16 %v466
    %v2431 = vunpack.c.h.b16 %v466
    %v2432 = vunpack.c.l.b16 %v467
    %v2433 = vunpack.c.h.b16 %v467
    %v2434 = vunpack.c.l.b16 %v468
    %v2435 = vunpack.c.h.b16 %v468
    %v2436 = vunpack.c.l.b16 %v469
    %v2437 = vunpack.c.h.b16 %v469
    %v2438 = vunpack.c.l.b16 %v470
    %v2439 = vunpack.c.h.b16 %v470
    %v2440 = vunpack.c.l.b16 %v471
    %v2441 = vunpack.c.h.b16 %v471
    %v2442 = vunpack.c.l.b16 %v472
    %v2443 = vunpack.c.h.b16 %v472
    %v2444 = vunpack.c.l.b16 %v473
    %v2445 = vunpack.c.h.b16 %v473
    %v2446 = vunpack.c.l.b16 %v474
    %v2447 = vunpack.c.h.b16 %v474
    %v2448 = vunpack.c.l.b16 %v475
    %v2449 = vunpack.c.h.b16 %v475
    %v2450 = vunpack.c.l.b16 %v476
    %v2451 = vunpack.c.h.b16 %v476
    %v2452 = vunpack.c.l.b16 %v477
    %v2453 = vunpack.c.h.b16 %v477
    %v2454 = vunpack.c.l.b16 %v478
    %v2455 = vunpack.c.h.b16 %v478
    %v2456 = vunpack.c.l.b16 %v479
    %v2457 = vunpack.c.h.b16 %v479
    %v2458 = vunpack.c.l.b16 %v480
    %v2459 = vunpack.c.h.b16 %v480
    %v2460 = vunpack.c.l.b16 %v481
    %v2461 = vunpack.c.h.b16 %v481
    %v2462 = vunpack.c.l.b16 %v482
    %v2463 = vunpack.c.h.b16 %v482
    %v2464 = vunpack.c.l.b16 %v483
    %v2465 = vunpack.c.h.b16 %v483
    %v2466 = vunpack.c.l.b16 %v484
    %v2467 = vunpack.c.h.b16 %v484
    %v2468 = vunpack.c.l.b16 %v485
    %v2469 = vunpack.c.h.b16 %v485
    %v2470 = vunpack.c.l.b16 %v486
    %v2471 = vunpack.c.h.b16 %v486
    %v2472 = vunpack.c.l.b16 %v487
    %v2473 = vunpack.c.h.b16 %v487
    %v2474 = vunpack.c.l.b16 %v488
    %v2475 = vunpack.c.h.b16 %v488
    %v2476 = vunpack.c.l.b16 %v489
    %v2477 = vunpack.c.h.b16 %v489
    %v2478 = vunpack.c.l.b16 %v490
    %v2479 = vunpack.c.h.b16 %v490
    %v2480 = vunpack.c.l.b16 %v491
    %v2481 = vunpack.c.h.b16 %v491
    %v2482 = vunpack.c.l.b16 %v492
    %v2483 = vunpack.c.h.b16 %v492
    %v2484 = vunpack.c.l.b16 %v493
    %v2485 = vunpack.c.h.b16 %v493
    %v2486 = vunpack.c.l.b16 %v494
    %v2487 = vunpack.c.h.b16 %v494
    %v2488 = vunpack.c.l.b16 %v495
    %v2489 = vunpack.c.h.b16 %v495
    %v2490 = vunpack.c.l.b16 %v496
    %v2491 = vunpack.c.h.b16 %v496
    %v2492 = vunpack.c.l.b16 %v497
    %v2493 = vunpack.c.h.b16 %v497
    %v2494 = vunpack.c.l.b16 %v498
    %v2495 = vunpack.c.h.b16 %v498
    %v2496 = vunpack.c.l.b16 %v499
    %v2497 = vunpack.c.h.b16 %v499
    %v2498 = vunpack.c.l.b16 %v500
    %v2499 = vunpack.c.h.b16 %v500
    %v2500 = vunpack.c.l.b16 %v501
    %v2501 = vunpack.c.h.b16 %v501
    %v2502 = vunpack.c.l.b16 %v502
    %v2503 = vunpack.c.h.b16 %v502
    %v2504 = vunpack.c.l.b16 %v503
    %v2505 = vunpack.c.h.b16 %v503
    %v2506 = vunpack.c.l.b16 %v504
    %v2507 = vunpack.c.h.b16 %v504
    %v2508 = vunpack.c.l.b16 %v505
    %v2509 = vunpack.c.h.b16 %v505
    %v2510 = vunpack.c.l.b16 %v506
    %v2511 = vunpack.c.h.b16 %v506
    %v2512 = vunpack.c.l.b16 %v507
    %v2513 = vunpack.c.h.b16 %v507
    %v2514 = vunpack.c.l.b16 %v508
    %v2515 = vunpack.c.h.b16 %v508
    %v2516 = vunpack.c.l.b16 %v509
    %v2517 = vunpack.c.h.b16 %v509
    %v2518 = vunpack.c.l.b16 %v510
    %v2519 = vunpack.c.h.b16 %v510
    %v2520 = vunpack.c.l.b16 %v511
    %v2521 = vunpack.c.h.b16 %v511
    %v2522 = vunpack.c.l.b16 %v512
    %v2523 = vunpack.c.h.b16 %v512
    %v2524 = vunpack.c.l.b16 %v513
    %v2525 = vunpack.c.h.b16 %v513
    %v2526 = vunpack.c.l.b16 %v514
    %v2527 = vunpack.c.h.b16 %v514
    %v2528 = vunpack.c.l.b16 %v515
    %v2529 = vunpack.c.h.b16 %v515
    %v2530 = vunpack.c.l.b16 %v516
    %v2531 = vunpack.c.h.b16 %v516
    %v2532 = vunpack.c.l.b16 %v517
    %v2533 = vunpack.c.h.b16 %v517
    %v2534 = vunpack.c.l.b16 %v518
    %v2535 = vunpack.c.h.b16 %v518
    %v2536 = vunpack.c.l.b16 %v519
    %v2537 = vunpack.c.h.b16 %v519
    %v2538 = vunpack.c.l.b16 %v520
    %v2539 = vunpack.c.h.b16 %v520
    %v2540 = vunpack.c.l.b16 %v521
    %v2541 = vunpack.c.h.b16 %v521
    %v2542 = vunpack.c.l.b16 %v522
    %v2543 = vunpack.c.h.b16 %v522
    %v2544 = vunpack.c.l.b16 %v523
    %v2545 = vunpack.c.h.b16 %v523
    %v2546 = vunpack.c.l.b16 %v524
    %v2547 = vunpack.c.h.b16 %v524
    %v2548 = vunpack.c.l.b16 %v525
    %v2549 = vunpack.c.h.b16 %v525
    %v2550 = vunpack.c.l.b16 %v526
    %v2551 = vunpack.c.h.b16 %v526
    %v2552 = vunpack.c.l.b16 %v527
    %v2553 = vunpack.c.h.b16 %v527
    %v2554 = vunpack.c.l.b16 %v528
    %v2555 = vunpack.c.h.b16 %v528
    %v2556 = vunpack.c.l.b16 %v529
    %v2557 = vunpack.c.h.b16 %v529
    %v2558 = vunpack.c.l.b16 %v530
    %v2559 = vunpack.c.h.b16 %v530
    %v2560 = vunpack.c.l.b16 %v531
    %v2561 = vunpack.c.h.b16 %v531
    %v2562 = vunpack.c.l.b16 %v532
    %v2563 = vunpack.c.h.b16 %v532
    %v2564 = vunpack.c.l.b16 %v533
    %v2565 = vunpack.c.h.b16 %v533
    %v2566 = vunpack.c.l.b16 %v534
    %v2567 = vunpack.c.h.b16 %v534
    %v2568 = vunpack.c.l.b16 %v535
    %v2569 = vunpack.c.h.b16 %v535
    %v2570 = vunpack.c.l.b16 %v536
    %v2571 = vunpack.c.h.b16 %v536
    %v2572 = vunpack.c.l.b16 %v537
    %v2573 = vunpack.c.h.b16 %v537
    %v2574 = vunpack.c.l.b16 %v538
    %v2575 = vunpack.c.h.b16 %v538
    %v2576 = vunpack.c.l.b16 %v539
    %v2577 = vunpack.c.h.b16 %v539
    %v2578 = vunpack.c.l.b16 %v540
    %v2579 = vunpack.c.h.b16 %v540
    %v2580 = vunpack.c.l.b16 %v541
    %v2581 = vunpack.c.h.b16 %v541
    %v2582 = vunpack.c.l.b16 %v542
    %v2583 = vunpack.c.h.b16 %v542
    %v2584 = vunpack.c.l.b16 %v543
    %v2585 = vunpack.c.h.b16 %v543
    %v2586 = vunpack.c.l.b16 %v544
    %v2587 = vunpack.c.h.b16 %v544
    %v2588 = vunpack.c.l.b16 %v545
    %v2589 = vunpack.c.h.b16 %v545
    %v2590 = vunpack.c.l.b16 %v546
    %v2591 = vunpack.c.h.b16 %v546
    %v2592 = vunpack.c.l.b16 %v547
    %v2593 = vunpack.c.h.b16 %v547
    %v2594 = vunpack.c.l.b16 %v548
    %v2595 = vunpack.c.h.b16 %v548
    %v2596 = vunpack.c.l.b16 %v549
    %v2597 = vunpack.c.h.b16 %v549
    %v2598 = vunpack.c.l.b16 %v550
    %v2599 = vunpack.c.h.b16 %v550
    %v2600 = vunpack.c.l.b16 %v551
    %v2601 = vunpack.c.h.b16 %v551
    %v2602 = vunpack.c.l.b16 %v552
    %v2603 = vunpack.c.h.b16 %v552
    %v2604 = vunpack.c.l.b16 %v553
    %v2605 = vunpack.c.h.b16 %v553
    %v2606 = vunpack.c.l.b16 %v554
    %v2607 = vunpack.c.h.b16 %v554
    %v2608 = vunpack.c.l.b16 %v555
    %v2609 = vunpack.c.h.b16 %v555
    %v2610 = vunpack.c.l.b16 %v556
    %v2611 = vunpack.c.h.b16 %v556
    %v2612 = vunpack.c.l.b16 %v557
    %v2613 = vunpack.c.h.b16 %v557
    %v2614 = vunpack.c.l.b16 %v558
    %v2615 = vunpack.c.h.b16 %v558
    %v2616 = vunpack.c.l.b16 %v559
    %v2617 = vunpack.c.h.b16 %v559
    %v2618 = vunpack.c.l.b16 %v560
    %v2619 = vunpack.c.h.b16 %v560
    %v2620 = vunpack.c.l.b16 %v561
    %v2621 = vunpack.c.h.b16 %v561
    %v2622 = vunpack.c.l.b16 %v562
    %v2623 = vunpack.c.h.b16 %v562
    %v2624 = vunpack.c.l.b16 %v563
    %v2625 = vunpack.c.h.b16 %v563
    %v2626 = vunpack.c.l.b16 %v564
    %v2627 = vunpack.c.h.b16 %v564
    %v2628 = vunpack.c.l.b16 %v565
    %v2629 = vunpack.c.h.b16 %v565
    %v2630 = vunpack.c.l.b16 %v566
    %v2631 = vunpack.c.h.b16 %v566
    %v2632 = vunpack.c.l.b16 %v567
    %v2633 = vunpack.c.h.b16 %v567
    %v2634 = vunpack.c.l.b16 %v568
    %v2635 = vunpack.c.h.b16 %v568
    %v2636 = vunpack.c.l.b16 %v569
    %v2637 = vunpack.c.h.b16 %v569
    %v2638 = vunpack.c.l.b16 %v570
    %v2639 = vunpack.c.h.b16 %v570
    %v2640 = vunpack.c.l.b16 %v571
    %v2641 = vunpack.c.h.b16 %v571
    %v2642 = vunpack.c.l.b16 %v572
    %v2643 = vunpack.c.h.b16 %v572
    %v2644 = vunpack.c.l.b16 %v573
    %v2645 = vunpack.c.h.b16 %v573
    %v2646 = vunpack.c.l.b16 %v574
    %v2647 = vunpack.c.h.b16 %v574
    %v2648 = vunpack.c.l.b16 %v575
    %v2649 = vunpack.c.h.b16 %v575
    %v2650 = vunpack.c.l.b16 %v576
    %v2651 = vunpack.c.h.b16 %v576
    %v2652 = vunpack.c.l.b16 %v577
    %v2653 = vunpack.c.h.b16 %v577
    %v2654 = vunpack.c.l.b16 %v578
    %v2655 = vunpack.c.h.b16 %v578
    %v2656 = vunpack.c.l.b16 %v579
    %v2657 = vunpack.c.h.b16 %v579
    %v2658 = vunpack.c.l.b16 %v580
    %v2659 = vunpack.c.h.b16 %v580
    %v2660 = vunpack.c.l.b16 %v581
    %v2661 = vunpack.c.h.b16 %v581
    %v2662 = vunpack.c.l.b16 %v582
    %v2663 = vunpack.c.h.b16 %v582
    %v2664 = vunpack.c.l.b16 %v583
    %v2665 = vunpack.c.h.b16 %v583
    %v2666 = vunpack.c.l.b16 %v584
    %v2667 = vunpack.c.h.b16 %v584
    %v2668 = vunpack.c.l.b16 %v585
    %v2669 = vunpack.c.h.b16 %v585
    %v2670 = vunpack.c.l.b16 %v586
    %v2671 = vunpack.c.h.b16 %v586
    %v2672 = vunpack.c.l.b16 %v587
    %v2673 = vunpack.c.h.b16 %v587
    %v2674 = vunpack.c.l.b16 %v588
    %v2675 = vunpack.c.h.b16 %v588
    %v2676 = vunpack.c.l.b16 %v589
    %v2677 = vunpack.c.h.b16 %v589
    %v2678 = vunpack.c.l.b16 %v590
    %v2679 = vunpack.c.h.b16 %v590
    %v2680 = vunpack.c.l.b16 %v591
    %v2681 = vunpack.c.h.b16 %v591
    %v2682 = vunpack.c.l.b16 %v592
    %v2683 = vunpack.c.h.b16 %v592
    %v2684 = vunpack.c.l.b16 %v593
    %v2685 = vunpack.c.h.b16 %v593
    %v2686 = vunpack.c.l.b16 %v594
    %v2687 = vunpack.c.h.b16 %v594
    %v2688 = vunpack.c.l.b16 %v595
    %v2689 = vunpack.c.h.b16 %v595
    %v2690 = vunpack.c.l.b16 %v596
    %v2691 = vunpack.c.h.b16 %v596
    %v2692 = vunpack.c.l.b16 %v597
    %v2693 = vunpack.c.h.b16 %v597
    %v2694 = vunpack.c.l.b16 %v598
    %v2695 = vunpack.c.h.b16 %v598
    %v2696 = vunpack.c.l.b16 %v599
    %v2697 = vunpack.c.h.b16 %v599
    %v2698 = vunpack.c.l.b16 %v600
    %v2699 = vunpack.c.h.b16 %v600
    %v2700 = vunpack.c.l.b16 %v601
    %v2701 = vunpack.c.h.b16 %v601
    %v2702 = vunpack.c.l.b16 %v602
    %v2703 = vunpack.c.h.b16 %v602
    %v2704 = vunpack.c.l.b16 %v603
    %v2705 = vunpack.c.h.b16 %v603
    %v2706 = vunpack.c.l.b16 %v604
    %v2707 = vunpack.c.h.b16 %v604
    %v2708 = vunpack.c.l.b16 %v605
    %v2709 = vunpack.c.h.b16 %v605
    %v2710 = vunpack.c.l.b16 %v606
    %v2711 = vunpack.c.h.b16 %v606
    %v2712 = vunpack.c.l.b16 %v607
    %v2713 = vunpack.c.h.b16 %v607
    %v2714 = vunpack.c.l.b16 %v608
    %v2715 = vunpack.c.h.b16 %v608
    %v2716 = vunpack.c.l.b16 %v609
    %v2717 = vunpack.c.h.b16 %v609
    %v2718 = vunpack.c.l.b16 %v610
    %v2719 = vunpack.c.h.b16 %v610
    %v2720 = vunpack.c.l.b16 %v611
    %v2721 = vunpack.c.h.b16 %v611
    %v2722 = vunpack.c.l.b16 %v612
    %v2723 = vunpack.c.h.b16 %v612
    %v2724 = vunpack.c.l.b16 %v613
    %v2725 = vunpack.c.h.b16 %v613
    %v2726 = vunpack.c.l.b16 %v614
    %v2727 = vunpack.c.h.b16 %v614
    %v2728 = vunpack.c.l.b16 %v615
    %v2729 = vunpack.c.h.b16 %v615
    %v2730 = vunpack.c.l.b16 %v616
    %v2731 = vunpack.c.h.b16 %v616
    %v2732 = vunpack.c.l.b16 %v617
    %v2733 = vunpack.c.h.b16 %v617
    %v2734 = vunpack.c.l.b16 %v618
    %v2735 = vunpack.c.h.b16 %v618
    %v2736 = vunpack.c.l.b16 %v619
    %v2737 = vunpack.c.h.b16 %v619
    %v2738 = vunpack.c.l.b16 %v620
    %v2739 = vunpack.c.h.b16 %v620
    %v2740 = vunpack.c.l.b16 %v621
    %v2741 = vunpack.c.h.b16 %v621
    %v2742 = vunpack.c.l.b16 %v622
    %v2743 = vunpack.c.h.b16 %v622
    %v2744 = vunpack.c.l.b16 %v623
    %v2745 = vunpack.c.h.b16 %v623
    %v2746 = vunpack.c.l.b16 %v624
    %v2747 = vunpack.c.h.b16 %v624
    %v2748 = vunpack.c.l.b16 %v625
    %v2749 = vunpack.c.h.b16 %v625
    %v2750 = vunpack.c.l.b16 %v626
    %v2751 = vunpack.c.h.b16 %v626
    %v2752 = vunpack.c.l.b16 %v627
    %v2753 = vunpack.c.h.b16 %v627
    %v2754 = vunpack.c.l.b16 %v628
    %v2755 = vunpack.c.h.b16 %v628
    %v2756 = vunpack.c.l.b16 %v629
    %v2757 = vunpack.c.h.b16 %v629
    %v2758 = vunpack.c.l.b16 %v630
    %v2759 = vunpack.c.h.b16 %v630
    %v2760 = vunpack.c.l.b16 %v631
    %v2761 = vunpack.c.h.b16 %v631
    %v2762 = vunpack.c.l.b16 %v632
    %v2763 = vunpack.c.h.b16 %v632
    %v2764 = vunpack.c.l.b16 %v633
    %v2765 = vunpack.c.h.b16 %v633
    %v2766 = vunpack.c.l.b16 %v634
    %v2767 = vunpack.c.h.b16 %v634
    %v2768 = vunpack.c.l.b16 %v635
    %v2769 = vunpack.c.h.b16 %v635
    %v2770 = vunpack.c.l.b16 %v636
    %v2771 = vunpack.c.h.b16 %v636
    %v2772 = vunpack.c.l.b16 %v637
    %v2773 = vunpack.c.h.b16 %v637
    %v2774 = vunpack.c.l.b16 %v638
    %v2775 = vunpack.c.h.b16 %v638
    %v2776 = vunpack.c.l.b16 %v639
    %v2777 = vunpack.c.h.b16 %v639
    %v2778 = vunpack.c.l.b16 %v640
    %v2779 = vunpack.c.h.b16 %v640
    %v2780 = vunpack.c.l.b16 %v641
    %v2781 = vunpack.c.h.b16 %v641
    %v2782 = vunpack.c.l.b16 %v642
    %v2783 = vunpack.c.h.b16 %v642
    %v2784 = vunpack.c.l.b16 %v643
    %v2785 = vunpack.c.h.b16 %v643
    %v2786 = vunpack.c.l.b16 %v644
    %v2787 = vunpack.c.h.b16 %v644
    %v2788 = vunpack.c.l.b16 %v645
    %v2789 = vunpack.c.h.b16 %v645
    %v2790 = vunpack.c.l.b16 %v646
    %v2791 = vunpack.c.h.b16 %v646
    %v2792 = vunpack.c.l.b16 %v647
    %v2793 = vunpack.c.h.b16 %v647
    %v2794 = vunpack.c.l.b16 %v648
    %v2795 = vunpack.c.h.b16 %v648
    %v2796 = vunpack.c.l.b16 %v649
    %v2797 = vunpack.c.h.b16 %v649
    %v2798 = vunpack.c.l.b16 %v650
    %v2799 = vunpack.c.h.b16 %v650
    %v2800 = vunpack.c.l.b16 %v651
    %v2801 = vunpack.c.h.b16 %v651
    %v2802 = vunpack.c.l.b16 %v652
    %v2803 = vunpack.c.h.b16 %v652
    %v2804 = vunpack.c.l.b16 %v653
    %v2805 = vunpack.c.h.b16 %v653
    %v2806 = vunpack.c.l.b16 %v654
    %v2807 = vunpack.c.h.b16 %v654
    %v2808 = vunpack.c.l.b16 %v655
    %v2809 = vunpack.c.h.b16 %v655
    %v2810 = vunpack.c.l.b16 %v656
    %v2811 = vunpack.c.h.b16 %v656
    %v2812 = vunpack.c.l.b16 %v657
    %v2813 = vunpack.c.h.b16 %v657
    %v2814 = vunpack.c.l.b16 %v658
    %v2815 = vunpack.c.h.b16 %v658
    %v2816 = vunpack.c.l.b16 %v659
    %v2817 = vunpack.c.h.b16 %v659
    %v2818 = vunpack.c.l.b16 %v660
    %v2819 = vunpack.c.h.b16 %v660
    %v2820 = vunpack.c.l.b16 %v661
    %v2821 = vunpack.c.h.b16 %v661
    %v2822 = vunpack.c.l.b16 %v662
    %v2823 = vunpack.c.h.b16 %v662
    %v2824 = vunpack.c.l.b16 %v663
    %v2825 = vunpack.c.h.b16 %v663
    %v2826 = vunpack.c.l.b16 %v664
    %v2827 = vunpack.c.h.b16 %v664
    %v2828 = vunpack.c.l.b16 %v665
    %v2829 = vunpack.c.h.b16 %v665
    %v2830 = vunpack.c.l.b16 %v666
    %v2831 = vunpack.c.h.b16 %v666
    %v2832 = vunpack.c.l.b16 %v667
    %v2833 = vunpack.c.h.b16 %v667
    %v2834 = vunpack.c.l.b16 %v668
    %v2835 = vunpack.c.h.b16 %v668
    %v2836 = vunpack.c.l.b16 %v669
    %v2837 = vunpack.c.h.b16 %v669
    %v2838 = vunpack.c.l.b16 %v670
    %v2839 = vunpack.c.h.b16 %v670
    %v2840 = vunpack.c.l.b16 %v671
    %v2841 = vunpack.c.h.b16 %v671
    %v2842 = vunpack.c.l.b16 %v672
    %v2843 = vunpack.c.h.b16 %v672
    %v2844 = vunpack.c.l.b16 %v673
    %v2845 = vunpack.c.h.b16 %v673
    %v2846 = vunpack.c.l.b16 %v674
    %v2847 = vunpack.c.h.b16 %v674
    %v2848 = vunpack.c.l.b16 %v675
    %v2849 = vunpack.c.h.b16 %v675
    %v2850 = vunpack.c.l.b16 %v676
    %v2851 = vunpack.c.h.b16 %v676
    %v2852 = vunpack.c.l.b16 %v677
    %v2853 = vunpack.c.h.b16 %v677
    %v2854 = vunpack.c.l.b16 %v678
    %v2855 = vunpack.c.h.b16 %v678
    %v2856 = vunpack.c.l.b16 %v679
    %v2857 = vunpack.c.h.b16 %v679
    %v2858 = vunpack.c.l.b16 %v680
    %v2859 = vunpack.c.h.b16 %v680
    %v2860 = vunpack.c.l.b16 %v681
    %v2861 = vunpack.c.h.b16 %v681
    %v2862 = vunpack.c.l.b16 %v682
    %v2863 = vunpack.c.h.b16 %v682
    %v2864 = vunpack.c.l.b16 %v683
    %v2865 = vunpack.c.h.b16 %v683
    %v2866 = vunpack.c.l.b16 %v684
    %v2867 = vunpack.c.h.b16 %v684
    %v2868 = vunpack.c.l.b16 %v685
    %v2869 = vunpack.c.h.b16 %v685
    %v2870 = vunpack.c.l.b16 %v686
    %v2871 = vunpack.c.h.b16 %v686
    %v2872 = vunpack.c.l.b16 %v687
    %v2873 = vunpack.c.h.b16 %v687
    %v2874 = vunpack.c.l.b16 %v688
    %v2875 = vunpack.c.h.b16 %v688
    %v2876 = vunpack.c.l.b16 %v689
    %v2877 = vunpack.c.h.b16 %v689
    %v2878 = vunpack.c.l.b16 %v690
    %v2879 = vunpack.c.h.b16 %v690
    %v2880 = vunpack.c.l.b16 %v691
    %v2881 = vunpack.c.h.b16 %v691
    %v2882 = vunpack.c.l.b16 %v692
    %v2883 = vunpack.c.h.b16 %v692
    %v2884 = vunpack.c.l.b16 %v693
    %v2885 = vunpack.c.h.b16 %v693
    %v2886 = vunpack.c.l.b16 %v694
    %v2887 = vunpack.c.h.b16 %v694
    %v2888 = vunpack.c.l.b16 %v695
    %v2889 = vunpack.c.h.b16 %v695
    %v2890 = vunpack.c.l.b16 %v696
    %v2891 = vunpack.c.h.b16 %v696
    %v2892 = vunpack.c.l.b16 %v697
    %v2893 = vunpack.c.h.b16 %v697
    %v2894 = vunpack.c.l.b16 %v698
    %v2895 = vunpack.c.h.b16 %v698
    %v2896 = vunpack.c.l.b16 %v699
    %v2897 = vunpack.c.h.b16 %v699
    %v2898 = vunpack.c.l.b16 %v700
    %v2899 = vunpack.c.h.b16 %v700
    %v2900 = vunpack.c.l.b16 %v701
    %v2901 = vunpack.c.h.b16 %v701
    %v2902 = vunpack.c.l.b16 %v702
    %v2903 = vunpack.c.h.b16 %v702
    %v2904 = vunpack.c.l.b16 %v703
    %v2905 = vunpack.c.h.b16 %v703
    %v2906 = vunpack.c.l.b16 %v704
    %v2907 = vunpack.c.h.b16 %v704
    %v2908 = vunpack.c.l.b16 %v705
    %v2909 = vunpack.c.h.b16 %v705
    %v2910 = vunpack.c.l.b16 %v706
    %v2911 = vunpack.c.h.b16 %v706
    %v2912 = vunpack.c.l.b16 %v707
    %v2913 = vunpack.c.h.b16 %v707
    %v2914 = vunpack.c.l.b16 %v708
    %v2915 = vunpack.c.h.b16 %v708
    %v2916 = vunpack.c.l.b16 %v709
    %v2917 = vunpack.c.h.b16 %v709
    %v2918 = vunpack.c.l.b16 %v710
    %v2919 = vunpack.c.h.b16 %v710
    %v2920 = vunpack.c.l.b16 %v711
    %v2921 = vunpack.c.h.b16 %v711
    %v2922 = vunpack.c.l.b16 %v712
    %v2923 = vunpack.c.h.b16 %v712
    %v2924 = vunpack.c.l.b16 %v713
    %v2925 = vunpack.c.h.b16 %v713
    %v2926 = vunpack.c.l.b16 %v714
    %v2927 = vunpack.c.h.b16 %v714
    %v2928 = vunpack.c.l.b16 %v715
    %v2929 = vunpack.c.h.b16 %v715
    %v2930 = vunpack.c.l.b16 %v716
    %v2931 = vunpack.c.h.b16 %v716
    %v2932 = vunpack.c.l.b16 %v717
    %v2933 = vunpack.c.h.b16 %v717
    %v2934 = vunpack.c.l.b16 %v718
    %v2935 = vunpack.c.h.b16 %v718
    %v2936 = vunpack.c.l.b16 %v719
    %v2937 = vunpack.c.h.b16 %v719
    %v2938 = vunpack.c.l.b16 %v720
    %v2939 = vunpack.c.h.b16 %v720
    %v2940 = vunpack.c.l.b16 %v721
    %v2941 = vunpack.c.h.b16 %v721
    %v2942 = vunpack.c.l.b16 %v722
    %v2943 = vunpack.c.h.b16 %v722
    %v2944 = vunpack.c.l.b16 %v723
    %v2945 = vunpack.c.h.b16 %v723
    %v2946 = vunpack.c.l.b16 %v724
    %v2947 = vunpack.c.h.b16 %v724
    %v2948 = vunpack.c.l.b16 %v725
    %v2949 = vunpack.c.h.b16 %v725
    %v2950 = vunpack.c.l.b16 %v726
    %v2951 = vunpack.c.h.b16 %v726
    %v2952 = vunpack.c.l.b16 %v727
    %v2953 = vunpack.c.h.b16 %v727
    %v2954 = vunpack.c.l.b16 %v728
    %v2955 = vunpack.c.h.b16 %v728
    %v2956 = vunpack.c.l.b16 %v729
    %v2957 = vunpack.c.h.b16 %v729
    %v2958 = vunpack.c.l.b16 %v730
    %v2959 = vunpack.c.h.b16 %v730
    %v2960 = vunpack.c.l.b16 %v731
    %v2961 = vunpack.c.h.b16 %v731
    %v2962 = vunpack.c.l.b16 %v732
    %v2963 = vunpack.c.h.b16 %v732
    %v2964 = vunpack.c.l.b16 %v733
    %v2965 = vunpack.c.h.b16 %v733
    %v2966 = vunpack.c.l.b16 %v734
    %v2967 = vunpack.c.h.b16 %v734
    %v2968 = vunpack.c.l.b16 %v735
    %v2969 = vunpack.c.h.b16 %v735
    %v2970 = vunpack.c.l.b16 %v736
    %v2971 = vunpack.c.h.b16 %v736
    %v2972 = vunpack.c.l.b16 %v737
    %v2973 = vunpack.c.h.b16 %v737
    %v2974 = vunpack.c.l.b16 %v738
    %v2975 = vunpack.c.h.b16 %v738
    %v2976 = vunpack.c.l.b16 %v739
    %v2977 = vunpack.c.h.b16 %v739
    %v2978 = vunpack.c.l.b16 %v740
    %v2979 = vunpack.c.h.b16 %v740
    %v2980 = vunpack.c.l.b16 %v741
    %v2981 = vunpack.c.h.b16 %v741
    %v2982 = vunpack.c.l.b16 %v742
    %v2983 = vunpack.c.h.b16 %v742
    %v2984 = vunpack.c.l.b16 %v743
    %v2985 = vunpack.c.h.b16 %v743
    %v2986 = vunpack.c.l.b16 %v744
    %v2987 = vunpack.c.h.b16 %v744
    %v2988 = vunpack.c.l.b16 %v745
    %v2989 = vunpack.c.h.b16 %v745
    %v2990 = vunpack.c.l.b16 %v746
    %v2991 = vunpack.c.h.b16 %v746
    %v2992 = vunpack.c.l.b16 %v747
    %v2993 = vunpack.c.h.b16 %v747
    %v2994 = vunpack.c.l.b16 %v748
    %v2995 = vunpack.c.h.b16 %v748
    %v2996 = vunpack.c.l.b16 %v749
    %v2997 = vunpack.c.h.b16 %v749
    %v2998 = vunpack.c.l.b16 %v750
    %v2999 = vunpack.c.h.b16 %v750
    %v3000 = vunpack.c.l.b16 %v751
    %v3001 = vunpack.c.h.b16 %v751
    %v3002 = vunpack.c.l.b16 %v752
    %v3003 = vunpack.c.h.b16 %v752
    %v3004 = vunpack.c.l.b16 %v753
    %v3005 = vunpack.c.h.b16 %v753
    %v3006 = vunpack.c.l.b16 %v754
    %v3007 = vunpack.c.h.b16 %v754
    %v3008 = vunpack.c.l.b16 %v755
    %v3009 = vunpack.c.h.b16 %v755
    %v3010 = vunpack.c.l.b16 %v756
    %v3011 = vunpack.c.h.b16 %v756
    %v3012 = vunpack.c.l.b16 %v757
    %v3013 = vunpack.c.h.b16 %v757
    %v3014 = vunpack.c.l.b16 %v758
    %v3015 = vunpack.c.h.b16 %v758
    %v3016 = vunpack.c.l.b16 %v759
    %v3017 = vunpack.c.h.b16 %v759
    %v3018 = vunpack.c.l.b16 %v760
    %v3019 = vunpack.c.h.b16 %v760
    %v3020 = vunpack.c.l.b16 %v761
    %v3021 = vunpack.c.h.b16 %v761
    %v3022 = vunpack.c.l.b16 %v762
    %v3023 = vunpack.c.h.b16 %v762
    %v3024 = vunpack.c.l.b16 %v763
    %v3025 = vunpack.c.h.b16 %v763
    %v3026 = vunpack.c.l.b16 %v764
    %v3027 = vunpack.c.h.b16 %v764
    %v3028 = vunpack.c.l.b16 %v765
    %v3029 = vunpack.c.h.b16 %v765
    %v3030 = vunpack.c.l.b16 %v766
    %v3031 = vunpack.c.h.b16 %v766
    %v3032 = vunpack.c.l.b16 %v767
    %v3033 = vunpack.c.h.b16 %v767
    %v3034 = vunpack.c.l.b16 %v768
    %v3035 = vunpack.c.h.b16 %v768
    %v3036 = vunpack.c.l.b16 %v769
    %v3037 = vunpack.c.h.b16 %v769
    %v3038 = vunpack.c.l.b16 %v770
    %v3039 = vunpack.c.h.b16 %v770
    %v3040 = vunpack.c.l.b16 %v771
    %v3041 = vunpack.c.h.b16 %v771
    %v3042 = vunpack.c.l.b16 %v772
    %v3043 = vunpack.c.h.b16 %v772
    %v3044 = vunpack.c.l.b16 %v773
    %v3045 = vunpack.c.h.b16 %v773
    %v3046 = vunpack.c.l.b16 %v774
    %v3047 = vunpack.c.h.b16 %v774
    %v3048 = vunpack.c.l.b16 %v775
    %v3049 = vunpack.c.h.b16 %v775
    %v3050 = vunpack.c.l.b16 %v776
    %v3051 = vunpack.c.h.b16 %v776
    %v3052 = vunpack.c.l.b16 %v777
    %v3053 = vunpack.c.h.b16 %v777
    %v3054 = vunpack.c.l.b16 %v778
    %v3055 = vunpack.c.h.b16 %v778
    %v3056 = vunpack.c.l.b16 %v779
    %v3057 = vunpack.c.h.b16 %v779
    %v3058 = vunpack.c.l.b16 %v780
    %v3059 = vunpack.c.h.b16 %v780
    %v3060 = vunpack.c.l.b16 %v781
    %v3061 = vunpack.c.h.b16 %v781
    %v3062 = vunpack.c.l.b16 %v782
    %v3063 = vunpack.c.h.b16 %v782
    %v3064 = vunpack.c.l.b16 %v783
    %v3065 = vunpack.c.h.b16 %v783
    %v3066 = vunpack.c.l.b16 %v784
    %v3067 = vunpack.c.h.b16 %v784
    %v3068 = vunpack.c.l.b16 %v785
    %v3069 = vunpack.c.h.b16 %v785
    %v3070 = vunpack.c.l.b16 %v786
    %v3071 = vunpack.c.h.b16 %v786
    %v3072 = vunpack.c.l.b16 %v787
    %v3073 = vunpack.c.h.b16 %v787
    %v3074 = vunpack.c.l.b16 %v788
    %v3075 = vunpack.c.h.b16 %v788
    %v3076 = vunpack.c.l.b16 %v789
    %v3077 = vunpack.c.h.b16 %v789
    %v3078 = vunpack.c.l.b16 %v790
    %v3079 = vunpack.c.h.b16 %v790
    %v3080 = vunpack.c.l.b16 %v791
    %v3081 = vunpack.c.h.b16 %v791
    %v3082 = vunpack.c.l.b16 %v792
    %v3083 = vunpack.c.h.b16 %v792
    %v3084 = vunpack.c.l.b16 %v793
    %v3085 = vunpack.c.h.b16 %v793
    %v3086 = vunpack.c.l.b16 %v794
    %v3087 = vunpack.c.h.b16 %v794
    %v3088 = vunpack.c.l.b16 %v795
    %v3089 = vunpack.c.h.b16 %v795
    %v3090 = vunpack.c.l.b16 %v796
    %v3091 = vunpack.c.h.b16 %v796
    %v3092 = vunpack.c.l.b16 %v797
    %v3093 = vunpack.c.h.b16 %v797
    %v3094 = vunpack.c.l.b16 %v798
    %v3095 = vunpack.c.h.b16 %v798
    %v3096 = vunpack.c.l.b16 %v799
    %v3097 = vunpack.c.h.b16 %v799
    %v3098 = vunpack.c.l.b16 %v800
    %v3099 = vunpack.c.h.b16 %v800
    %v3100 = vunpack.c.l.b16 %v801
    %v3101 = vunpack.c.h.b16 %v801
    %v3102 = vunpack.c.l.b16 %v802
    %v3103 = vunpack.c.h.b16 %v802
    %v3104 = vunpack.c.l.b16 %v803
    %v3105 = vunpack.c.h.b16 %v803
    %v3106 = vunpack.c.l.b16 %v804
    %v3107 = vunpack.c.h.b16 %v804
    %v3108 = vunpack.c.l.b16 %v805
    %v3109 = vunpack.c.h.b16 %v805
    %v3110 = vunpack.c.l.b16 %v806
    %v3111 = vunpack.c.h.b16 %v806
    %v3112 = vunpack.c.l.b16 %v807
    %v3113 = vunpack.c.h.b16 %v807
    %v3114 = vunpack.c.l.b16 %v808
    %v3115 = vunpack.c.h.b16 %v808
    %v3116 = vunpack.c.l.b16 %v809
    %v3117 = vunpack.c.h.b16 %v809
    %v3118 = vunpack.c.l.b16 %v810
    %v3119 = vunpack.c.h.b16 %v810
    %v3120 = vunpack.c.l.b16 %v811
    %v3121 = vunpack.c.h.b16 %v811
    %v3122 = vunpack.c.l.b16 %v812
    %v3123 = vunpack.c.h.b16 %v812
    %v3124 = vunpack.c.l.b16 %v813
    %v3125 = vunpack.c.h.b16 %v813
    %v3126 = vunpack.c.l.b16 %v814
    %v3127 = vunpack.c.h.b16 %v814
    %v3128 = vunpack.c.l.b16 %v815
    %v3129 = vunpack.c.h.b16 %v815
    %v3130 = vunpack.c.l.b16 %v816
    %v3131 = vunpack.c.h.b16 %v816
    %v3132 = vunpack.c.l.b16 %v817
    %v3133 = vunpack.c.h.b16 %v817
    %v3134 = vunpack.c.l.b16 %v818
    %v3135 = vunpack.c.h.b16 %v818
    %v3136 = vunpack.c.l.b16 %v819
    %v3137 = vunpack.c.h.b16 %v819
    %v3138 = vunpack.c.l.b16 %v820
    %v3139 = vunpack.c.h.b16 %v820
    %v3140 = vunpack.c.l.b16 %v821
    %v3141 = vunpack.c.h.b16 %v821
    %v3142 = vunpack.c.l.b16 %v822
    %v3143 = vunpack.c.h.b16 %v822
    %v3144 = vunpack.c.l.b16 %v823
    %v3145 = vunpack.c.h.b16 %v823
    %v3146 = vunpack.c.l.b16 %v824
    %v3147 = vunpack.c.h.b16 %v824
    %v3148 = vunpack.c.l.b16 %v825
    %v3149 = vunpack.c.h.b16 %v825
    %v3150 = vunpack.c.l.b16 %v826
    %v3151 = vunpack.c.h.b16 %v826
    %v3152 = vunpack.c.l.b16 %v827
    %v3153 = vunpack.c.h.b16 %v827
    %v3154 = vunpack.c.l.b16 %v828
    %v3155 = vunpack.c.h.b16 %v828
    %v3156 = vunpack.c.l.b16 %v829
    %v3157 = vunpack.c.h.b16 %v829
    %v3158 = vunpack.c.l.b16 %v830
    %v3159 = vunpack.c.h.b16 %v830
    %v3160 = vunpack.c.l.b16 %v831
    %v3161 = vunpack.c.h.b16 %v831
    %v3162 = vunpack.c.l.b16 %v832
    %v3163 = vunpack.c.h.b16 %v832
    %v3164 = vunpack.c.l.b16 %v833
    %v3165 = vunpack.c.h.b16 %v833
    %v3166 = vunpack.c.l.b16 %v834
    %v3167 = vunpack.c.h.b16 %v834
    %v3168 = vunpack.c.l.b16 %v835
    %v3169 = vunpack.c.h.b16 %v835
    %v3170 = vunpack.c.l.b16 %v836
    %v3171 = vunpack.c.h.b16 %v836
    %v3172 = vunpack.c.l.b16 %v837
    %v3173 = vunpack.c.h.b16 %v837
    %v3174 = vunpack.c.l.b16 %v838
    %v3175 = vunpack.c.h.b16 %v838
    %v3176 = vunpack.c.l.b16 %v839
    %v3177 = vunpack.c.h.b16 %v839
    %v3178 = vunpack.c.l.b16 %v840
    %v3179 = vunpack.c.h.b16 %v840
    %v3180 = vunpack.c.l.b16 %v841
    %v3181 = vunpack.c.h.b16 %v841
    %v3182 = vunpack.c.l.b16 %v842
    %v3183 = vunpack.c.h.b16 %v842
    %v3184 = vunpack.c.l.b16 %v843
    %v3185 = vunpack.c.h.b16 %v843
    %v3186 = vunpack.c.l.b16 %v844
    %v3187 = vunpack.c.h.b16 %v844
    %v3188 = vunpack.c.l.b16 %v845
    %v3189 = vunpack.c.h.b16 %v845
    %v3190 = vunpack.c.l.b16 %v846
    %v3191 = vunpack.c.h.b16 %v846
    %v3192 = vunpack.c.l.b16 %v847
    %v3193 = vunpack.c.h.b16 %v847
    %v3194 = vunpack.c.l.b16 %v848
    %v3195 = vunpack.c.h.b16 %v848
    %v3196 = vunpack.c.l.b16 %v849
    %v3197 = vunpack.c.h.b16 %v849
    %v3198 = vunpack.c.l.b16 %v850
    %v3199 = vunpack.c.h.b16 %v850
    %v3200 = vunpack.c.l.b16 %v851
    %v3201 = vunpack.c.h.b16 %v851
    %v3202 = vunpack.c.l.b16 %v852
    %v3203 = vunpack.c.h.b16 %v852
    %v3204 = vunpack.c.l.b16 %v853
    %v3205 = vunpack.c.h.b16 %v853
    %v3206 = vunpack.c.l.b16 %v854
    %v3207 = vunpack.c.h.b16 %v854
    %v3208 = vunpack.c.l.b16 %v855
    %v3209 = vunpack.c.h.b16 %v855
    %v3210 = vunpack.c.l.b16 %v856
    %v3211 = vunpack.c.h.b16 %v856
    %v3212 = vunpack.c.l.b16 %v857
    %v3213 = vunpack.c.h.b16 %v857
    %v3214 = vunpack.c.l.b16 %v858
    %v3215 = vunpack.c.h.b16 %v858
    %v3216 = vunpack.c.l.b16 %v859
    %v3217 = vunpack.c.h.b16 %v859
    %v3218 = vunpack.c.l.b16 %v860
    %v3219 = vunpack.c.h.b16 %v860
    %v3220 = vunpack.c.l.b16 %v861
    %v3221 = vunpack.c.h.b16 %v861
    %v3222 = vunpack.c.l.b16 %v862
    %v3223 = vunpack.c.h.b16 %v862
    %v3224 = vunpack.c.l.b16 %v863
    %v3225 = vunpack.c.h.b16 %v863
    %v3226 = vunpack.c.l.b16 %v864
    %v3227 = vunpack.c.h.b16 %v864
    %v3228 = vunpack.c.l.b16 %v865
    %v3229 = vunpack.c.h.b16 %v865
    %v3230 = vpack.c.b16 %v1702, %v1694
    %v3231 = vpack.c.b16 %v1703, %v1695
    %v3232 = vpack.c.b16 %v1704, %v1696
    %v3233 = vpack.c.b16 %v1705, %v1697
    %v3234 = vpack.c.b16 %v1706, %v1698
    %v3235 = vpack.c.b16 %v1707, %v1699
    %v3236 = vpack.c.b16 %v1708, %v1700
    %v3237 = vpack.c.b16 %v1709, %v1701
    %v3238 = vpack.c.b16 %v1718, %v1710
    %v3239 = vpack.c.b16 %v1719, %v1711
    %v3240 = vpack.c.b16 %v1720, %v1712
    %v3241 = vpack.c.b16 %v1721, %v1713
    %v3242 = vpack.c.b16 %v1722, %v1714
    %v3243 = vpack.c.b16 %v1723, %v1715
    %v3244 = vpack.c.b16 %v1724, %v1716
    %v3245 = vpack.c.b16 %v1725, %v1717
    %v3246 = vpack.c.b16 %v1734, %v1726
    %v3247 = vpack.c.b16 %v1735, %v1727
    %v3248 = vpack.c.b16 %v1736, %v1728
    %v3249 = vpack.c.b16 %v1737, %v1729
    %v3250 = vpack.c.b16 %v1738, %v1730
    %v3251 = vpack.c.b16 %v1739, %v1731
    %v3252 = vpack.c.b16 %v1740, %v1732
    %v3253 = vpack.c.b16 %v1741, %v1733
    %v3254 = vpack.c.b16 %v1750, %v1742
    %v3255 = vpack.c.b16 %v1751, %v1743
    %v3256 = vpack.c.b16 %v1752, %v1744
    %v3257 = vpack.c.b16 %v1753, %v1745
    %v3258 = vpack.c.b16 %v1754, %v1746
    %v3259 = vpack.c.b16 %v1755, %v1747
    %v3260 = vpack.c.b16 %v1756, %v1748
    %v3261 = vpack.c.b16 %v1757, %v1749
    %v3262 = vpack.c.b16 %v1766, %v1758
    %v3263 = vpack.c.b16 %v1767, %v1759
    %v3264 = vpack.c.b16 %v1768, %v1760
    %v3265 = vpack.c.b16 %v1769, %v1761
    %v3266 = vpack.c.b16 %v1770, %v1762
    %v3267 = vpack.c.b16 %v1771, %v1763
    %v3268 = vpack.c.b16 %v1772, %v1764
    %v3269 = vpack.c.b16 %v1773, %v1765
    %v3270 = vpack.c.b16 %v1782, %v1774
    %v3271 = vpack.c.b16 %v1783, %v1775
    %v3272 = vpack.c.b16 %v1784, %v1776
    %v3273 = vpack.c.b16 %v1785, %v1777
    %v3274 = vpack.c.b16 %v1786, %v1778
    %v3275 = vpack.c.b16 %v1787, %v1779
    %v3276 = vpack.c.b16 %v1788, %v1780
    %v3277 = vpack.c.b16 %v1789, %v1781
    %v3278 = vpack.c.b16 %v1798, %v1790
    %v3279 = vpack.c.b16 %v1799, %v1791
    %v3280 = vpack.c.b16 %v1800, %v1792
    %v3281 = vpack.c.b16 %v1801, %v1793
    %v3282 = vpack.c.b16 %v1802, %v1794
    %v3283 = vpack.c.b16 %v1803, %v1795
    %v3284 = vpack.c.b16 %v1804, %v1796
    %v3285 = vpack.c.b16 %v1805, %v1797
    %v3286 = vpack.c.b16 %v1814, %v1806
    %v3287 = vpack.c.b16 %v1815, %v1807
    %v3288 = vpack.c.b16 %v1816, %v1808
    %v3289 = vpack.c.b16 %v1817, %v1809
    %v3290 = vpack.c.b16 %v1818, %v1810
    %v3291 = vpack.c.b16 %v1819, %v1811
    %v3292 = vpack.c.b16 %v1820, %v1812
    %v3293 = vpack.c.b16 %v1821, %v1813
    %v3294 = vpack.c.b16 %v1830, %v1822
    %v3295 = vpack.c.b16 %v1831, %v1823
    %v3296 = vpack.c.b16 %v1832, %v1824
    %v3297 = vpack.c.b16 %v1833, %v1825
    %v3298 = vpack.c.b16 %v1834, %v1826
    %v3299 = vpack.c.b16 %v1835, %v1827
    %v3300 = vpack.c.b16 %v1836, %v1828
    %v3301 = vpack.c.b16 %v1837, %v1829
    %v3302 = vpack.c.b16 %v1846, %v1838
    %v3303 = vpack.c.b16 %v1847, %v1839
    %v3304 = vpack.c.b16 %v1848, %v1840
    %v3305 = vpack.c.b16 %v1849, %v1841
    %v3306 = vpack.c.b16 %v1850, %v1842
    %v3307 = vpack.c.b16 %v1851, %v1843
    %v3308 = vpack.c.b16 %v1852, %v1844
    %v3309 = vpack.c.b16 %v1853, %v1845
    %v3310 = vpack.c.b16 %v1862, %v1854
    %v3311 = vpack.c.b16 %v1863, %v1855
    %v3312 = vpack.c.b16 %v1864, %v1856
    %v3313 = vpack.c.b16 %v1865, %v1857
    %v3314 = vpack.c.b16 %v1866, %v1858
    %v3315 = vpack.c.b16 %v1867, %v1859
    %v3316 = vpack.c.b16 %v1868, %v1860
    %v3317 = vpack.c.b16 %v1869, %v1861
    %v3318 = vpack.c.b16 %v1878, %v1870
    %v3319 = vpack.c.b16 %v1879, %v1871
    %v3320 = vpack.c.b16 %v1880, %v1872
    %v3321 = vpack.c.b16 %v1881, %v1873
    %v3322 = vpack.c.b16 %v1882, %v1874
    %v3323 = vpack.c.b16 %v1883, %v1875
    %v3324 = vpack.c.b16 %v1884, %v1876
    %v3325 = vpack.c.b16 %v1885, %v1877
    %v3326 = vpack.c.b16 %v1894, %v1886
    %v3327 = vpack.c.b16 %v1895, %v1887
    %v3328 = vpack.c.b16 %v1896, %v1888
    %v3329 = vpack.c.b16 %v1897, %v1889
    %v3330 = vpack.c.b16 %v1898, %v1890
    %v3331 = vpack.c.b16 %v1899, %v1891
    %v3332 = vpack.c.b16 %v1900, %v1892
    %v3333 = vpack.c.b16 %v1901, %v1893
    %v3334 = vpack.c.b16 %v1910, %v1902
    %v3335 = vpack.c.b16 %v1911, %v1903
    %v3336 = vpack.c.b16 %v1912, %v1904
    %v3337 = vpack.c.b16 %v1913, %v1905
    %v3338 = vpack.c.b16 %v1914, %v1906
    %v3339 = vpack.c.b16 %v1915, %v1907
    %v3340 = vpack.c.b16 %v1916, %v1908
    %v3341 = vpack.c.b16 %v1917, %v1909
    %v3342 = vpack.c.b16 %v1926, %v1918
    %v3343 = vpack.c.b16 %v1927, %v1919
    %v3344 = vpack.c.b16 %v1928, %v1920
    %v3345 = vpack.c.b16 %v1929, %v1921
    %v3346 = vpack.c.b16 %v1930, %v1922
    %v3347 = vpack.c.b16 %v1931, %v1923
    %v3348 = vpack.c.b16 %v1932, %v1924
    %v3349 = vpack.c.b16 %v1933, %v1925
    %v3350 = vpack.c.b16 %v1942, %v1934
    %v3351 = vpack.c.b16 %v1943, %v1935
    %v3352 = vpack.c.b16 %v1944, %v1936
    %v3353 = vpack.c.b16 %v1945, %v1937
    %v3354 = vpack.c.b16 %v1946, %v1938
    %v3355 = vpack.c.b16 %v1947, %v1939
    %v3356 = vpack.c.b16 %v1948, %v1940
    %v3357 = vpack.c.b16 %v1949, %v1941
    %v3358 = vpack.c.b16 %v1958, %v1950
    %v3359 = vpack.c.b16 %v1959, %v1951
    %v3360 = vpack.c.b16 %v1960, %v1952
    %v3361 = vpack.c.b16 %v1961, %v1953
    %v3362 = vpack.c.b16 %v1962, %v1954
    %v3363 = vpack.c.b16 %v1963, %v1955
    %v3364 = vpack.c.b16 %v1964, %v1956
    %v3365 = vpack.c.b16 %v1965, %v1957
    %v3366 = vpack.c.b16 %v1974, %v1966
    %v3367 = vpack.c.b16 %v1975, %v1967
    %v3368 = vpack.c.b16 %v1976, %v1968
    %v3369 = vpack.c.b16 %v1977, %v1969
    %v3370 = vpack.c.b16 %v1978, %v1970
    %v3371 = vpack.c.b16 %v1979, %v1971
    %v3372 = vpack.c.b16 %v1980, %v1972
    %v3373 = vpack.c.b16 %v1981, %v1973
    %v3374 = vpack.c.b16 %v1990, %v1982
    %v3375 = vpack.c.b16 %v1991, %v1983
    %v3376 = vpack.c.b16 %v1992, %v1984
    %v3377 = vpack.c.b16 %v1993, %v1985
    %v3378 = vpack.c.b16 %v1994, %v1986
    %v3379 = vpack.c.b16 %v1995, %v1987
    %v3380 = vpack.c.b16 %v1996, %v1988
    %v3381 = vpack.c.b16 %v1997, %v1989
    %v3382 = vpack.c.b16 %v2006, %v1998
    %v3383 = vpack.c.b16 %v2007, %v1999
    %v3384 = vpack.c.b16 %v2008, %v2000
    %v3385 = vpack.c.b16 %v2009, %v2001
    %v3386 = vpack.c.b16 %v2010, %v2002
    %v3387 = vpack.c.b16 %v2011, %v2003
    %v3388 = vpack.c.b16 %v2012, %v2004
    %v3389 = vpack.c.b16 %v2013, %v2005
    %v3390 = vpack.c.b16 %v2022, %v2014
    %v3391 = vpack.c.b16 %v2023, %v2015
    %v3392 = vpack.c.b16 %v2024, %v2016
    %v3393 = vpack.c.b16 %v2025, %v2017
    %v3394 = vpack.c.b16 %v2026, %v2018
    %v3395 = vpack.c.b16 %v2027, %v2019
    %v3396 = vpack.c.b16 %v2028, %v2020
    %v3397 = vpack.c.b16 %v2029, %v2021
    %v3398 = vpack.c.b16 %v2038, %v2030
    %v3399 = vpack.c.b16 %v2039, %v2031
    %v3400 = vpack.c.b16 %v2040, %v2032
    %v3401 = vpack.c.b16 %v2041, %v2033
    %v3402 = vpack.c.b16 %v2042, %v2034
    %v3403 = vpack.c.b16 %v2043, %v2035
    %v3404 = vpack.c.b16 %v2044, %v2036
    %v3405 = vpack.c.b16 %v2045, %v2037
    %v3406 = vpack.c.b16 %v2054, %v2046
    %v3407 = vpack.c.b16 %v2055, %v2047
    %v3408 = vpack.c.b16 %v2056, %v2048
    %v3409 = vpack.c.b16 %v2057, %v2049
    %v3410 = vpack.c.b16 %v2058, %v2050
    %v3411 = vpack.c.b16 %v2059, %v2051
    %v3412 = vpack.c.b16 %v2060, %v2052
    %v3413 = vpack.c.b16 %v2061, %v2053
    %v3414 = vpack.c.b16 %v2070, %v2062
    %v3415 = vpack.c.b16 %v2071, %v2063
    %v3416 = vpack.c.b16 %v2072, %v2064
    %v3417 = vpack.c.b16 %v2073, %v2065
    %v3418 = vpack.c.b16 %v2074, %v2066
    %v3419 = vpack.c.b16 %v2075, %v2067
    %v3420 = vpack.c.b16 %v2076, %v2068
    %v3421 = vpack.c.b16 %v2077, %v2069
    %v3422 = vpack.c.b16 %v2086, %v2078
    %v3423 = vpack.c.b16 %v2087, %v2079
    %v3424 = vpack.c.b16 %v2088, %v2080
    %v3425 = vpack.c.b16 %v2089, %v2081
    %v3426 = vpack.c.b16 %v2090, %v2082
    %v3427 = vpack.c.b16 %v2091, %v2083
    %v3428 = vpack.c.b16 %v2092, %v2084
    %v3429 = vpack.c.b16 %v2093, %v2085
    %v3430 = vpack.c.b16 %v2102, %v2094
    %v3431 = vpack.c.b16 %v2103, %v2095
    %v3432 = vpack.c.b16 %v2104, %v2096
    %v3433 = vpack.c.b16 %v2105, %v2097
    %v3434 = vpack.c.b16 %v2106, %v2098
    %v3435 = vpack.c.b16 %v2107, %v2099
    %v3436 = vpack.c.b16 %v2108, %v2100
    %v3437 = vpack.c.b16 %v2109, %v2101
    %v3438 = vpack.c.b16 %v2118, %v2110
    %v3439 = vpack.c.b16 %v2119, %v2111
    %v3440 = vpack.c.b16 %v2120, %v2112
    %v3441 = vpack.c.b16 %v2121, %v2113
    %v3442 = vpack.c.b16 %v2122, %v2114
    %v3443 = vpack.c.b16 %v2123, %v2115
    %v3444 = vpack.c.b16 %v2124, %v2116
    %v3445 = vpack.c.b16 %v2125, %v2117
    %v3446 = vpack.c.b16 %v2134, %v2126
    %v3447 = vpack.c.b16 %v2135, %v2127
    %v3448 = vpack.c.b16 %v2136, %v2128
    %v3449 = vpack.c.b16 %v2137, %v2129
    %v3450 = vpack.c.b16 %v2138, %v2130
    %v3451 = vpack.c.b16 %v2139, %v2131
    %v3452 = vpack.c.b16 %v2140, %v2132
    %v3453 = vpack.c.b16 %v2141, %v2133
    %v3454 = vpack.c.b16 %v2150, %v2142
    %v3455 = vpack.c.b16 %v2151, %v2143
    %v3456 = vpack.c.b16 %v2152, %v2144
    %v3457 = vpack.c.b16 %v2153, %v2145
    %v3458 = vpack.c.b16 %v2154, %v2146
    %v3459 = vpack.c.b16 %v2155, %v2147
    %v3460 = vpack.c.b16 %v2156, %v2148
    %v3461 = vpack.c.b16 %v2157, %v2149
    %v3462 = vpack.c.b16 %v2166, %v2158
    %v3463 = vpack.c.b16 %v2167, %v2159
    %v3464 = vpack.c.b16 %v2168, %v2160
    %v3465 = vpack.c.b16 %v2169, %v2161
    %v3466 = vpack.c.b16 %v2170, %v2162
    %v3467 = vpack.c.b16 %v2171, %v2163
    %v3468 = vpack.c.b16 %v2172, %v2164
    %v3469 = vpack.c.b16 %v2173, %v2165
    %v3470 = vpack.c.b16 %v2182, %v2174
    %v3471 = vpack.c.b16 %v2183, %v2175
    %v3472 = vpack.c.b16 %v2184, %v2176
    %v3473 = vpack.c.b16 %v2185, %v2177
    %v3474 = vpack.c.b16 %v2186, %v2178
    %v3475 = vpack.c.b16 %v2187, %v2179
    %v3476 = vpack.c.b16 %v2188, %v2180
    %v3477 = vpack.c.b16 %v2189, %v2181
    %v3478 = vpack.c.b16 %v2198, %v2190
    %v3479 = vpack.c.b16 %v2199, %v2191
    %v3480 = vpack.c.b16 %v2200, %v2192
    %v3481 = vpack.c.b16 %v2201, %v2193
    %v3482 = vpack.c.b16 %v2202, %v2194
    %v3483 = vpack.c.b16 %v2203, %v2195
    %v3484 = vpack.c.b16 %v2204, %v2196
    %v3485 = vpack.c.b16 %v2205, %v2197
    %v3486 = vpack.c.b16 %v2214, %v2206
    %v3487 = vpack.c.b16 %v2215, %v2207
    %v3488 = vpack.c.b16 %v2216, %v2208
    %v3489 = vpack.c.b16 %v2217, %v2209
    %v3490 = vpack.c.b16 %v2218, %v2210
    %v3491 = vpack.c.b16 %v2219, %v2211
    %v3492 = vpack.c.b16 %v2220, %v2212
    %v3493 = vpack.c.b16 %v2221, %v2213
    %v3494 = vpack.c.b16 %v2230, %v2222
    %v3495 = vpack.c.b16 %v2231, %v2223
    %v3496 = vpack.c.b16 %v2232, %v2224
    %v3497 = vpack.c.b16 %v2233, %v2225
    %v3498 = vpack.c.b16 %v2234, %v2226
    %v3499 = vpack.c.b16 %v2235, %v2227
    %v3500 = vpack.c.b16 %v2236, %v2228
    %v3501 = vpack.c.b16 %v2237, %v2229
    %v3502 = vpack.c.b16 %v2246, %v2238
    %v3503 = vpack.c.b16 %v2247, %v2239
    %v3504 = vpack.c.b16 %v2248, %v2240
    %v3505 = vpack.c.b16 %v2249, %v2241
    %v3506 = vpack.c.b16 %v2250, %v2242
    %v3507 = vpack.c.b16 %v2251, %v2243
    %v3508 = vpack.c.b16 %v2252, %v2244
    %v3509 = vpack.c.b16 %v2253, %v2245
    %v3510 = vpack.c.b16 %v2262, %v2254
    %v3511 = vpack.c.b16 %v2263, %v2255
    %v3512 = vpack.c.b16 %v2264, %v2256
    %v3513 = vpack.c.b16 %v2265, %v2257
    %v3514 = vpack.c.b16 %v2266, %v2258
    %v3515 = vpack.c.b16 %v2267, %v2259
    %v3516 = vpack.c.b16 %v2268, %v2260
    %v3517 = vpack.c.b16 %v2269, %v2261
    %v3518 = vpack.c.b16 %v2278, %v2270
    %v3519 = vpack.c.b16 %v2279, %v2271
    %v3520 = vpack.c.b16 %v2280, %v2272
    %v3521 = vpack.c.b16 %v2281, %v2273
    %v3522 = vpack.c.b16 %v2282, %v2274
    %v3523 = vpack.c.b16 %v2283, %v2275
    %v3524 = vpack.c.b16 %v2284, %v2276
    %v3525 = vpack.c.b16 %v2285, %v2277
    %v3526 = vpack.c.b16 %v2294, %v2286
    %v3527 = vpack.c.b16 %v2295, %v2287
    %v3528 = vpack.c.b16 %v2296, %v2288
    %v3529 = vpack.c.b16 %v2297, %v2289
    %v3530 = vpack.c.b16 %v2298, %v2290
    %v3531 = vpack.c.b16 %v2299, %v2291
    %v3532 = vpack.c.b16 %v2300, %v2292
    %v3533 = vpack.c.b16 %v2301, %v2293
    %v3534 = vpack.c.b16 %v2310, %v2302
    %v3535 = vpack.c.b16 %v2311, %v2303
    %v3536 = vpack.c.b16 %v2312, %v2304
    %v3537 = vpack.c.b16 %v2313, %v2305
    %v3538 = vpack.c.b16 %v2314, %v2306
    %v3539 = vpack.c.b16 %v2315, %v2307
    %v3540 = vpack.c.b16 %v2316, %v2308
    %v3541 = vpack.c.b16 %v2317, %v2309
    %v3542 = vpack.c.b16 %v2326, %v2318
    %v3543 = vpack.c.b16 %v2327, %v2319
    %v3544 = vpack.c.b16 %v2328, %v2320
    %v3545 = vpack.c.b16 %v2329, %v2321
    %v3546 = vpack.c.b16 %v2330, %v2322
    %v3547 = vpack.c.b16 %v2331, %v2323
    %v3548 = vpack.c.b16 %v2332, %v2324
    %v3549 = vpack.c.b16 %v2333, %v2325
    %v3550 = vpack.c.b16 %v2342, %v2334
    %v3551 = vpack.c.b16 %v2343, %v2335
    %v3552 = vpack.c.b16 %v2344, %v2336
    %v3553 = vpack.c.b16 %v2345, %v2337
    %v3554 = vpack.c.b16 %v2346, %v2338
    %v3555 = vpack.c.b16 %v2347, %v2339
    %v3556 = vpack.c.b16 %v2348, %v2340
    %v3557 = vpack.c.b16 %v2349, %v2341
    %v3558 = vpack.c.b16 %v2358, %v2350
    %v3559 = vpack.c.b16 %v2359, %v2351
    %v3560 = vpack.c.b16 %v2360, %v2352
    %v3561 = vpack.c.b16 %v2361, %v2353
    %v3562 = vpack.c.b16 %v2362, %v2354
    %v3563 = vpack.c.b16 %v2363, %v2355
    %v3564 = vpack.c.b16 %v2364, %v2356
    %v3565 = vpack.c.b16 %v2365, %v2357
    %v3566 = vpack.c.b16 %v2374, %v2366
    %v3567 = vpack.c.b16 %v2375, %v2367
    %v3568 = vpack.c.b16 %v2376, %v2368
    %v3569 = vpack.c.b16 %v2377, %v2369
    %v3570 = vpack.c.b16 %v2378, %v2370
    %v3571 = vpack.c.b16 %v2379, %v2371
    %v3572 = vpack.c.b16 %v2380, %v2372
    %v3573 = vpack.c.b16 %v2381, %v2373
    %v3574 = vpack.c.b16 %v2390, %v2382
    %v3575 = vpack.c.b16 %v2391, %v2383
    %v3576 = vpack.c.b16 %v2392, %v2384
    %v3577 = vpack.c.b16 %v2393, %v2385
    %v3578 = vpack.c.b16 %v2394, %v2386
    %v3579 = vpack.c.b16 %v2395, %v2387
    %v3580 = vpack.c.b16 %v2396, %v2388
    %v3581 = vpack.c.b16 %v2397, %v2389
    %v3582 = vpack.c.b16 %v2406, %v2398
    %v3583 = vpack.c.b16 %v2407, %v2399
    %v3584 = vpack.c.b16 %v2408, %v2400
    %v3585 = vpack.c.b16 %v2409, %v2401
    %v3586 = vpack.c.b16 %v2410, %v2402
    %v3587 = vpack.c.b16 %v2411, %v2403
    %v3588 = vpack.c.b16 %v2412, %v2404
    %v3589 = vpack.c.b16 %v2413, %v2405
    %v3590 = vpack.c.b16 %v2422, %v2414
    %v3591 = vpack.c.b16 %v2423, %v2415
    %v3592 = vpack.c.b16 %v2424, %v2416
    %v3593 = vpack.c.b16 %v2425, %v2417
    %v3594 = vpack.c.b16 %v2426, %v2418
    %v3595 = vpack.c.b16 %v2427, %v2419
    %v3596 = vpack.c.b16 %v2428, %v2420
    %v3597 = vpack.c.b16 %v2429, %v2421
    %v3598 = vpack.c.b16 %v2438, %v2430
    %v3599 = vpack.c.b16 %v2439, %v2431
    %v3600 = vpack.c.b16 %v2440, %v2432
    %v3601 = vpack.c.b16 %v2441, %v2433
    %v3602 = vpack.c.b16 %v2442, %v2434
    %v3603 = vpack.c.b16 %v2443, %v2435
    %v3604 = vpack.c.b16 %v2444, %v2436
    %v3605 = vpack.c.b16 %v2445, %v2437
    %v3606 = vpack.c.b16 %v2454, %v2446
    %v3607 = vpack.c.b16 %v2455, %v2447
    %v3608 = vpack.c.b16 %v2456, %v2448
    %v3609 = vpack.c.b16 %v2457, %v2449
    %v3610 = vpack.c.b16 %v2458, %v2450
    %v3611 = vpack.c.b16 %v2459, %v2451
    %v3612 = vpack.c.b16 %v2460, %v2452
    %v3613 = vpack.c.b16 %v2461, %v2453
    %v3614 = vpack.c.b16 %v2470, %v2462
    %v3615 = vpack.c.b16 %v2471, %v2463
    %v3616 = vpack.c.b16 %v2472, %v2464
    %v3617 = vpack.c.b16 %v2473, %v2465
    %v3618 = vpack.c.b16 %v2474, %v2466
    %v3619 = vpack.c.b16 %v2475, %v2467
    %v3620 = vpack.c.b16 %v2476, %v2468
    %v3621 = vpack.c.b16 %v2477, %v2469
    %v3622 = vpack.c.b16 %v2486, %v2478
    %v3623 = vpack.c.b16 %v2487, %v2479
    %v3624 = vpack.c.b16 %v2488, %v2480
    %v3625 = vpack.c.b16 %v2489, %v2481
    %v3626 = vpack.c.b16 %v2490, %v2482
    %v3627 = vpack.c.b16 %v2491, %v2483
    %v3628 = vpack.c.b16 %v2492, %v2484
    %v3629 = vpack.c.b16 %v2493, %v2485
    %v3630 = vpack.c.b16 %v2502, %v2494
    %v3631 = vpack.c.b16 %v2503, %v2495
    %v3632 = vpack.c.b16 %v2504, %v2496
    %v3633 = vpack.c.b16 %v2505, %v2497
    %v3634 = vpack.c.b16 %v2506, %v2498
    %v3635 = vpack.c.b16 %v2507, %v2499
    %v3636 = vpack.c.b16 %v2508, %v2500
    %v3637 = vpack.c.b16 %v2509, %v2501
    %v3638 = vpack.c.b16 %v2518, %v2510
    %v3639 = vpack.c.b16 %v2519, %v2511
    %v3640 = vpack.c.b16 %v2520, %v2512
    %v3641 = vpack.c.b16 %v2521, %v2513
    %v3642 = vpack.c.b16 %v2522, %v2514
    %v3643 = vpack.c.b16 %v2523, %v2515
    %v3644 = vpack.c.b16 %v2524, %v2516
    %v3645 = vpack.c.b16 %v2525, %v2517
    %v3646 = vpack.c.b16 %v2534, %v2526
    %v3647 = vpack.c.b16 %v2535, %v2527
    %v3648 = vpack.c.b16 %v2536, %v2528
    %v3649 = vpack.c.b16 %v2537, %v2529
    %v3650 = vpack.c.b16 %v2538, %v2530
    %v3651 = vpack.c.b16 %v2539, %v2531
    %v3652 = vpack.c.b16 %v2540, %v2532
    %v3653 = vpack.c.b16 %v2541, %v2533
    %v3654 = vpack.c.b16 %v2550, %v2542
    %v3655 = vpack.c.b16 %v2551, %v2543
    %v3656 = vpack.c.b16 %v2552, %v2544
    %v3657 = vpack.c.b16 %v2553, %v2545
    %v3658 = vpack.c.b16 %v2554, %v2546
    %v3659 = vpack.c.b16 %v2555, %v2547
    %v3660 = vpack.c.b16 %v2556, %v2548
    %v3661 = vpack.c.b16 %v2557, %v2549
    %v3662 = vpack.c.b16 %v2566, %v2558
    %v3663 = vpack.c.b16 %v2567, %v2559
    %v3664 = vpack.c.b16 %v2568, %v2560
    %v3665 = vpack.c.b16 %v2569, %v2561
    %v3666 = vpack.c.b16 %v2570, %v2562
    %v3667 = vpack.c.b16 %v2571, %v2563
    %v3668 = vpack.c.b16 %v2572, %v2564
    %v3669 = vpack.c.b16 %v2573, %v2565
    %v3670 = vpack.c.b16 %v2582, %v2574
    %v3671 = vpack.c.b16 %v2583, %v2575
    %v3672 = vpack.c.b16 %v2584, %v2576
    %v3673 = vpack.c.b16 %v2585, %v2577
    %v3674 = vpack.c.b16 %v2586, %v2578
    %v3675 = vpack.c.b16 %v2587, %v2579
    %v3676 = vpack.c.b16 %v2588, %v2580
    %v3677 = vpack.c.b16 %v2589, %v2581
    %v3678 = vpack.c.b16 %v2598, %v2590
    %v3679 = vpack.c.b16 %v2599, %v2591
    %v3680 = vpack.c.b16 %v2600, %v2592
    %v3681 = vpack.c.b16 %v2601, %v2593
    %v3682 = vpack.c.b16 %v2602, %v2594
    %v3683 = vpack.c.b16 %v2603, %v2595
    %v3684 = vpack.c.b16 %v2604, %v2596
    %v3685 = vpack.c.b16 %v2605, %v2597
    %v3686 = vpack.c.b16 %v2614, %v2606
    %v3687 = vpack.c.b16 %v2615, %v2607
    %v3688 = vpack.c.b16 %v2616, %v2608
    %v3689 = vpack.c.b16 %v2617, %v2609
    %v3690 = vpack.c.b16 %v2618, %v2610
    %v3691 = vpack.c.b16 %v2619, %v2611
    %v3692 = vpack.c.b16 %v2620, %v2612
    %v3693 = vpack.c.b16 %v2621, %v2613
    %v3694 = vpack.c.b16 %v2630, %v2622
    %v3695 = vpack.c.b16 %v2631, %v2623
    %v3696 = vpack.c.b16 %v2632, %v2624
    %v3697 = vpack.c.b16 %v2633, %v2625
    %v3698 = vpack.c.b16 %v2634, %v2626
    %v3699 = vpack.c.b16 %v2635, %v2627
    %v3700 = vpack.c.b16 %v2636, %v2628
    %v3701 = vpack.c.b16 %v2637, %v2629
    %v3702 = vpack.c.b16 %v2646, %v2638
    %v3703 = vpack.c.b16 %v2647, %v2639
    %v3704 = vpack.c.b16 %v2648, %v2640
    %v3705 = vpack.c.b16 %v2649, %v2641
    %v3706 = vpack.c.b16 %v2650, %v2642
    %v3707 = vpack.c.b16 %v2651, %v2643
    %v3708 = vpack.c.b16 %v2652, %v2644
    %v3709 = vpack.c.b16 %v2653, %v2645
    %v3710 = vpack.c.b16 %v2662, %v2654
    %v3711 = vpack.c.b16 %v2663, %v2655
    %v3712 = vpack.c.b16 %v2664, %v2656
    %v3713 = vpack.c.b16 %v2665, %v2657
    %v3714 = vpack.c.b16 %v2666, %v2658
    %v3715 = vpack.c.b16 %v2667, %v2659
    %v3716 = vpack.c.b16 %v2668, %v2660
    %v3717 = vpack.c.b16 %v2669, %v2661
    %v3718 = vpack.c.b16 %v2678, %v2670
    %v3719 = vpack.c.b16 %v2679, %v2671
    %v3720 = vpack.c.b16 %v2680, %v2672
    %v3721 = vpack.c.b16 %v2681, %v2673
    %v3722 = vpack.c.b16 %v2682, %v2674
    %v3723 = vpack.c.b16 %v2683, %v2675
    %v3724 = vpack.c.b16 %v2684, %v2676
    %v3725 = vpack.c.b16 %v2685, %v2677
    %v3726 = vpack.c.b16 %v2694, %v2686
    %v3727 = vpack.c.b16 %v2695, %v2687
    %v3728 = vpack.c.b16 %v2696, %v2688
    %v3729 = vpack.c.b16 %v2697, %v2689
    %v3730 = vpack.c.b16 %v2698, %v2690
    %v3731 = vpack.c.b16 %v2699, %v2691
    %v3732 = vpack.c.b16 %v2700, %v2692
    %v3733 = vpack.c.b16 %v2701, %v2693
    %v3734 = vpack.c.b16 %v2710, %v2702
    %v3735 = vpack.c.b16 %v2711, %v2703
    %v3736 = vpack.c.b16 %v2712, %v2704
    %v3737 = vpack.c.b16 %v2713, %v2705
    %v3738 = vpack.c.b16 %v2714, %v2706
    %v3739 = vpack.c.b16 %v2715, %v2707
    %v3740 = vpack.c.b16 %v2716, %v2708
    %v3741 = vpack.c.b16 %v2717, %v2709
    %v3742 = vpack.c.b16 %v2726, %v2718
    %v3743 = vpack.c.b16 %v2727, %v2719
    %v3744 = vpack.c.b16 %v2728, %v2720
    %v3745 = vpack.c.b16 %v2729, %v2721
    %v3746 = vpack.c.b16 %v2730, %v2722
    %v3747 = vpack.c.b16 %v2731, %v2723
    %v3748 = vpack.c.b16 %v2732, %v2724
    %v3749 = vpack.c.b16 %v2733, %v2725
    %v3750 = vpack.c.b16 %v2742, %v2734
    %v3751 = vpack.c.b16 %v2743, %v2735
    %v3752 = vpack.c.b16 %v2744, %v2736
    %v3753 = vpack.c.b16 %v2745, %v2737
    %v3754 = vpack.c.b16 %v2746, %v2738
    %v3755 = vpack.c.b16 %v2747, %v2739
    %v3756 = vpack.c.b16 %v2748, %v2740
    %v3757 = vpack.c.b16 %v2749, %v2741
    %v3758 = vpack.c.b16 %v2758, %v2750
    %v3759 = vpack.c.b16 %v2759, %v2751
    %v3760 = vpack.c.b16 %v2760, %v2752
    %v3761 = vpack.c.b16 %v2761, %v2753
    %v3762 = vpack.c.b16 %v2762, %v2754
    %v3763 = vpack.c.b16 %v2763, %v2755
    %v3764 = vpack.c.b16 %v2764, %v2756
    %v3765 = vpack.c.b16 %v2765, %v2757
    %v3766 = vpack.c.b16 %v2774, %v2766
    %v3767 = vpack.c.b16 %v2775, %v2767
    %v3768 = vpack.c.b16 %v2776, %v2768
    %v3769 = vpack.c.b16 %v2777, %v2769
    %v3770 = vpack.c.b16 %v2778, %v2770
    %v3771 = vpack.c.b16 %v2779, %v2771
    %v3772 = vpack.c.b16 %v2780, %v2772
    %v3773 = vpack.c.b16 %v2781, %v2773
    %v3774 = vpack.c.b16 %v2790, %v2782
    %v3775 = vpack.c.b16 %v2791, %v2783
    %v3776 = vpack.c.b16 %v2792, %v2784
    %v3777 = vpack.c.b16 %v2793, %v2785
    %v3778 = vpack.c.b16 %v2794, %v2786
    %v3779 = vpack.c.b16 %v2795, %v2787
    %v3780 = vpack.c.b16 %v2796, %v2788
    %v3781 = vpack.c.b16 %v2797, %v2789
    %v3782 = vpack.c.b16 %v2806, %v2798
    %v3783 = vpack.c.b16 %v2807, %v2799
    %v3784 = vpack.c.b16 %v2808, %v2800
    %v3785 = vpack.c.b16 %v2809, %v2801
    %v3786 = vpack.c.b16 %v2810, %v2802
    %v3787 = vpack.c.b16 %v2811, %v2803
    %v3788 = vpack.c.b16 %v2812, %v2804
    %v3789 = vpack.c.b16 %v2813, %v2805
    %v3790 = vpack.c.b16 %v2822, %v2814
    %v3791 = vpack.c.b16 %v2823, %v2815
    %v3792 = vpack.c.b16 %v2824, %v2816
    %v3793 = vpack.c.b16 %v2825, %v2817
    %v3794 = vpack.c.b16 %v2826, %v2818
    %v3795 = vpack.c.b16 %v2827, %v2819
    %v3796 = vpack.c.b16 %v2828, %v2820
    %v3797 = vpack.c.b16 %v2829, %v2821
    %v3798 = vpack.c.b16 %v2838, %v2830
    %v3799 = vpack.c.b16 %v2839, %v2831
    %v3800 = vpack.c.b16 %v2840, %v2832
    %v3801 = vpack.c.b16 %v2841, %v2833
    %v3802 = vpack.c.b16 %v2842, %v2834
    %v3803 = vpack.c.b16 %v2843, %v2835
    %v3804 = vpack.c.b16 %v2844, %v2836
    %v3805 = vpack.c.b16 %v2845, %v2837
    %v3806 = vpack.c.b16 %v2854, %v2846
    %v3807 = vpack.c.b16 %v2855, %v2847
    %v3808 = vpack.c.b16 %v2856, %v2848
    %v3809 = vpack.c.b16 %v2857, %v2849
    %v3810 = vpack.c.b16 %v2858, %v2850
    %v3811 = vpack.c.b16 %v2859, %v2851
    %v3812 = vpack.c.b16 %v2860, %v2852
    %v3813 = vpack.c.b16 %v2861, %v2853
    %v3814 = vpack.c.b16 %v2870, %v2862
    %v3815 = vpack.c.b16 %v2871, %v2863
    %v3816 = vpack.c.b16 %v2872, %v2864
    %v3817 = vpack.c.b16 %v2873, %v2865
    %v3818 = vpack.c.b16 %v2874, %v2866
    %v3819 = vpack.c.b16 %v2875, %v2867
    %v3820 = vpack.c.b16 %v2876, %v2868
    %v3821 = vpack.c.b16 %v2877, %v2869
    %v3822 = vpack.c.b16 %v2886, %v2878
    %v3823 = vpack.c.b16 %v2887, %v2879
    %v3824 = vpack.c.b16 %v2888, %v2880
    %v3825 = vpack.c.b16 %v2889, %v2881
    %v3826 = vpack.c.b16 %v2890, %v2882
    %v3827 = vpack.c.b16 %v2891, %v2883
    %v3828 = vpack.c.b16 %v2892, %v2884
    %v3829 = vpack.c.b16 %v2893, %v2885
    %v3830 = vpack.c.b16 %v2902, %v2894
    %v3831 = vpack.c.b16 %v2903, %v2895
    %v3832 = vpack.c.b16 %v2904, %v2896
    %v3833 = vpack.c.b16 %v2905, %v2897
    %v3834 = vpack.c.b16 %v2906, %v2898
    %v3835 = vpack.c.b16 %v2907, %v2899
    %v3836 = vpack.c.b16 %v2908, %v2900
    %v3837 = vpack.c.b16 %v2909, %v2901
    %v3838 = vpack.c.b16 %v2918, %v2910
    %v3839 = vpack.c.b16 %v2919, %v2911
    %v3840 = vpack.c.b16 %v2920, %v2912
    %v3841 = vpack.c.b16 %v2921, %v2913
    %v3842 = vpack.c.b16 %v2922, %v2914
    %v3843 = vpack.c.b16 %v2923, %v2915
    %v3844 = vpack.c.b16 %v2924, %v2916
    %v3845 = vpack.c.b16 %v2925, %v2917
    %v3846 = vpack.c.b16 %v2934, %v2926
    %v3847 = vpack.c.b16 %v2935, %v2927
    %v3848 = vpack.c.b16 %v2936, %v2928
    %v3849 = vpack.c.b16 %v2937, %v2929
    %v3850 = vpack.c.b16 %v2938, %v2930
    %v3851 = vpack.c.b16 %v2939, %v2931
    %v3852 = vpack.c.b16 %v2940, %v2932
    %v3853 = vpack.c.b16 %v2941, %v2933
    %v3854 = vpack.c.b16 %v2950, %v2942
    %v3855 = vpack.c.b16 %v2951, %v2943
    %v3856 = vpack.c.b16 %v2952, %v2944
    %v3857 = vpack.c.b16 %v2953, %v2945
    %v3858 = vpack.c.b16 %v2954, %v2946
    %v3859 = vpack.c.b16 %v2955, %v2947
    %v3860 = vpack.c.b16 %v2956, %v2948
    %v3861 = vpack.c.b16 %v2957, %v2949
    %v3862 = vpack.c.b16 %v2966, %v2958
    %v3863 = vpack.c.b16 %v2967, %v2959
    %v3864 = vpack.c.b16 %v2968, %v2960
    %v3865 = vpack.c.b16 %v2969, %v2961
    %v3866 = vpack.c.b16 %v2970, %v2962
    %v3867 = vpack.c.b16 %v2971, %v2963
    %v3868 = vpack.c.b16 %v2972, %v2964
    %v3869 = vpack.c.b16 %v2973, %v2965
    %v3870 = vpack.c.b16 %v2982, %v2974
    %v3871 = vpack.c.b16 %v2983, %v2975
    %v3872 = vpack.c.b16 %v2984, %v2976
    %v3873 = vpack.c.b16 %v2985, %v2977
    %v3874 = vpack.c.b16 %v2986, %v2978
    %v3875 = vpack.c.b16 %v2987, %v2979
    %v3876 = vpack.c.b16 %v2988, %v2980
    %v3877 = vpack.c.b16 %v2989, %v2981
    %v3878 = vpack.c.b16 %v2998, %v2990
    %v3879 = vpack.c.b16 %v2999, %v2991
    %v3880 = vpack.c.b16 %v3000, %v2992
    %v3881 = vpack.c.b16 %v3001, %v2993
    %v3882 = vpack.c.b16 %v3002, %v2994
    %v3883 = vpack.c.b16 %v3003, %v2995
    %v3884 = vpack.c.b16 %v3004, %v2996
    %v3885 = vpack.c.b16 %v3005, %v2997
    %v3886 = vpack.c.b16 %v3014, %v3006
    %v3887 = vpack.c.b16 %v3015, %v3007
    %v3888 = vpack.c.b16 %v3016, %v3008
    %v3889 = vpack.c.b16 %v3017, %v3009
    %v3890 = vpack.c.b16 %v3018, %v3010
    %v3891 = vpack.c.b16 %v3019, %v3011
    %v3892 = vpack.c.b16 %v3020, %v3012
    %v3893 = vpack.c.b16 %v3021, %v3013
    %v3894 = vpack.c.b16 %v3030, %v3022
    %v3895 = vpack.c.b16 %v3031, %v3023
    %v3896 = vpack.c.b16 %v3032, %v3024
    %v3897 = vpack.c.b16 %v3033, %v3025
    %v3898 = vpack.c.b16 %v3034, %v3026
    %v3899 = vpack.c.b16 %v3035, %v3027
    %v3900 = vpack.c.b16 %v3036, %v3028
    %v3901 = vpack.c.b16 %v3037, %v3029
    %v3902 = vpack.c.b16 %v3046, %v3038
    %v3903 = vpack.c.b16 %v3047, %v3039
    %v3904 = vpack.c.b16 %v3048, %v3040
    %v3905 = vpack.c.b16 %v3049, %v3041
    %v3906 = vpack.c.b16 %v3050, %v3042
    %v3907 = vpack.c.b16 %v3051, %v3043
    %v3908 = vpack.c.b16 %v3052, %v3044
    %v3909 = vpack.c.b16 %v3053, %v3045
    %v3910 = vpack.c.b16 %v3062, %v3054
    %v3911 = vpack.c.b16 %v3063, %v3055
    %v3912 = vpack.c.b16 %v3064, %v3056
    %v3913 = vpack.c.b16 %v3065, %v3057
    %v3914 = vpack.c.b16 %v3066, %v3058
    %v3915 = vpack.c.b16 %v3067, %v3059
    %v3916 = vpack.c.b16 %v3068, %v3060
    %v3917 = vpack.c.b16 %v3069, %v3061
    %v3918 = vpack.c.b16 %v3078, %v3070
    %v3919 = vpack.c.b16 %v3079, %v3071
    %v3920 = vpack.c.b16 %v3080, %v3072
    %v3921 = vpack.c.b16 %v3081, %v3073
    %v3922 = vpack.c.b16 %v3082, %v3074
    %v3923 = vpack.c.b16 %v3083, %v3075
    %v3924 = vpack.c.b16 %v3084, %v3076
    %v3925 = vpack.c.b16 %v3085, %v3077
    %v3926 = vpack.c.b16 %v3094, %v3086
    %v3927 = vpack.c.b16 %v3095, %v3087
    %v3928 = vpack.c.b16 %v3096, %v3088
    %v3929 = vpack.c.b16 %v3097, %v3089
    %v3930 = vpack.c.b16 %v3098, %v3090
    %v3931 = vpack.c.b16 %v3099, %v3091
    %v3932 = vpack.c.b16 %v3100, %v3092
    %v3933 = vpack.c.b16 %v3101, %v3093
    %v3934 = vpack.c.b16 %v3110, %v3102
    %v3935 = vpack.c.b16 %v3111, %v3103
    %v3936 = vpack.c.b16 %v3112, %v3104
    %v3937 = vpack.c.b16 %v3113, %v3105
    %v3938 = vpack.c.b16 %v3114, %v3106
    %v3939 = vpack.c.b16 %v3115, %v3107
    %v3940 = vpack.c.b16 %v3116, %v3108
    %v3941 = vpack.c.b16 %v3117, %v3109
    %v3942 = vpack.c.b16 %v3126, %v3118
    %v3943 = vpack.c.b16 %v3127, %v3119
    %v3944 = vpack.c.b16 %v3128, %v3120
    %v3945 = vpack.c.b16 %v3129, %v3121
    %v3946 = vpack.c.b16 %v3130, %v3122
    %v3947 = vpack.c.b16 %v3131, %v3123
    %v3948 = vpack.c.b16 %v3132, %v3124
    %v3949 = vpack.c.b16 %v3133, %v3125
    %v3950 = vpack.c.b16 %v3142, %v3134
    %v3951 = vpack.c.b16 %v3143, %v3135
    %v3952 = vpack.c.b16 %v3144, %v3136
    %v3953 = vpack.c.b16 %v3145, %v3137
    %v3954 = vpack.c.b16 %v3146, %v3138
    %v3955 = vpack.c.b16 %v3147, %v3139
    %v3956 = vpack.c.b16 %v3148, %v3140
    %v3957 = vpack.c.b16 %v3149, %v3141
    %v3958 = vpack.c.b16 %v3158, %v3150
    %v3959 = vpack.c.b16 %v3159, %v3151
    %v3960 = vpack.c.b16 %v3160, %v3152
    %v3961 = vpack.c.b16 %v3161, %v3153
    %v3962 = vpack.c.b16 %v3162, %v3154
    %v3963 = vpack.c.b16 %v3163, %v3155
    %v3964 = vpack.c.b16 %v3164, %v3156
    %v3965 = vpack.c.b16 %v3165, %v3157
    %v3966 = vpack.c.b16 %v3174, %v3166
    %v3967 = vpack.c.b16 %v3175, %v3167
    %v3968 = vpack.c.b16 %v3176, %v3168
    %v3969 = vpack.c.b16 %v3177, %v3169
    %v3970 = vpack.c.b16 %v3178, %v3170
    %v3971 = vpack.c.b16 %v3179, %v3171
    %v3972 = vpack.c.b16 %v3180, %v3172
    %v3973 = vpack.c.b16 %v3181, %v3173
    %v3974 = vpack.c.b16 %v3190, %v3182
    %v3975 = vpack.c.b16 %v3191, %v3183
    %v3976 = vpack.c.b16 %v3192, %v3184
    %v3977 = vpack.c.b16 %v3193, %v3185
    %v3978 = vpack.c.b16 %v3194, %v3186
    %v3979 = vpack.c.b16 %v3195, %v3187
    %v3980 = vpack.c.b16 %v3196, %v3188
    %v3981 = vpack.c.b16 %v3197, %v3189
    %v3982 = vpack.c.b16 %v3206, %v3198
    %v3983 = vpack.c.b16 %v3207, %v3199
    %v3984 = vpack.c.b16 %v3208, %v3200
    %v3985 = vpack.c.b16 %v3209, %v3201
    %v3986 = vpack.c.b16 %v3210, %v3202
    %v3987 = vpack.c.b16 %v3211, %v3203
    %v3988 = vpack.c.b16 %v3212, %v3204
    %v3989 = vpack.c.b16 %v3213, %v3205
    %v3990 = vpack.c.b16 %v3222, %v3214
    %v3991 = vpack.c.b16 %v3223, %v3215
    %v3992 = vpack.c.b16 %v3224, %v3216
    %v3993 = vpack.c.b16 %v3225, %v3217
    %v3994 = vpack.c.b16 %v3226, %v3218
    %v3995 = vpack.c.b16 %v3227, %v3219
    %v3996 = vpack.c.b16 %v3228, %v3220
    %v3997 = vpack.c.b16 %v3229, %v3221
    %4766 = vmatprep.subr.bf16.mxu0 %v3231
    %4767 = vmatpush1.bf16.msra.mxu0 %v3230
    %4768 = vmatprep.subr.bf16.mxu0 %v3239
    %4769 = vmatpush1.bf16.msra.mxu0 %v3238
    %4770 = vmatprep.subr.bf16.mxu0 %v3247
    %4771 = vmatpush1.bf16.msra.mxu0 %v3246
    %4772 = vmatprep.subr.bf16.mxu0 %v3255
    %4773 = vmatpush1.bf16.msra.mxu0 %v3254
    %4774 = vmatprep.subr.bf16.mxu0 %v3263
    %4775 = vmatpush1.bf16.msra.mxu0 %v3262
    %4776 = vmatprep.subr.bf16.mxu0 %v3271
    %4777 = vmatpush1.bf16.msra.mxu0 %v3270
    %4778 = vmatprep.subr.bf16.mxu0 %v3279
    %4779 = vmatpush1.bf16.msra.mxu0 %v3278
    %4780 = vmatprep.subr.bf16.mxu0 %v3287
    %4781 = vmatpush1.bf16.msra.mxu0 %v3286
    %4782 = vmatprep.subr.bf16.mxu0 %v3295
    %4783 = vmatpush1.bf16.msra.mxu0 %v3294
    %4784 = vmatprep.subr.bf16.mxu0 %v3303
    %4785 = vmatpush1.bf16.msra.mxu0 %v3302
    %4786 = vmatprep.subr.bf16.mxu0 %v3311
    %4787 = vmatpush1.bf16.msra.mxu0 %v3310
    %4788 = vmatprep.subr.bf16.mxu0 %v3319
    %4789 = vmatpush1.bf16.msra.mxu0 %v3318
    %4790 = vmatprep.subr.bf16.mxu0 %v3327
    %4791 = vmatpush1.bf16.msra.mxu0 %v3326
    %4792 = vmatprep.subr.bf16.mxu0 %v3335
    %4793 = vmatpush1.bf16.msra.mxu0 %v3334
    %4794 = vmatprep.subr.bf16.mxu0 %v3343
    %4795 = vmatpush1.bf16.msra.mxu0 %v3342
    %4796 = vmatprep.subr.bf16.mxu0 %v3351
    %4797 = vmatpush1.bf16.msra.mxu0 %v3350
    %4798 = vmatprep.mubr.bf16.mxu0 %v903
    %4799 = vmatmul.mubr.bf16.gmra.mrb[0].mxu0 %v902
    %v4800 = vpop.f32.mrb[0].mxu0
    %v4801 = vadd.f32 0.0, %v4800
    %v4802 = vpop.f32.mrb[0].mxu0
    %v4803 = vadd.f32 0.0, %v4802
    %v4804 = vpop.f32.mrb[0].mxu0
    %v4805 = vadd.f32 0.0, %v4804
    %v4806 = vpop.f32.mrb[0].mxu0
    %v4807 = vadd.f32 0.0, %v4806
    %4808 = vdwg.mxu0
    %4809 = vmatprep.subr.bf16.mxu0 %v3359
    %4810 = vmatpush1.bf16.msra.mxu0 %v3358
    %4811 = vmatprep.subr.bf16.mxu0 %v3367
    %4812 = vmatpush1.bf16.msra.mxu0 %v3366
    %4813 = vmatprep.subr.bf16.mxu0 %v3375
    %4814 = vmatpush1.bf16.msra.mxu0 %v3374
    %4815 = vmatprep.subr.bf16.mxu0 %v3383
    %4816 = vmatpush1.bf16.msra.mxu0 %v3382
    %4817 = vmatprep.subr.bf16.mxu0 %v3391
    %4818 = vmatpush1.bf16.msra.mxu0 %v3390
    %4819 = vmatprep.subr.bf16.mxu0 %v3399
    %4820 = vmatpush1.bf16.msra.mxu0 %v3398
    %4821 = vmatprep.subr.bf16.mxu0 %v3407
    %4822 = vmatpush1.bf16.msra.mxu0 %v3406
    %4823 = vmatprep.subr.bf16.mxu0 %v3415
    %4824 = vmatpush1.bf16.msra.mxu0 %v3414
    %4825 = vmatprep.subr.bf16.mxu0 %v3423
    %4826 = vmatpush1.bf16.msra.mxu0 %v3422
    %4827 = vmatprep.subr.bf16.mxu0 %v3431
    %4828 = vmatpush1.bf16.msra.mxu0 %v3430
    %4829 = vmatprep.subr.bf16.mxu0 %v3439
    %4830 = vmatpush1.bf16.msra.mxu0 %v3438
    %4831 = vmatprep.subr.bf16.mxu0 %v3447
    %4832 = vmatpush1.bf16.msra.mxu0 %v3446
    %4833 = vmatprep.subr.bf16.mxu0 %v3455
    %4834 = vmatpush1.bf16.msra.mxu0 %v3454
    %4835 = vmatprep.subr.bf16.mxu0 %v3463
    %4836 = vmatpush1.bf16.msra.mxu0 %v3462
    %4837 = vmatprep.subr.bf16.mxu0 %v3471
    %4838 = vmatpush1.bf16.msra.mxu0 %v3470
    %4839 = vmatprep.subr.bf16.mxu0 %v3479
    %4840 = vmatpush1.bf16.msra.mxu0 %v3478
    %4841 = vmatprep.mubr.bf16.mxu0 %v905
    %4842 = vmatmul.mubr.bf16.gmra.mrb[0].mxu0 %v904
    %v4843 = vpop.f32.mrb[0].mxu0
    %v4844 = vadd.f32 %v4801, %v4843
    %v4845 = vpop.f32.mrb[0].mxu0
    %v4846 = vadd.f32 %v4803, %v4845
    %v4847 = vpop.f32.mrb[0].mxu0
    %v4848 = vadd.f32 %v4805, %v4847
    %v4849 = vpop.f32.mrb[0].mxu0
    %v4850 = vadd.f32 %v4807, %v4849
    %4851 = vdwg.mxu0
    %4852 = vmatprep.subr.bf16.mxu0 %v3487
    %4853 = vmatpush1.bf16.msra.mxu0 %v3486
    %4854 = vmatprep.subr.bf16.mxu0 %v3495
    %4855 = vmatpush1.bf16.msra.mxu0 %v3494
    %4856 = vmatprep.subr.bf16.mxu0 %v3503
    %4857 = vmatpush1.bf16.msra.mxu0 %v3502
    %4858 = vmatprep.subr.bf16.mxu0 %v3511
    %4859 = vmatpush1.bf16.msra.mxu0 %v3510
    %4860 = vmatprep.subr.bf16.mxu0 %v3519
    %4861 = vmatpush1.bf16.msra.mxu0 %v3518
    %4862 = vmatprep.subr.bf16.mxu0 %v3527
    %4863 = vmatpush1.bf16.msra.mxu0 %v3526
    %4864 = vmatprep.subr.bf16.mxu0 %v3535
    %4865 = vmatpush1.bf16.msra.mxu0 %v3534
    %4866 = vmatprep.subr.bf16.mxu0 %v3543
    %4867 = vmatpush1.bf16.msra.mxu0 %v3542
    %4868 = vmatprep.subr.bf16.mxu0 %v3551
    %4869 = vmatpush1.bf16.msra.mxu0 %v3550
    %4870 = vmatprep.subr.bf16.mxu0 %v3559
    %4871 = vmatpush1.bf16.msra.mxu0 %v3558
    %4872 = vmatprep.subr.bf16.mxu0 %v3567
    %4873 = vmatpush1.bf16.msra.mxu0 %v3566
    %4874 = vmatprep.subr.bf16.mxu0 %v3575
    %4875 = vmatpush1.bf16.msra.mxu0 %v3574
    %4876 = vmatprep.subr.bf16.mxu0 %v3583
    %4877 = vmatpush1.bf16.msra.mxu0 %v3582
    %4878 = vmatprep.subr.bf16.mxu0 %v3591
    %4879 = vmatpush1.bf16.msra.mxu0 %v3590
    %4880 = vmatprep.subr.bf16.mxu0 %v3599
    %4881 = vmatpush1.bf16.msra.mxu0 %v3598
    %4882 = vmatprep.subr.bf16.mxu0 %v3607
    %4883 = vmatpush1.bf16.msra.mxu0 %v3606
    %4884 = vmatprep.mubr.bf16.mxu0 %v907
    %4885 = vmatmul.mubr.bf16.gmra.mrb[0].mxu0 %v906
    %v4886 = vpop.f32.mrb[0].mxu0
    %v4887 = vadd.f32 %v4844, %v4886
    %v4888 = vpop.f32.mrb[0].mxu0
    %v4889 = vadd.f32 %v4846, %v4888
    %v4890 = vpop.f32.mrb[0].mxu0
    %v4891 = vadd.f32 %v4848, %v4890
    %v4892 = vpop.f32.mrb[0].mxu0
    %v4893 = vadd.f32 %v4850, %v4892
    %4894 = vdwg.mxu0
    %4895 = vmatprep.subr.bf16.mxu0 %v3615
    %4896 = vmatpush1.bf16.msra.mxu0 %v3614
    %4897 = vmatprep.subr.bf16.mxu0 %v3623
    %4898 = vmatpush1.bf16.msra.mxu0 %v3622
    %4899 = vmatprep.subr.bf16.mxu0 %v3631
    %4900 = vmatpush1.bf16.msra.mxu0 %v3630
    %4901 = vmatprep.subr.bf16.mxu0 %v3639
    %4902 = vmatpush1.bf16.msra.mxu0 %v3638
    %4903 = vmatprep.subr.bf16.mxu0 %v3647
    %4904 = vmatpush1.bf16.msra.mxu0 %v3646
    %4905 = vmatprep.subr.bf16.mxu0 %v3655
    %4906 = vmatpush1.bf16.msra.mxu0 %v3654
    %4907 = vmatprep.subr.bf16.mxu0 %v3663
    %4908 = vmatpush1.bf16.msra.mxu0 %v3662
    %4909 = vmatprep.subr.bf16.mxu0 %v3671
    %4910 = vmatpush1.bf16.msra.mxu0 %v3670
    %4911 = vmatprep.subr.bf16.mxu0 %v3679
    %4912 = vmatpush1.bf16.msra.mxu0 %v3678
    %4913 = vmatprep.subr.bf16.mxu0 %v3687
    %4914 = vmatpush1.bf16.msra.mxu0 %v3686
    %4915 = vmatprep.subr.bf16.mxu0 %v3695
    %4916 = vmatpush1.bf16.msra.mxu0 %v3694
    %4917 = vmatprep.subr.bf16.mxu0 %v3703
    %4918 = vmatpush1.bf16.msra.mxu0 %v3702
    %4919 = vmatprep.subr.bf16.mxu0 %v3711
    %4920 = vmatpush1.bf16.msra.mxu0 %v3710
    %4921 = vmatprep.subr.bf16.mxu0 %v3719
    %4922 = vmatpush1.bf16.msra.mxu0 %v3718
    %4923 = vmatprep.subr.bf16.mxu0 %v3727
    %4924 = vmatpush1.bf16.msra.mxu0 %v3726
    %4925 = vmatprep.subr.bf16.mxu0 %v3735
    %4926 = vmatpush1.bf16.msra.mxu0 %v3734
    %4927 = vmatprep.mubr.bf16.mxu0 %v909
    %4928 = vmatmul.mubr.bf16.gmra.mrb[0].mxu0 %v908
    %v4929 = vpop.f32.mrb[0].mxu0
    %v4930 = vadd.f32 %v4887, %v4929
    %v4931 = vpop.f32.mrb[0].mxu0
    %v4932 = vadd.f32 %v4889, %v4931
    %v4933 = vpop.f32.mrb[0].mxu0
    %v4934 = vadd.f32 %v4891, %v4933
    %v4935 = vpop.f32.mrb[0].mxu0
    %v4936 = vadd.f32 %v4893, %v4935
    %4937 = vdwg.mxu0
    %4938 = vmatprep.subr.bf16.mxu0 %v3743
    %4939 = vmatpush1.bf16.msra.mxu0 %v3742
    %4940 = vmatprep.subr.bf16.mxu0 %v3751
    %4941 = vmatpush1.bf16.msra.mxu0 %v3750
    %4942 = vmatprep.subr.bf16.mxu0 %v3759
    %4943 = vmatpush1.bf16.msra.mxu0 %v3758
    %4944 = vmatprep.subr.bf16.mxu0 %v3767
    %4945 = vmatpush1.bf16.msra.mxu0 %v3766
    %4946 = vmatprep.subr.bf16.mxu0 %v3775
    %4947 = vmatpush1.bf16.msra.mxu0 %v3774
    %4948 = vmatprep.subr.bf16.mxu0 %v3783
    %4949 = vmatpush1.bf16.msra.mxu0 %v3782
    %4950 = vmatprep.subr.bf16.mxu0 %v3791
    %4951 = vmatpush1.bf16.msra.mxu0 %v3790
    %4952 = vmatprep.subr.bf16.mxu0 %v3799
    %4953 = vmatpush1.bf16.msra.mxu0 %v3798
    %4954 = vmatprep.subr.bf16.mxu0 %v3807
    %4955 = vmatpush1.bf16.msra.mxu0 %v3806
    %4956 = vmatprep.subr.bf16.mxu0 %v3815
    %4957 = vmatpush1.bf16.msra.mxu0 %v3814
    %4958 = vmatprep.subr.bf16.mxu0 %v3823
    %4959 = vmatpush1.bf16.msra.mxu0 %v3822
    %4960 = vmatprep.subr.bf16.mxu0 %v3831
    %4961 = vmatpush1.bf16.msra.mxu0 %v3830
    %4962 = vmatprep.subr.bf16.mxu0 %v3839
    %4963 = vmatpush1.bf16.msra.mxu0 %v3838
    %4964 = vmatprep.subr.bf16.mxu0 %v3847
    %4965 = vmatpush1.bf16.msra.mxu0 %v3846
    %4966 = vmatprep.subr.bf16.mxu0 %v3855
    %4967 = vmatpush1.bf16.msra.mxu0 %v3854
    %4968 = vmatprep.subr.bf16.mxu0 %v3863
    %4969 = vmatpush1.bf16.msra.mxu0 %v3862
    %4970 = vmatprep.mubr.bf16.mxu0 %v911
    %4971 = vmatmul.mubr.bf16.gmra.mrb[0].mxu0 %v910
    %v4972 = vpop.f32.mrb[0].mxu0
    %v4973 = vadd.f32 %v4930, %v4972
    %v4974 = vpop.f32.mrb[0].mxu0
    %v4975 = vadd.f32 %v4932, %v4974
    %v4976 = vpop.f32.mrb[0].mxu0
    %v4977 = vadd.f32 %v4934, %v4976
    %v4978 = vpop.f32.mrb[0].mxu0
    %v4979 = vadd.f32 %v4936, %v4978
    %4980 = vdwg.mxu0
    %4981 = vmatprep.subr.bf16.mxu0 %v3871
    %4982 = vmatpush1.bf16.msra.mxu0 %v3870
    %4983 = vmatprep.subr.bf16.mxu0 %v3879
    %4984 = vmatpush1.bf16.msra.mxu0 %v3878
    %4985 = vmatprep.subr.bf16.mxu0 %v3887
    %4986 = vmatpush1.bf16.msra.mxu0 %v3886
    %4987 = vmatprep.subr.bf16.mxu0 %v3895
    %4988 = vmatpush1.bf16.msra.mxu0 %v3894
    %4989 = vmatprep.subr.bf16.mxu0 %v3903
    %4990 = vmatpush1.bf16.msra.mxu0 %v3902
    %4991 = vmatprep.subr.bf16.mxu0 %v3911
    %4992 = vmatpush1.bf16.msra.mxu0 %v3910
    %4993 = vmatprep.subr.bf16.mxu0 %v3919
    %4994 = vmatpush1.bf16.msra.mxu0 %v3918
    %4995 = vmatprep.subr.bf16.mxu0 %v3927
    %4996 = vmatpush1.bf16.msra.mxu0 %v3926
    %4997 = vmatprep.subr.bf16.mxu0 %v3935
    %4998 = vmatpush1.bf16.msra.mxu0 %v3934
    %4999 = vmatprep.subr.bf16.mxu0 %v3943
    %5000 = vmatpush1.bf16.msra.mxu0 %v3942
    %5001 = vmatprep.subr.bf16.mxu0 %v3951
    %5002 = vmatpush1.bf16.msra.mxu0 %v3950
    %5003 = vmatprep.subr.bf16.mxu0 %v3959
    %5004 = vmatpush1.bf16.msra.mxu0 %v3958
    %5005 = vmatprep.subr.bf16.mxu0 %v3967
    %5006 = vmatpush1.bf16.msra.mxu0 %v3966
    %5007 = vmatprep.subr.bf16.mxu0 %v3975
    %5008 = vmatpush1.bf16.msra.mxu0 %v3974
    %5009 = vmatprep.subr.bf16.mxu0 %v3983
    %5010 = vmatpush1.bf16.msra.mxu0 %v3982
    %5011 = vmatprep.subr.bf16.mxu0 %v3991
    %5012 = vmatpush1.bf16.msra.mxu0 %v3990
    %5013 = vmatprep.mubr.bf16.mxu0 %v913
    %5014 = vmatmul.mubr.bf16.gmra.mrb[0].mxu0 %v912
    %v5015 = vpop.f32.mrb[0].mxu0
    %v5016 = vadd.f32 %v4973, %v5015
    %v5017 = vpop.f32.mrb[0].mxu0
    %v5018 = vadd.f32 %v4975, %v5017
    %v5019 = vpop.f32.mrb[0].mxu0
    %v5020 = vadd.f32 %v4977, %v5019
    %v5021 = vpop.f32.mrb[0].mxu0
    %v5022 = vadd.f32 %v4979, %v5021
    %5023 = vdwg.mxu0
    %5024 = vmatprep.subr.bf16.mxu0 %v3233
    %5025 = vmatpush1.bf16.msra.mxu0 %v3232
    %5026 = vmatprep.subr.bf16.mxu0 %v3241
    %5027 = vmatpush1.bf16.msra.mxu0 %v3240
    %5028 = vmatprep.subr.bf16.mxu0 %v3249
    %5029 = vmatpush1.bf16.msra.mxu0 %v3248
    %5030 = vmatprep.subr.bf16.mxu0 %v3257
    %5031 = vmatpush1.bf16.msra.mxu0 %v3256
    %5032 = vmatprep.subr.bf16.mxu0 %v3265
    %5033 = vmatpush1.bf16.msra.mxu0 %v3264
    %5034 = vmatprep.subr.bf16.mxu0 %v3273
    %5035 = vmatpush1.bf16.msra.mxu0 %v3272
    %5036 = vmatprep.subr.bf16.mxu0 %v3281
    %5037 = vmatpush1.bf16.msra.mxu0 %v3280
    %5038 = vmatprep.subr.bf16.mxu0 %v3289
    %5039 = vmatpush1.bf16.msra.mxu0 %v3288
    %5040 = vmatprep.subr.bf16.mxu0 %v3297
    %5041 = vmatpush1.bf16.msra.mxu0 %v3296
    %5042 = vmatprep.subr.bf16.mxu0 %v3305
    %5043 = vmatpush1.bf16.msra.mxu0 %v3304
    %5044 = vmatprep.subr.bf16.mxu0 %v3313
    %5045 = vmatpush1.bf16.msra.mxu0 %v3312
    %5046 = vmatprep.subr.bf16.mxu0 %v3321
    %5047 = vmatpush1.bf16.msra.mxu0 %v3320
    %5048 = vmatprep.subr.bf16.mxu0 %v3329
    %5049 = vmatpush1.bf16.msra.mxu0 %v3328
    %5050 = vmatprep.subr.bf16.mxu0 %v3337
    %5051 = vmatpush1.bf16.msra.mxu0 %v3336
    %5052 = vmatprep.subr.bf16.mxu0 %v3345
    %5053 = vmatpush1.bf16.msra.mxu0 %v3344
    %5054 = vmatprep.subr.bf16.mxu0 %v3353
    %5055 = vmatpush1.bf16.msra.mxu0 %v3352
    %5056 = vmatprep.mubr.bf16.mxu0 %v903
    %5057 = vmatmul.mubr.bf16.gmra.mrb[0].mxu0 %v902
    %v5058 = vpop.f32.mrb[0].mxu0
    %v5059 = vadd.f32 0.0, %v5058
    %v5060 = vpop.f32.mrb[0].mxu0
    %v5061 = vadd.f32 0.0, %v5060
    %v5062 = vpop.f32.mrb[0].mxu0
    %v5063 = vadd.f32 0.0, %v5062
    %v5064 = vpop.f32.mrb[0].mxu0
    %v5065 = vadd.f32 0.0, %v5064
    %5066 = vdwg.mxu0
    %5067 = vmatprep.subr.bf16.mxu0 %v3361
    %5068 = vmatpush1.bf16.msra.mxu0 %v3360
    %5069 = vmatprep.subr.bf16.mxu0 %v3369
    %5070 = vmatpush1.bf16.msra.mxu0 %v3368
    %5071 = vmatprep.subr.bf16.mxu0 %v3377
    %5072 = vmatpush1.bf16.msra.mxu0 %v3376
    %5073 = vmatprep.subr.bf16.mxu0 %v3385
    %5074 = vmatpush1.bf16.msra.mxu0 %v3384
    %5075 = vmatprep.subr.bf16.mxu0 %v3393
    %5076 = vmatpush1.bf16.msra.mxu0 %v3392
    %5077 = vmatprep.subr.bf16.mxu0 %v3401
    %5078 = vmatpush1.bf16.msra.mxu0 %v3400
    %5079 = vmatprep.subr.bf16.mxu0 %v3409
    %5080 = vmatpush1.bf16.msra.mxu0 %v3408
    %5081 = vmatprep.subr.bf16.mxu0 %v3417
    %5082 = vmatpush1.bf16.msra.mxu0 %v3416
    %5083 = vmatprep.subr.bf16.mxu0 %v3425
    %5084 = vmatpush1.bf16.msra.mxu0 %v3424
    %5085 = vmatprep.subr.bf16.mxu0 %v3433
    %5086 = vmatpush1.bf16.msra.mxu0 %v3432
    %5087 = vmatprep.subr.bf16.mxu0 %v3441
    %5088 = vmatpush1.bf16.msra.mxu0 %v3440
    %5089 = vmatprep.subr.bf16.mxu0 %v3449
    %5090 = vmatpush1.bf16.msra.mxu0 %v3448
    %5091 = vmatprep.subr.bf16.mxu0 %v3457
    %5092 = vmatpush1.bf16.msra.mxu0 %v3456
    %5093 = vmatprep.subr.bf16.mxu0 %v3465
    %5094 = vmatpush1.bf16.msra.mxu0 %v3464
    %5095 = vmatprep.subr.bf16.mxu0 %v3473
    %5096 = vmatpush1.bf16.msra.mxu0 %v3472
    %5097 = vmatprep.subr.bf16.mxu0 %v3481
    %5098 = vmatpush1.bf16.msra.mxu0 %v3480
    %5099 = vmatprep.mubr.bf16.mxu0 %v905
    %5100 = vmatmul.mubr.bf16.gmra.mrb[0].mxu0 %v904
    %v5101 = vpop.f32.mrb[0].mxu0
    %v5102 = vadd.f32 %v5059, %v5101
    %v5103 = vpop.f32.mrb[0].mxu0
    %v5104 = vadd.f32 %v5061, %v5103
    %v5105 = vpop.f32.mrb[0].mxu0
    %v5106 = vadd.f32 %v5063, %v5105
    %v5107 = vpop.f32.mrb[0].mxu0
    %v5108 = vadd.f32 %v5065, %v5107
    %5109 = vdwg.mxu0
    %5110 = vmatprep.subr.bf16.mxu0 %v3489
    %5111 = vmatpush1.bf16.msra.mxu0 %v3488
    %5112 = vmatprep.subr.bf16.mxu0 %v3497
    %5113 = vmatpush1.bf16.msra.mxu0 %v3496
    %5114 = vmatprep.subr.bf16.mxu0 %v3505
    %5115 = vmatpush1.bf16.msra.mxu0 %v3504
    %5116 = vmatprep.subr.bf16.mxu0 %v3513
    %5117 = vmatpush1.bf16.msra.mxu0 %v3512
    %5118 = vmatprep.subr.bf16.mxu0 %v3521
    %5119 = vmatpush1.bf16.msra.mxu0 %v3520
    %5120 = vmatprep.subr.bf16.mxu0 %v3529
    %5121 = vmatpush1.bf16.msra.mxu0 %v3528
    %5122 = vmatprep.subr.bf16.mxu0 %v3537
    %5123 = vmatpush1.bf16.msra.mxu0 %v3536
    %5124 = vmatprep.subr.bf16.mxu0 %v3545
    %5125 = vmatpush1.bf16.msra.mxu0 %v3544
    %5126 = vmatprep.subr.bf16.mxu0 %v3553
    %5127 = vmatpush1.bf16.msra.mxu0 %v3552
    %5128 = vmatprep.subr.bf16.mxu0 %v3561
    %5129 = vmatpush1.bf16.msra.mxu0 %v3560
    %5130 = vmatprep.subr.bf16.mxu0 %v3569
    %5131 = vmatpush1.bf16.msra.mxu0 %v3568
    %5132 = vmatprep.subr.bf16.mxu0 %v3577
    %5133 = vmatpush1.bf16.msra.mxu0 %v3576
    %5134 = vmatprep.subr.bf16.mxu0 %v3585
    %5135 = vmatpush1.bf16.msra.mxu0 %v3584
    %5136 = vmatprep.subr.bf16.mxu0 %v3593
    %5137 = vmatpush1.bf16.msra.mxu0 %v3592
    %5138 = vmatprep.subr.bf16.mxu0 %v3601
    %5139 = vmatpush1.bf16.msra.mxu0 %v3600
    %5140 = vmatprep.subr.bf16.mxu0 %v3609
    %5141 = vmatpush1.bf16.msra.mxu0 %v3608
    %5142 = vmatprep.mubr.bf16.mxu0 %v907
    %5143 = vmatmul.mubr.bf16.gmra.mrb[0].mxu0 %v906
    %v5144 = vpop.f32.mrb[0].mxu0
    %v5145 = vadd.f32 %v5102, %v5144
    %v5146 = vpop.f32.mrb[0].mxu0
    %v5147 = vadd.f32 %v5104, %v5146
    %v5148 = vpop.f32.mrb[0].mxu0
    %v5149 = vadd.f32 %v5106, %v5148
    %v5150 = vpop.f32.mrb[0].mxu0
    %v5151 = vadd.f32 %v5108, %v5150
    %5152 = vdwg.mxu0
    %5153 = vmatprep.subr.bf16.mxu0 %v3617
    %5154 = vmatpush1.bf16.msra.mxu0 %v3616
    %5155 = vmatprep.subr.bf16.mxu0 %v3625
    %5156 = vmatpush1.bf16.msra.mxu0 %v3624
    %5157 = vmatprep.subr.bf16.mxu0 %v3633
    %5158 = vmatpush1.bf16.msra.mxu0 %v3632
    %5159 = vmatprep.subr.bf16.mxu0 %v3641
    %5160 = vmatpush1.bf16.msra.mxu0 %v3640
    %5161 = vmatprep.subr.bf16.mxu0 %v3649
    %5162 = vmatpush1.bf16.msra.mxu0 %v3648
    %5163 = vmatprep.subr.bf16.mxu0 %v3657
    %5164 = vmatpush1.bf16.msra.mxu0 %v3656
    %5165 = vmatprep.subr.bf16.mxu0 %v3665
    %5166 = vmatpush1.bf16.msra.mxu0 %v3664
    %5167 = vmatprep.subr.bf16.mxu0 %v3673
    %5168 = vmatpush1.bf16.msra.mxu0 %v3672
    %5169 = vmatprep.subr.bf16.mxu0 %v3681
    %5170 = vmatpush1.bf16.msra.mxu0 %v3680
    %5171 = vmatprep.subr.bf16.mxu0 %v3689
    %5172 = vmatpush1.bf16.msra.mxu0 %v3688
    %5173 = vmatprep.subr.bf16.mxu0 %v3697
    %5174 = vmatpush1.bf16.msra.mxu0 %v3696
    %5175 = vmatprep.subr.bf16.mxu0 %v3705
    %5176 = vmatpush1.bf16.msra.mxu0 %v3704
    %5177 = vmatprep.subr.bf16.mxu0 %v3713
    %5178 = vmatpush1.bf16.msra.mxu0 %v3712
    %5179 = vmatprep.subr.bf16.mxu0 %v3721
    %5180 = vmatpush1.bf16.msra.mxu0 %v3720
    %5181 = vmatprep.subr.bf16.mxu0 %v3729
    %5182 = vmatpush1.bf16.msra.mxu0 %v3728
    %5183 = vmatprep.subr.bf16.mxu0 %v3737
    %5184 = vmatpush1.bf16.msra.mxu0 %v3736
    %5185 = vmatprep.mubr.bf16.mxu0 %v909
    %5186 = vmatmul.mubr.bf16.gmra.mrb[0].mxu0 %v908
    %v5187 = vpop.f32.mrb[0].mxu0
    %v5188 = vadd.f32 %v5145, %v5187
    %v5189 = vpop.f32.mrb[0].mxu0
    %v5190 = vadd.f32 %v5147, %v5189
    %v5191 = vpop.f32.mrb[0].mxu0
    %v5192 = vadd.f32 %v5149, %v5191
    %v5193 = vpop.f32.mrb[0].mxu0
    %v5194 = vadd.f32 %v5151, %v5193
    %5195 = vdwg.mxu0
    %5196 = vmatprep.subr.bf16.mxu0 %v3745
    %5197 = vmatpush1.bf16.msra.mxu0 %v3744
    %5198 = vmatprep.subr.bf16.mxu0 %v3753
    %5199 = vmatpush1.bf16.msra.mxu0 %v3752
    %5200 = vmatprep.subr.bf16.mxu0 %v3761
    %5201 = vmatpush1.bf16.msra.mxu0 %v3760
    %5202 = vmatprep.subr.bf16.mxu0 %v3769
    %5203 = vmatpush1.bf16.msra.mxu0 %v3768
    %5204 = vmatprep.subr.bf16.mxu0 %v3777
    %5205 = vmatpush1.bf16.msra.mxu0 %v3776
    %5206 = vmatprep.subr.bf16.mxu0 %v3785
    %5207 = vmatpush1.bf16.msra.mxu0 %v3784
    %5208 = vmatprep.subr.bf16.mxu0 %v3793
    %5209 = vmatpush1.bf16.msra.mxu0 %v3792
    %5210 = vmatprep.subr.bf16.mxu0 %v3801
    %5211 = vmatpush1.bf16.msra.mxu0 %v3800
    %5212 = vmatprep.subr.bf16.mxu0 %v3809
    %5213 = vmatpush1.bf16.msra.mxu0 %v3808
    %5214 = vmatprep.subr.bf16.mxu0 %v3817
    %5215 = vmatpush1.bf16.msra.mxu0 %v3816
    %5216 = vmatprep.subr.bf16.mxu0 %v3825
    %5217 = vmatpush1.bf16.msra.mxu0 %v3824
    %5218 = vmatprep.subr.bf16.mxu0 %v3833
    %5219 = vmatpush1.bf16.msra.mxu0 %v3832
    %5220 = vmatprep.subr.bf16.mxu0 %v3841
    %5221 = vmatpush1.bf16.msra.mxu0 %v3840
    %5222 = vmatprep.subr.bf16.mxu0 %v3849
    %5223 = vmatpush1.bf16.msra.mxu0 %v3848
    %5224 = vmatprep.subr.bf16.mxu0 %v3857
    %5225 = vmatpush1.bf16.msra.mxu0 %v3856
    %5226 = vmatprep.subr.bf16.mxu0 %v3865
    %5227 = vmatpush1.bf16.msra.mxu0 %v3864
    %5228 = vmatprep.mubr.bf16.mxu0 %v911
    %5229 = vmatmul.mubr.bf16.gmra.mrb[0].mxu0 %v910
    %v5230 = vpop.f32.mrb[0].mxu0
    %v5231 = vadd.f32 %v5188, %v5230
    %v5232 = vpop.f32.mrb[0].mxu0
    %v5233 = vadd.f32 %v5190, %v5232
    %v5234 = vpop.f32.mrb[0].mxu0
    %v5235 = vadd.f32 %v5192, %v5234
    %v5236 = vpop.f32.mrb[0].mxu0
    %v5237 = vadd.f32 %v5194, %v5236
    %5238 = vdwg.mxu0
    %5239 = vmatprep.subr.bf16.mxu0 %v3873
    %5240 = vmatpush1.bf16.msra.mxu0 %v3872
    %5241 = vmatprep.subr.bf16.mxu0 %v3881
    %5242 = vmatpush1.bf16.msra.mxu0 %v3880
    %5243 = vmatprep.subr.bf16.mxu0 %v3889
    %5244 = vmatpush1.bf16.msra.mxu0 %v3888
    %5245 = vmatprep.subr.bf16.mxu0 %v3897
    %5246 = vmatpush1.bf16.msra.mxu0 %v3896
    %5247 = vmatprep.subr.bf16.mxu0 %v3905
    %5248 = vmatpush1.bf16.msra.mxu0 %v3904
    %5249 = vmatprep.subr.bf16.mxu0 %v3913
    %5250 = vmatpush1.bf16.msra.mxu0 %v3912
    %5251 = vmatprep.subr.bf16.mxu0 %v3921
    %5252 = vmatpush1.bf16.msra.mxu0 %v3920
    %5253 = vmatprep.subr.bf16.mxu0 %v3929
    %5254 = vmatpush1.bf16.msra.mxu0 %v3928
    %5255 = vmatprep.subr.bf16.mxu0 %v3937
    %5256 = vmatpush1.bf16.msra.mxu0 %v3936
    %5257 = vmatprep.subr.bf16.mxu0 %v3945
    %5258 = vmatpush1.bf16.msra.mxu0 %v3944
    %5259 = vmatprep.subr.bf16.mxu0 %v3953
    %5260 = vmatpush1.bf16.msra.mxu0 %v3952
    %5261 = vmatprep.subr.bf16.mxu0 %v3961
    %5262 = vmatpush1.bf16.msra.mxu0 %v3960
    %5263 = vmatprep.subr.bf16.mxu0 %v3969
    %5264 = vmatpush1.bf16.msra.mxu0 %v3968
    %5265 = vmatprep.subr.bf16.mxu0 %v3977
    %5266 = vmatpush1.bf16.msra.mxu0 %v3976
    %5267 = vmatprep.subr.bf16.mxu0 %v3985
    %5268 = vmatpush1.bf16.msra.mxu0 %v3984
    %5269 = vmatprep.subr.bf16.mxu0 %v3993
    %5270 = vmatpush1.bf16.msra.mxu0 %v3992
    %5271 = vmatprep.mubr.bf16.mxu0 %v913
    %5272 = vmatmul.mubr.bf16.gmra.mrb[0].mxu0 %v912
    %v5273 = vpop.f32.mrb[0].mxu0
    %v5274 = vadd.f32 %v5231, %v5273
    %v5275 = vpop.f32.mrb[0].mxu0
    %v5276 = vadd.f32 %v5233, %v5275
    %v5277 = vpop.f32.mrb[0].mxu0
    %v5278 = vadd.f32 %v5235, %v5277
    %v5279 = vpop.f32.mrb[0].mxu0
    %v5280 = vadd.f32 %v5237, %v5279
    %5281 = vdwg.mxu0
    %5282 = vmatprep.subr.bf16.mxu0 %v3235
    %5283 = vmatpush1.bf16.msra.mxu0 %v3234
    %5284 = vmatprep.subr.bf16.mxu0 %v3243
    %5285 = vmatpush1.bf16.msra.mxu0 %v3242
    %5286 = vmatprep.subr.bf16.mxu0 %v3251
    %5287 = vmatpush1.bf16.msra.mxu0 %v3250
    %5288 = vmatprep.subr.bf16.mxu0 %v3259
    %5289 = vmatpush1.bf16.msra.mxu0 %v3258
    %5290 = vmatprep.subr.bf16.mxu0 %v3267
    %5291 = vmatpush1.bf16.msra.mxu0 %v3266
    %5292 = vmatprep.subr.bf16.mxu0 %v3275
    %5293 = vmatpush1.bf16.msra.mxu0 %v3274
    %5294 = vmatprep.subr.bf16.mxu0 %v3283
    %5295 = vmatpush1.bf16.msra.mxu0 %v3282
    %5296 = vmatprep.subr.bf16.mxu0 %v3291
    %5297 = vmatpush1.bf16.msra.mxu0 %v3290
    %5298 = vmatprep.subr.bf16.mxu0 %v3299
    %5299 = vmatpush1.bf16.msra.mxu0 %v3298
    %5300 = vmatprep.subr.bf16.mxu0 %v3307
    %5301 = vmatpush1.bf16.msra.mxu0 %v3306
    %5302 = vmatprep.subr.bf16.mxu0 %v3315
    %5303 = vmatpush1.bf16.msra.mxu0 %v3314
    %5304 = vmatprep.subr.bf16.mxu0 %v3323
    %5305 = vmatpush1.bf16.msra.mxu0 %v3322
    %5306 = vmatprep.subr.bf16.mxu0 %v3331
    %5307 = vmatpush1.bf16.msra.mxu0 %v3330
    %5308 = vmatprep.subr.bf16.mxu0 %v3339
    %5309 = vmatpush1.bf16.msra.mxu0 %v3338
    %5310 = vmatprep.subr.bf16.mxu0 %v3347
    %5311 = vmatpush1.bf16.msra.mxu0 %v3346
    %5312 = vmatprep.subr.bf16.mxu0 %v3355
    %5313 = vmatpush1.bf16.msra.mxu0 %v3354
    %5314 = vmatprep.mubr.bf16.mxu0 %v903
    %5315 = vmatmul.mubr.bf16.gmra.mrb[0].mxu0 %v902
    %v5316 = vpop.f32.mrb[0].mxu0
    %v5317 = vadd.f32 0.0, %v5316
    %v5318 = vpop.f32.mrb[0].mxu0
    %v5319 = vadd.f32 0.0, %v5318
    %v5320 = vpop.f32.mrb[0].mxu0
    %v5321 = vadd.f32 0.0, %v5320
    %v5322 = vpop.f32.mrb[0].mxu0
    %v5323 = vadd.f32 0.0, %v5322
    %5324 = vdwg.mxu0
    %5325 = vmatprep.subr.bf16.mxu0 %v3363
    %5326 = vmatpush1.bf16.msra.mxu0 %v3362
    %5327 = vmatprep.subr.bf16.mxu0 %v3371
    %5328 = vmatpush1.bf16.msra.mxu0 %v3370
    %5329 = vmatprep.subr.bf16.mxu0 %v3379
    %5330 = vmatpush1.bf16.msra.mxu0 %v3378
    %5331 = vmatprep.subr.bf16.mxu0 %v3387
    %5332 = vmatpush1.bf16.msra.mxu0 %v3386
    %5333 = vmatprep.subr.bf16.mxu0 %v3395
    %5334 = vmatpush1.bf16.msra.mxu0 %v3394
    %5335 = vmatprep.subr.bf16.mxu0 %v3403
    %5336 = vmatpush1.bf16.msra.mxu0 %v3402
    %5337 = vmatprep.subr.bf16.mxu0 %v3411
    %5338 = vmatpush1.bf16.msra.mxu0 %v3410
    %5339 = vmatprep.subr.bf16.mxu0 %v3419
    %5340 = vmatpush1.bf16.msra.mxu0 %v3418
    %5341 = vmatprep.subr.bf16.mxu0 %v3427
    %5342 = vmatpush1.bf16.msra.mxu0 %v3426
    %5343 = vmatprep.subr.bf16.mxu0 %v3435
    %5344 = vmatpush1.bf16.msra.mxu0 %v3434
    %5345 = vmatprep.subr.bf16.mxu0 %v3443
    %5346 = vmatpush1.bf16.msra.mxu0 %v3442
    %5347 = vmatprep.subr.bf16.mxu0 %v3451
    %5348 = vmatpush1.bf16.msra.mxu0 %v3450
    %5349 = vmatprep.subr.bf16.mxu0 %v3459
    %5350 = vmatpush1.bf16.msra.mxu0 %v3458
    %5351 = vmatprep.subr.bf16.mxu0 %v3467
    %5352 = vmatpush1.bf16.msra.mxu0 %v3466
    %5353 = vmatprep.subr.bf16.mxu0 %v3475
    %5354 = vmatpush1.bf16.msra.mxu0 %v3474
    %5355 = vmatprep.subr.bf16.mxu0 %v3483
    %5356 = vmatpush1.bf16.msra.mxu0 %v3482
    %5357 = vmatprep.mubr.bf16.mxu0 %v905
    %5358 = vmatmul.mubr.bf16.gmra.mrb[0].mxu0 %v904
    %v5359 = vpop.f32.mrb[0].mxu0
    %v5360 = vadd.f32 %v5317, %v5359
    %v5361 = vpop.f32.mrb[0].mxu0
    %v5362 = vadd.f32 %v5319, %v5361
    %v5363 = vpop.f32.mrb[0].mxu0
    %v5364 = vadd.f32 %v5321, %v5363
    %v5365 = vpop.f32.mrb[0].mxu0
    %v5366 = vadd.f32 %v5323, %v5365
    %5367 = vdwg.mxu0
    %5368 = vmatprep.subr.bf16.mxu0 %v3491
    %5369 = vmatpush1.bf16.msra.mxu0 %v3490
    %5370 = vmatprep.subr.bf16.mxu0 %v3499
    %5371 = vmatpush1.bf16.msra.mxu0 %v3498
    %5372 = vmatprep.subr.bf16.mxu0 %v3507
    %5373 = vmatpush1.bf16.msra.mxu0 %v3506
    %5374 = vmatprep.subr.bf16.mxu0 %v3515
    %5375 = vmatpush1.bf16.msra.mxu0 %v3514
    %5376 = vmatprep.subr.bf16.mxu0 %v3523
    %5377 = vmatpush1.bf16.msra.mxu0 %v3522
    %5378 = vmatprep.subr.bf16.mxu0 %v3531
    %5379 = vmatpush1.bf16.msra.mxu0 %v3530
    %5380 = vmatprep.subr.bf16.mxu0 %v3539
    %5381 = vmatpush1.bf16.msra.mxu0 %v3538
    %5382 = vmatprep.subr.bf16.mxu0 %v3547
    %5383 = vmatpush1.bf16.msra.mxu0 %v3546
    %5384 = vmatprep.subr.bf16.mxu0 %v3555
    %5385 = vmatpush1.bf16.msra.mxu0 %v3554
    %5386 = vmatprep.subr.bf16.mxu0 %v3563
    %5387 = vmatpush1.bf16.msra.mxu0 %v3562
    %5388 = vmatprep.subr.bf16.mxu0 %v3571
    %5389 = vmatpush1.bf16.msra.mxu0 %v3570
    %5390 = vmatprep.subr.bf16.mxu0 %v3579
    %5391 = vmatpush1.bf16.msra.mxu0 %v3578
    %5392 = vmatprep.subr.bf16.mxu0 %v3587
    %5393 = vmatpush1.bf16.msra.mxu0 %v3586
    %5394 = vmatprep.subr.bf16.mxu0 %v3595
    %5395 = vmatpush1.bf16.msra.mxu0 %v3594
    %5396 = vmatprep.subr.bf16.mxu0 %v3603
    %5397 = vmatpush1.bf16.msra.mxu0 %v3602
    %5398 = vmatprep.subr.bf16.mxu0 %v3611
    %5399 = vmatpush1.bf16.msra.mxu0 %v3610
    %5400 = vmatprep.mubr.bf16.mxu0 %v907
    %5401 = vmatmul.mubr.bf16.gmra.mrb[0].mxu0 %v906
    %v5402 = vpop.f32.mrb[0].mxu0
    %v5403 = vadd.f32 %v5360, %v5402
    %v5404 = vpop.f32.mrb[0].mxu0
    %v5405 = vadd.f32 %v5362, %v5404
    %v5406 = vpop.f32.mrb[0].mxu0
    %v5407 = vadd.f32 %v5364, %v5406
    %v5408 = vpop.f32.mrb[0].mxu0
    %v5409 = vadd.f32 %v5366, %v5408
    %5410 = vdwg.mxu0
    %5411 = vmatprep.subr.bf16.mxu0 %v3619
    %5412 = vmatpush1.bf16.msra.mxu0 %v3618
    %5413 = vmatprep.subr.bf16.mxu0 %v3627
    %5414 = vmatpush1.bf16.msra.mxu0 %v3626
    %5415 = vmatprep.subr.bf16.mxu0 %v3635
    %5416 = vmatpush1.bf16.msra.mxu0 %v3634
    %5417 = vmatprep.subr.bf16.mxu0 %v3643
    %5418 = vmatpush1.bf16.msra.mxu0 %v3642
    %5419 = vmatprep.subr.bf16.mxu0 %v3651
    %5420 = vmatpush1.bf16.msra.mxu0 %v3650
    %5421 = vmatprep.subr.bf16.mxu0 %v3659
    %5422 = vmatpush1.bf16.msra.mxu0 %v3658
    %5423 = vmatprep.subr.bf16.mxu0 %v3667
    %5424 = vmatpush1.bf16.msra.mxu0 %v3666
    %5425 = vmatprep.subr.bf16.mxu0 %v3675
    %5426 = vmatpush1.bf16.msra.mxu0 %v3674
    %5427 = vmatprep.subr.bf16.mxu0 %v3683
    %5428 = vmatpush1.bf16.msra.mxu0 %v3682
    %5429 = vmatprep.subr.bf16.mxu0 %v3691
    %5430 = vmatpush1.bf16.msra.mxu0 %v3690
    %5431 = vmatprep.subr.bf16.mxu0 %v3699
    %5432 = vmatpush1.bf16.msra.mxu0 %v3698
    %5433 = vmatprep.subr.bf16.mxu0 %v3707
    %5434 = vmatpush1.bf16.msra.mxu0 %v3706
    %5435 = vmatprep.subr.bf16.mxu0 %v3715
    %5436 = vmatpush1.bf16.msra.mxu0 %v3714
    %5437 = vmatprep.subr.bf16.mxu0 %v3723
    %5438 = vmatpush1.bf16.msra.mxu0 %v3722
    %5439 = vmatprep.subr.bf16.mxu0 %v3731
    %5440 = vmatpush1.bf16.msra.mxu0 %v3730
    %5441 = vmatprep.subr.bf16.mxu0 %v3739
    %5442 = vmatpush1.bf16.msra.mxu0 %v3738
    %5443 = vmatprep.mubr.bf16.mxu0 %v909
    %5444 = vmatmul.mubr.bf16.gmra.mrb[0].mxu0 %v908
    %v5445 = vpop.f32.mrb[0].mxu0
    %v5446 = vadd.f32 %v5403, %v5445
    %v5447 = vpop.f32.mrb[0].mxu0
    %v5448 = vadd.f32 %v5405, %v5447
    %v5449 = vpop.f32.mrb[0].mxu0
    %v5450 = vadd.f32 %v5407, %v5449
    %v5451 = vpop.f32.mrb[0].mxu0
    %v5452 = vadd.f32 %v5409, %v5451
    %5453 = vdwg.mxu0
    %5454 = vmatprep.subr.bf16.mxu0 %v3747
    %5455 = vmatpush1.bf16.msra.mxu0 %v3746
    %5456 = vmatprep.subr.bf16.mxu0 %v3755
    %5457 = vmatpush1.bf16.msra.mxu0 %v3754
    %5458 = vmatprep.subr.bf16.mxu0 %v3763
    %5459 = vmatpush1.bf16.msra.mxu0 %v3762
    %5460 = vmatprep.subr.bf16.mxu0 %v3771
    %5461 = vmatpush1.bf16.msra.mxu0 %v3770
    %5462 = vmatprep.subr.bf16.mxu0 %v3779
    %5463 = vmatpush1.bf16.msra.mxu0 %v3778
    %5464 = vmatprep.subr.bf16.mxu0 %v3787
    %5465 = vmatpush1.bf16.msra.mxu0 %v3786
    %5466 = vmatprep.subr.bf16.mxu0 %v3795
    %5467 = vmatpush1.bf16.msra.mxu0 %v3794
    %5468 = vmatprep.subr.bf16.mxu0 %v3803
    %5469 = vmatpush1.bf16.msra.mxu0 %v3802
    %5470 = vmatprep.subr.bf16.mxu0 %v3811
    %5471 = vmatpush1.bf16.msra.mxu0 %v3810
    %5472 = vmatprep.subr.bf16.mxu0 %v3819
    %5473 = vmatpush1.bf16.msra.mxu0 %v3818
    %5474 = vmatprep.subr.bf16.mxu0 %v3827
    %5475 = vmatpush1.bf16.msra.mxu0 %v3826
    %5476 = vmatprep.subr.bf16.mxu0 %v3835
    %5477 = vmatpush1.bf16.msra.mxu0 %v3834
    %5478 = vmatprep.subr.bf16.mxu0 %v3843
    %5479 = vmatpush1.bf16.msra.mxu0 %v3842
    %5480 = vmatprep.subr.bf16.mxu0 %v3851
    %5481 = vmatpush1.bf16.msra.mxu0 %v3850
    %5482 = vmatprep.subr.bf16.mxu0 %v3859
    %5483 = vmatpush1.bf16.msra.mxu0 %v3858
    %5484 = vmatprep.subr.bf16.mxu0 %v3867
    %5485 = vmatpush1.bf16.msra.mxu0 %v3866
    %5486 = vmatprep.mubr.bf16.mxu0 %v911
    %5487 = vmatmul.mubr.bf16.gmra.mrb[0].mxu0 %v910
    %v5488 = vpop.f32.mrb[0].mxu0
    %v5489 = vadd.f32 %v5446, %v5488
    %v5490 = vpop.f32.mrb[0].mxu0
    %v5491 = vadd.f32 %v5448, %v5490
    %v5492 = vpop.f32.mrb[0].mxu0
    %v5493 = vadd.f32 %v5450, %v5492
    %v5494 = vpop.f32.mrb[0].mxu0
    %v5495 = vadd.f32 %v5452, %v5494
    %5496 = vdwg.mxu0
    %5497 = vmatprep.subr.bf16.mxu0 %v3875
    %5498 = vmatpush1.bf16.msra.mxu0 %v3874
    %5499 = vmatprep.subr.bf16.mxu0 %v3883
    %5500 = vmatpush1.bf16.msra.mxu0 %v3882
    %5501 = vmatprep.subr.bf16.mxu0 %v3891
    %5502 = vmatpush1.bf16.msra.mxu0 %v3890
    %5503 = vmatprep.subr.bf16.mxu0 %v3899
    %5504 = vmatpush1.bf16.msra.mxu0 %v3898
    %5505 = vmatprep.subr.bf16.mxu0 %v3907
    %5506 = vmatpush1.bf16.msra.mxu0 %v3906
    %5507 = vmatprep.subr.bf16.mxu0 %v3915
    %5508 = vmatpush1.bf16.msra.mxu0 %v3914
    %5509 = vmatprep.subr.bf16.mxu0 %v3923
    %5510 = vmatpush1.bf16.msra.mxu0 %v3922
    %5511 = vmatprep.subr.bf16.mxu0 %v3931
    %5512 = vmatpush1.bf16.msra.mxu0 %v3930
    %5513 = vmatprep.subr.bf16.mxu0 %v3939
    %5514 = vmatpush1.bf16.msra.mxu0 %v3938
    %5515 = vmatprep.subr.bf16.mxu0 %v3947
    %5516 = vmatpush1.bf16.msra.mxu0 %v3946
    %5517 = vmatprep.subr.bf16.mxu0 %v3955
    %5518 = vmatpush1.bf16.msra.mxu0 %v3954
    %5519 = vmatprep.subr.bf16.mxu0 %v3963
    %5520 = vmatpush1.bf16.msra.mxu0 %v3962
    %5521 = vmatprep.subr.bf16.mxu0 %v3971
    %5522 = vmatpush1.bf16.msra.mxu0 %v3970
    %5523 = vmatprep.subr.bf16.mxu0 %v3979
    %5524 = vmatpush1.bf16.msra.mxu0 %v3978
    %5525 = vmatprep.subr.bf16.mxu0 %v3987
    %5526 = vmatpush1.bf16.msra.mxu0 %v3986
    %5527 = vmatprep.subr.bf16.mxu0 %v3995
    %5528 = vmatpush1.bf16.msra.mxu0 %v3994
    %5529 = vmatprep.mubr.bf16.mxu0 %v913
    %5530 = vmatmul.mubr.bf16.gmra.mrb[0].mxu0 %v912
    %v5531 = vpop.f32.mrb[0].mxu0
    %v5532 = vadd.f32 %v5489, %v5531
    %v5533 = vpop.f32.mrb[0].mxu0
    %v5534 = vadd.f32 %v5491, %v5533
    %v5535 = vpop.f32.mrb[0].mxu0
    %v5536 = vadd.f32 %v5493, %v5535
    %v5537 = vpop.f32.mrb[0].mxu0
    %v5538 = vadd.f32 %v5495, %v5537
    %5539 = vdwg.mxu0
    %5540 = vmatprep.subr.bf16.mxu0 %v3237
    %5541 = vmatpush1.bf16.msra.mxu0 %v3236
    %5542 = vmatprep.subr.bf16.mxu0 %v3245
    %5543 = vmatpush1.bf16.msra.mxu0 %v3244
    %5544 = vmatprep.subr.bf16.mxu0 %v3253
    %5545 = vmatpush1.bf16.msra.mxu0 %v3252
    %5546 = vmatprep.subr.bf16.mxu0 %v3261
    %5547 = vmatpush1.bf16.msra.mxu0 %v3260
    %5548 = vmatprep.subr.bf16.mxu0 %v3269
    %5549 = vmatpush1.bf16.msra.mxu0 %v3268
    %5550 = vmatprep.subr.bf16.mxu0 %v3277
    %5551 = vmatpush1.bf16.msra.mxu0 %v3276
    %5552 = vmatprep.subr.bf16.mxu0 %v3285
    %5553 = vmatpush1.bf16.msra.mxu0 %v3284
    %5554 = vmatprep.subr.bf16.mxu0 %v3293
    %5555 = vmatpush1.bf16.msra.mxu0 %v3292
    %5556 = vmatprep.subr.bf16.mxu0 %v3301
    %5557 = vmatpush1.bf16.msra.mxu0 %v3300
    %5558 = vmatprep.subr.bf16.mxu0 %v3309
    %5559 = vmatpush1.bf16.msra.mxu0 %v3308
    %5560 = vmatprep.subr.bf16.mxu0 %v3317
    %5561 = vmatpush1.bf16.msra.mxu0 %v3316
    %5562 = vmatprep.subr.bf16.mxu0 %v3325
    %5563 = vmatpush1.bf16.msra.mxu0 %v3324
    %5564 = vmatprep.subr.bf16.mxu0 %v3333
    %5565 = vmatpush1.bf16.msra.mxu0 %v3332
    %5566 = vmatprep.subr.bf16.mxu0 %v3341
    %5567 = vmatpush1.bf16.msra.mxu0 %v3340
    %5568 = vmatprep.subr.bf16.mxu0 %v3349
    %5569 = vmatpush1.bf16.msra.mxu0 %v3348
    %5570 = vmatprep.subr.bf16.mxu0 %v3357
    %5571 = vmatpush1.bf16.msra.mxu0 %v3356
    %5572 = vmatprep.mubr.bf16.mxu0 %v903
    %5573 = vmatmul.mubr.bf16.gmra.mrb[0].mxu0 %v902
    %v5574 = vpop.f32.mrb[0].mxu0
    %v5575 = vadd.f32 0.0, %v5574
    %v5576 = vpop.f32.mrb[0].mxu0
    %v5577 = vadd.f32 0.0, %v5576
    %v5578 = vpop.f32.mrb[0].mxu0
    %v5579 = vadd.f32 0.0, %v5578
    %v5580 = vpop.f32.mrb[0].mxu0
    %v5581 = vadd.f32 0.0, %v5580
    %5582 = vdwg.mxu0
    %5583 = vmatprep.subr.bf16.mxu0 %v3365
    %5584 = vmatpush1.bf16.msra.mxu0 %v3364
    %5585 = vmatprep.subr.bf16.mxu0 %v3373
    %5586 = vmatpush1.bf16.msra.mxu0 %v3372
    %5587 = vmatprep.subr.bf16.mxu0 %v3381
    %5588 = vmatpush1.bf16.msra.mxu0 %v3380
    %5589 = vmatprep.subr.bf16.mxu0 %v3389
    %5590 = vmatpush1.bf16.msra.mxu0 %v3388
    %5591 = vmatprep.subr.bf16.mxu0 %v3397
    %5592 = vmatpush1.bf16.msra.mxu0 %v3396
    %5593 = vmatprep.subr.bf16.mxu0 %v3405
    %5594 = vmatpush1.bf16.msra.mxu0 %v3404
    %5595 = vmatprep.subr.bf16.mxu0 %v3413
    %5596 = vmatpush1.bf16.msra.mxu0 %v3412
    %5597 = vmatprep.subr.bf16.mxu0 %v3421
    %5598 = vmatpush1.bf16.msra.mxu0 %v3420
    %5599 = vmatprep.subr.bf16.mxu0 %v3429
    %5600 = vmatpush1.bf16.msra.mxu0 %v3428
    %5601 = vmatprep.subr.bf16.mxu0 %v3437
    %5602 = vmatpush1.bf16.msra.mxu0 %v3436
    %5603 = vmatprep.subr.bf16.mxu0 %v3445
    %5604 = vmatpush1.bf16.msra.mxu0 %v3444
    %5605 = vmatprep.subr.bf16.mxu0 %v3453
    %5606 = vmatpush1.bf16.msra.mxu0 %v3452
    %5607 = vmatprep.subr.bf16.mxu0 %v3461
    %5608 = vmatpush1.bf16.msra.mxu0 %v3460
    %5609 = vmatprep.subr.bf16.mxu0 %v3469
    %5610 = vmatpush1.bf16.msra.mxu0 %v3468
    %5611 = vmatprep.subr.bf16.mxu0 %v3477
    %5612 = vmatpush1.bf16.msra.mxu0 %v3476
    %5613 = vmatprep.subr.bf16.mxu0 %v3485
    %5614 = vmatpush1.bf16.msra.mxu0 %v3484
    %5615 = vmatprep.mubr.bf16.mxu0 %v905
    %5616 = vmatmul.mubr.bf16.gmra.mrb[0].mxu0 %v904
    %v5617 = vpop.f32.mrb[0].mxu0
    %v5618 = vadd.f32 %v5575, %v5617
    %v5619 = vpop.f32.mrb[0].mxu0
    %v5620 = vadd.f32 %v5577, %v5619
    %v5621 = vpop.f32.mrb[0].mxu0
    %v5622 = vadd.f32 %v5579, %v5621
    %v5623 = vpop.f32.mrb[0].mxu0
    %v5624 = vadd.f32 %v5581, %v5623
    %5625 = vdwg.mxu0
    %5626 = vmatprep.subr.bf16.mxu0 %v3493
    %5627 = vmatpush1.bf16.msra.mxu0 %v3492
    %5628 = vmatprep.subr.bf16.mxu0 %v3501
    %5629 = vmatpush1.bf16.msra.mxu0 %v3500
    %5630 = vmatprep.subr.bf16.mxu0 %v3509
    %5631 = vmatpush1.bf16.msra.mxu0 %v3508
    %5632 = vmatprep.subr.bf16.mxu0 %v3517
    %5633 = vmatpush1.bf16.msra.mxu0 %v3516
    %5634 = vmatprep.subr.bf16.mxu0 %v3525
    %5635 = vmatpush1.bf16.msra.mxu0 %v3524
    %5636 = vmatprep.subr.bf16.mxu0 %v3533
    %5637 = vmatpush1.bf16.msra.mxu0 %v3532
    %5638 = vmatprep.subr.bf16.mxu0 %v3541
    %5639 = vmatpush1.bf16.msra.mxu0 %v3540
    %5640 = vmatprep.subr.bf16.mxu0 %v3549
    %5641 = vmatpush1.bf16.msra.mxu0 %v3548
    %5642 = vmatprep.subr.bf16.mxu0 %v3557
    %5643 = vmatpush1.bf16.msra.mxu0 %v3556
    %5644 = vmatprep.subr.bf16.mxu0 %v3565
    %5645 = vmatpush1.bf16.msra.mxu0 %v3564
    %5646 = vmatprep.subr.bf16.mxu0 %v3573
    %5647 = vmatpush1.bf16.msra.mxu0 %v3572
    %5648 = vmatprep.subr.bf16.mxu0 %v3581
    %5649 = vmatpush1.bf16.msra.mxu0 %v3580
    %5650 = vmatprep.subr.bf16.mxu0 %v3589
    %5651 = vmatpush1.bf16.msra.mxu0 %v3588
    %5652 = vmatprep.subr.bf16.mxu0 %v3597
    %5653 = vmatpush1.bf16.msra.mxu0 %v3596
    %5654 = vmatprep.subr.bf16.mxu0 %v3605
    %5655 = vmatpush1.bf16.msra.mxu0 %v3604
    %5656 = vmatprep.subr.bf16.mxu0 %v3613
    %5657 = vmatpush1.bf16.msra.mxu0 %v3612
    %5658 = vmatprep.mubr.bf16.mxu0 %v907
    %5659 = vmatmul.mubr.bf16.gmra.mrb[0].mxu0 %v906
    %v5660 = vpop.f32.mrb[0].mxu0
    %v5661 = vadd.f32 %v5618, %v5660
    %v5662 = vpop.f32.mrb[0].mxu0
    %v5663 = vadd.f32 %v5620, %v5662
    %v5664 = vpop.f32.mrb[0].mxu0
    %v5665 = vadd.f32 %v5622, %v5664
    %v5666 = vpop.f32.mrb[0].mxu0
    %v5667 = vadd.f32 %v5624, %v5666
    %5668 = vdwg.mxu0
    %5669 = vmatprep.subr.bf16.mxu0 %v3621
    %5670 = vmatpush1.bf16.msra.mxu0 %v3620
    %5671 = vmatprep.subr.bf16.mxu0 %v3629
    %5672 = vmatpush1.bf16.msra.mxu0 %v3628
    %5673 = vmatprep.subr.bf16.mxu0 %v3637
    %5674 = vmatpush1.bf16.msra.mxu0 %v3636
    %5675 = vmatprep.subr.bf16.mxu0 %v3645
    %5676 = vmatpush1.bf16.msra.mxu0 %v3644
    %5677 = vmatprep.subr.bf16.mxu0 %v3653
    %5678 = vmatpush1.bf16.msra.mxu0 %v3652
    %5679 = vmatprep.subr.bf16.mxu0 %v3661
    %5680 = vmatpush1.bf16.msra.mxu0 %v3660
    %5681 = vmatprep.subr.bf16.mxu0 %v3669
    %5682 = vmatpush1.bf16.msra.mxu0 %v3668
    %5683 = vmatprep.subr.bf16.mxu0 %v3677
    %5684 = vmatpush1.bf16.msra.mxu0 %v3676
    %5685 = vmatprep.subr.bf16.mxu0 %v3685
    %5686 = vmatpush1.bf16.msra.mxu0 %v3684
    %5687 = vmatprep.subr.bf16.mxu0 %v3693
    %5688 = vmatpush1.bf16.msra.mxu0 %v3692
    %5689 = vmatprep.subr.bf16.mxu0 %v3701
    %5690 = vmatpush1.bf16.msra.mxu0 %v3700
    %5691 = vmatprep.subr.bf16.mxu0 %v3709
    %5692 = vmatpush1.bf16.msra.mxu0 %v3708
    %5693 = vmatprep.subr.bf16.mxu0 %v3717
    %5694 = vmatpush1.bf16.msra.mxu0 %v3716
    %5695 = vmatprep.subr.bf16.mxu0 %v3725
    %5696 = vmatpush1.bf16.msra.mxu0 %v3724
    %5697 = vmatprep.subr.bf16.mxu0 %v3733
    %5698 = vmatpush1.bf16.msra.mxu0 %v3732
    %5699 = vmatprep.subr.bf16.mxu0 %v3741
    %5700 = vmatpush1.bf16.msra.mxu0 %v3740
    %5701 = vmatprep.mubr.bf16.mxu0 %v909
    %5702 = vmatmul.mubr.bf16.gmra.mrb[0].mxu0 %v908
    %v5703 = vpop.f32.mrb[0].mxu0
    %v5704 = vadd.f32 %v5661, %v5703
    %v5705 = vpop.f32.mrb[0].mxu0
    %v5706 = vadd.f32 %v5663, %v5705
    %v5707 = vpop.f32.mrb[0].mxu0
    %v5708 = vadd.f32 %v5665, %v5707
    %v5709 = vpop.f32.mrb[0].mxu0
    %v5710 = vadd.f32 %v5667, %v5709
    %5711 = vdwg.mxu0
    %5712 = vmatprep.subr.bf16.mxu0 %v3749
    %5713 = vmatpush1.bf16.msra.mxu0 %v3748
    %5714 = vmatprep.subr.bf16.mxu0 %v3757
    %5715 = vmatpush1.bf16.msra.mxu0 %v3756
    %5716 = vmatprep.subr.bf16.mxu0 %v3765
    %5717 = vmatpush1.bf16.msra.mxu0 %v3764
    %5718 = vmatprep.subr.bf16.mxu0 %v3773
    %5719 = vmatpush1.bf16.msra.mxu0 %v3772
    %5720 = vmatprep.subr.bf16.mxu0 %v3781
    %5721 = vmatpush1.bf16.msra.mxu0 %v3780
    %5722 = vmatprep.subr.bf16.mxu0 %v3789
    %5723 = vmatpush1.bf16.msra.mxu0 %v3788
    %5724 = vmatprep.subr.bf16.mxu0 %v3797
    %5725 = vmatpush1.bf16.msra.mxu0 %v3796
    %5726 = vmatprep.subr.bf16.mxu0 %v3805
    %5727 = vmatpush1.bf16.msra.mxu0 %v3804
    %5728 = vmatprep.subr.bf16.mxu0 %v3813
    %5729 = vmatpush1.bf16.msra.mxu0 %v3812
    %5730 = vmatprep.subr.bf16.mxu0 %v3821
    %5731 = vmatpush1.bf16.msra.mxu0 %v3820
    %5732 = vmatprep.subr.bf16.mxu0 %v3829
    %5733 = vmatpush1.bf16.msra.mxu0 %v3828
    %5734 = vmatprep.subr.bf16.mxu0 %v3837
    %5735 = vmatpush1.bf16.msra.mxu0 %v3836
    %5736 = vmatprep.subr.bf16.mxu0 %v3845
    %5737 = vmatpush1.bf16.msra.mxu0 %v3844
    %5738 = vmatprep.subr.bf16.mxu0 %v3853
    %5739 = vmatpush1.bf16.msra.mxu0 %v3852
    %5740 = vmatprep.subr.bf16.mxu0 %v3861
    %5741 = vmatpush1.bf16.msra.mxu0 %v3860
    %5742 = vmatprep.subr.bf16.mxu0 %v3869
    %5743 = vmatpush1.bf16.msra.mxu0 %v3868
    %5744 = vmatprep.mubr.bf16.mxu0 %v911
    %5745 = vmatmul.mubr.bf16.gmra.mrb[0].mxu0 %v910
    %v5746 = vpop.f32.mrb[0].mxu0
    %v5747 = vadd.f32 %v5704, %v5746
    %v5748 = vpop.f32.mrb[0].mxu0
    %v5749 = vadd.f32 %v5706, %v5748
    %v5750 = vpop.f32.mrb[0].mxu0
    %v5751 = vadd.f32 %v5708, %v5750
    %v5752 = vpop.f32.mrb[0].mxu0
    %v5753 = vadd.f32 %v5710, %v5752
    %5754 = vdwg.mxu0
    %5755 = vmatprep.subr.bf16.mxu0 %v3877
    %5756 = vmatpush1.bf16.msra.mxu0 %v3876
    %5757 = vmatprep.subr.bf16.mxu0 %v3885
    %5758 = vmatpush1.bf16.msra.mxu0 %v3884
    %5759 = vmatprep.subr.bf16.mxu0 %v3893
    %5760 = vmatpush1.bf16.msra.mxu0 %v3892
    %5761 = vmatprep.subr.bf16.mxu0 %v3901
    %5762 = vmatpush1.bf16.msra.mxu0 %v3900
    %5763 = vmatprep.subr.bf16.mxu0 %v3909
    %5764 = vmatpush1.bf16.msra.mxu0 %v3908
    %5765 = vmatprep.subr.bf16.mxu0 %v3917
    %5766 = vmatpush1.bf16.msra.mxu0 %v3916
    %5767 = vmatprep.subr.bf16.mxu0 %v3925
    %5768 = vmatpush1.bf16.msra.mxu0 %v3924
    %5769 = vmatprep.subr.bf16.mxu0 %v3933
    %5770 = vmatpush1.bf16.msra.mxu0 %v3932
    %5771 = vmatprep.subr.bf16.mxu0 %v3941
    %5772 = vmatpush1.bf16.msra.mxu0 %v3940
    %5773 = vmatprep.subr.bf16.mxu0 %v3949
    %5774 = vmatpush1.bf16.msra.mxu0 %v3948
    %5775 = vmatprep.subr.bf16.mxu0 %v3957
    %5776 = vmatpush1.bf16.msra.mxu0 %v3956
    %5777 = vmatprep.subr.bf16.mxu0 %v3965
    %5778 = vmatpush1.bf16.msra.mxu0 %v3964
    %5779 = vmatprep.subr.bf16.mxu0 %v3973
    %5780 = vmatpush1.bf16.msra.mxu0 %v3972
    %5781 = vmatprep.subr.bf16.mxu0 %v3981
    %5782 = vmatpush1.bf16.msra.mxu0 %v3980
    %5783 = vmatprep.subr.bf16.mxu0 %v3989
    %5784 = vmatpush1.bf16.msra.mxu0 %v3988
    %5785 = vmatprep.subr.bf16.mxu0 %v3997
    %5786 = vmatpush1.bf16.msra.mxu0 %v3996
    %5787 = vmatprep.mubr.bf16.mxu0 %v913
    %5788 = vmatmul.mubr.bf16.gmra.mrb[0].mxu0 %v912
    %v5789 = vpop.f32.mrb[0].mxu0
    %v5790 = vadd.f32 %v5747, %v5789
    %v5791 = vpop.f32.mrb[0].mxu0
    %v5792 = vadd.f32 %v5749, %v5791
    %v5793 = vpop.f32.mrb[0].mxu0
    %v5794 = vadd.f32 %v5751, %v5793
    %v5795 = vpop.f32.mrb[0].mxu0
    %v5796 = vadd.f32 %v5753, %v5795
    %5797 = vdwg.mxu0
    %v5798 = vld [vmem:[#allocation7] sm:$0xff]
    %v5800 = vlaneseq
    %v5801 = vshrl.u32 %v5800, 7
    %v5802 = vsub.s32 0, %v5801
    %v5803 = vrot.slane %v5798, %v5802
    %v5804 = vlaneseq
    %v5805 = vshrl.u32 %v5804, 7
    %v5806 = vsub.s32 1, %v5805
    %v5807 = vrot.slane %v5798, %v5806
    %v5808 = vlaneseq
    %v5809 = vshrl.u32 %v5808, 7
    %v5810 = vsub.s32 2, %v5809
    %v5811 = vrot.slane %v5798, %v5810
    %v5812 = vlaneseq
    %v5813 = vshrl.u32 %v5812, 7
    %v5814 = vsub.s32 3, %v5813
    %v5815 = vrot.slane %v5798, %v5814
    %v5816 = vlaneseq
    %v5817 = vshrl.u32 %v5816, 7
    %v5818 = vsub.s32 4, %v5817
    %v5819 = vrot.slane %v5798, %v5818
    %v5820 = vlaneseq
    %v5821 = vshrl.u32 %v5820, 7
    %v5822 = vsub.s32 5, %v5821
    %v5823 = vrot.slane %v5798, %v5822
    %v5824 = vlaneseq
    %v5825 = vshrl.u32 %v5824, 7
    %v5826 = vsub.s32 6, %v5825
    %v5827 = vrot.slane %v5798, %v5826
    %v5828 = vlaneseq
    %v5829 = vshrl.u32 %v5828, 7
    %v5830 = vsub.s32 7, %v5829
    %v5831 = vrot.slane %v5798, %v5830
    %v5840 = vmul.f32 %v5016, %v5803
    %v5841 = vmul.f32 %v5018, %v5807
    %v5842 = vmul.f32 %v5274, %v5811
    %v5843 = vmul.f32 %v5276, %v5815
    %v5844 = vmul.f32 %v5532, %v5819
    %v5845 = vmul.f32 %v5534, %v5823
    %v5846 = vmul.f32 %v5790, %v5827
    %v5847 = vmul.f32 %v5792, %v5831
    %v5848 = vmul.f32 %v5020, %v5803
    %v5849 = vmul.f32 %v5022, %v5807
    %v5850 = vmul.f32 %v5278, %v5811
    %v5851 = vmul.f32 %v5280, %v5815
    %v5852 = vmul.f32 %v5536, %v5819
    %v5853 = vmul.f32 %v5538, %v5823
    %v5854 = vmul.f32 %v5794, %v5827
    %v5855 = vmul.f32 %v5796, %v5831
    %v5856 = vld [vmem:[#allocation8] sm:$0xff]
    %v5858 = vlaneseq
    %v5859 = vshrl.u32 %v5858, 7
    %v5860 = vsub.s32 0, %v5859
    %v5861 = vrot.slane %v5856, %v5860
    %v5862 = vlaneseq
    %v5863 = vshrl.u32 %v5862, 7
    %v5864 = vsub.s32 1, %v5863
    %v5865 = vrot.slane %v5856, %v5864
    %v5866 = vlaneseq
    %v5867 = vshrl.u32 %v5866, 7
    %v5868 = vsub.s32 2, %v5867
    %v5869 = vrot.slane %v5856, %v5868
    %v5870 = vlaneseq
    %v5871 = vshrl.u32 %v5870, 7
    %v5872 = vsub.s32 3, %v5871
    %v5873 = vrot.slane %v5856, %v5872
    %v5874 = vlaneseq
    %v5875 = vshrl.u32 %v5874, 7
    %v5876 = vsub.s32 4, %v5875
    %v5877 = vrot.slane %v5856, %v5876
    %v5878 = vlaneseq
    %v5879 = vshrl.u32 %v5878, 7
    %v5880 = vsub.s32 5, %v5879
    %v5881 = vrot.slane %v5856, %v5880
    %v5882 = vlaneseq
    %v5883 = vshrl.u32 %v5882, 7
    %v5884 = vsub.s32 6, %v5883
    %v5885 = vrot.slane %v5856, %v5884
    %v5886 = vlaneseq
    %v5887 = vshrl.u32 %v5886, 7
    %v5888 = vsub.s32 7, %v5887
    %v5889 = vrot.slane %v5856, %v5888
    %v5898 = vadd.f32 %v5840, %v5861
    %v5899 = vadd.f32 %v5841, %v5865
    %v5900 = vadd.f32 %v5842, %v5869
    %v5901 = vadd.f32 %v5843, %v5873
    %v5902 = vadd.f32 %v5844, %v5877
    %v5903 = vadd.f32 %v5845, %v5881
    %v5904 = vadd.f32 %v5846, %v5885
    %v5905 = vadd.f32 %v5847, %v5889
    %v5906 = vadd.f32 %v5848, %v5861
    %v5907 = vadd.f32 %v5849, %v5865
    %v5908 = vadd.f32 %v5850, %v5869
    %v5909 = vadd.f32 %v5851, %v5873
    %v5910 = vadd.f32 %v5852, %v5877
    %v5911 = vadd.f32 %v5853, %v5881
    %v5912 = vadd.f32 %v5854, %v5885
    %v5913 = vadd.f32 %v5855, %v5889
    %vm5914 = vcmp.gt.f32.partialorder %v5898, 0.0
    %vm5915 = vcmp.gt.f32.partialorder %v5899, 0.0
    %vm5916 = vcmp.gt.f32.partialorder %v5900, 0.0
    %vm5917 = vcmp.gt.f32.partialorder %v5901, 0.0
    %vm5918 = vcmp.gt.f32.partialorder %v5902, 0.0
    %vm5919 = vcmp.gt.f32.partialorder %v5903, 0.0
    %vm5920 = vcmp.gt.f32.partialorder %v5904, 0.0
    %vm5921 = vcmp.gt.f32.partialorder %v5905, 0.0
    %vm5922 = vcmp.gt.f32.partialorder %v5906, 0.0
    %vm5923 = vcmp.gt.f32.partialorder %v5907, 0.0
    %vm5924 = vcmp.gt.f32.partialorder %v5908, 0.0
    %vm5925 = vcmp.gt.f32.partialorder %v5909, 0.0
    %vm5926 = vcmp.gt.f32.partialorder %v5910, 0.0
    %vm5927 = vcmp.gt.f32.partialorder %v5911, 0.0
    %vm5928 = vcmp.gt.f32.partialorder %v5912, 0.0
    %vm5929 = vcmp.gt.f32.partialorder %v5913, 0.0
    %v5930 = vmul.f32 %v5898, 0.2
    %v5931 = vmul.f32 %v5899, 0.2
    %v5932 = vmul.f32 %v5900, 0.2
    %v5933 = vmul.f32 %v5901, 0.2
    %v5934 = vmul.f32 %v5902, 0.2
    %v5935 = vmul.f32 %v5903, 0.2
    %v5936 = vmul.f32 %v5904, 0.2
    %v5937 = vmul.f32 %v5905, 0.2
    %v5938 = vmul.f32 %v5906, 0.2
    %v5939 = vmul.f32 %v5907, 0.2
    %v5940 = vmul.f32 %v5908, 0.2
    %v5941 = vmul.f32 %v5909, 0.2
    %v5942 = vmul.f32 %v5910, 0.2
    %v5943 = vmul.f32 %v5911, 0.2
    %v5944 = vmul.f32 %v5912, 0.2
    %v5945 = vmul.f32 %v5913, 0.2
    %v5946 = vsel %vm5914, %v5898, %v5930
    %v5947 = vsel %vm5915, %v5899, %v5931
    %v5948 = vsel %vm5916, %v5900, %v5932
    %v5949 = vsel %vm5917, %v5901, %v5933
    %v5950 = vsel %vm5918, %v5902, %v5934
    %v5951 = vsel %vm5919, %v5903, %v5935
    %v5952 = vsel %vm5920, %v5904, %v5936
    %v5953 = vsel %vm5921, %v5905, %v5937
    %v5954 = vsel %vm5922, %v5906, %v5938
    %v5955 = vsel %vm5923, %v5907, %v5939
    %v5956 = vsel %vm5924, %v5908, %v5940
    %v5957 = vsel %vm5925, %v5909, %v5941
    %v5958 = vsel %vm5926, %v5910, %v5942
    %v5959 = vsel %vm5927, %v5911, %v5943
    %v5960 = vsel %vm5928, %v5912, %v5944
    %v5961 = vsel %vm5929, %v5913, %v5945
    %v5962 = vpack.c.bf16 %v5954, %v5946
    %v5963 = vpack.c.bf16 %v5955, %v5947
    %v5964 = vpack.c.bf16 %v5956, %v5948
    %v5965 = vpack.c.bf16 %v5957, %v5949
    %v5966 = vpack.c.bf16 %v5958, %v5950
    %v5967 = vpack.c.bf16 %v5959, %v5951
    %v5968 = vpack.c.bf16 %v5960, %v5952
    %v5969 = vpack.c.bf16 %v5961, %v5953
    %v5970 = vld [vmem:[#allocation10] sm:$0xf]
    %v5971 = vld [vmem:[#allocation10 + $0x4] sm:$0xf]
    %v5972 = vld [vmem:[#allocation10 + $0x8] sm:$0xf]
    %v5973 = vld [vmem:[#allocation10 + $0xc] sm:$0xf]
    %v5974 = vld [vmem:[#allocation10 + $0x10] sm:$0xf]
    %v5975 = vld [vmem:[#allocation10 + $0x14] sm:$0xf]
    %v5976 = vld [vmem:[#allocation10 + $0x18] sm:$0xf]
    %v5977 = vld [vmem:[#allocation10 + $0x1c] sm:$0xf]
    %v5978 = vld [vmem:[#allocation10 + $0x20] sm:$0xf]
    %v5979 = vld [vmem:[#allocation10 + $0x24] sm:$0xf]
    %v5980 = vld [vmem:[#allocation10 + $0x28] sm:$0xf]
    %v5981 = vld [vmem:[#allocation10 + $0x2c] sm:$0xf]
    %v5982 = vld [vmem:[#allocation10 + $0x30] sm:$0xf]
    %v5983 = vld [vmem:[#allocation10 + $0x34] sm:$0xf]
    %v5984 = vld [vmem:[#allocation10 + $0x38] sm:$0xf]
    %v5985 = vld [vmem:[#allocation10 + $0x3c] sm:$0xf]
    %v5986 = vld [vmem:[#allocation10 + $0x40] sm:$0xf]
    %v5987 = vld [vmem:[#allocation10 + $0x44] sm:$0xf]
    %v5988 = vld [vmem:[#allocation10 + $0x48] sm:$0xf]
    %v5989 = vld [vmem:[#allocation10 + $0x4c] sm:$0xf]
    %v5990 = vld [vmem:[#allocation10 + $0x50] sm:$0xf]
    %v5991 = vld [vmem:[#allocation10 + $0x54] sm:$0xf]
    %v5992 = vld [vmem:[#allocation10 + $0x58] sm:$0xf]
    %v5993 = vld [vmem:[#allocation10 + $0x5c] sm:$0xf]
    %v5994 = vld [vmem:[#allocation10 + $0x60] sm:$0xf]
    %v5995 = vld [vmem:[#allocation10 + $0x64] sm:$0xf]
    %v5996 = vld [vmem:[#allocation10 + $0x68] sm:$0xf]
    %v5997 = vld [vmem:[#allocation10 + $0x6c] sm:$0xf]
    %v5998 = vld [vmem:[#allocation10 + $0x70] sm:$0xf]
    %v5999 = vld [vmem:[#allocation10 + $0x74] sm:$0xf]
    %v6000 = vld [vmem:[#allocation10 + $0x78] sm:$0xf]
    %v6001 = vld [vmem:[#allocation10 + $0x7c] sm:$0xf]
    %v6002 = vld [vmem:[#allocation10 + $0x80] sm:$0xf]
    %v6003 = vld [vmem:[#allocation10 + $0x84] sm:$0xf]
    %v6004 = vld [vmem:[#allocation10 + $0x88] sm:$0xf]
    %v6005 = vld [vmem:[#allocation10 + $0x8c] sm:$0xf]
    %v6006 = vld [vmem:[#allocation10 + $0x90] sm:$0xf]
    %v6007 = vld [vmem:[#allocation10 + $0x94] sm:$0xf]
    %v6008 = vld [vmem:[#allocation10 + $0x98] sm:$0xf]
    %v6009 = vld [vmem:[#allocation10 + $0x9c] sm:$0xf]
    %v6010 = vld [vmem:[#allocation10 + $0xa0] sm:$0xf]
    %v6011 = vld [vmem:[#allocation10 + $0xa4] sm:$0xf]
    %v6012 = vld [vmem:[#allocation10 + $0xa8] sm:$0xf]
    %v6013 = vld [vmem:[#allocation10 + $0xac] sm:$0xf]
    %v6014 = vld [vmem:[#allocation10 + $0xb0] sm:$0xf]
    %v6015 = vld [vmem:[#allocation10 + $0xb4] sm:$0xf]
    %v6016 = vld [vmem:[#allocation10 + $0xb8] sm:$0xf]
    %v6017 = vld [vmem:[#allocation10 + $0xbc] sm:$0xf]
    %v6018 = vld [vmem:[#allocation10 + $0xc0] sm:$0xf]
    %v6019 = vld [vmem:[#allocation10 + $0xc4] sm:$0xf]
    %v6020 = vld [vmem:[#allocation10 + $0xc8] sm:$0xf]
    %v6021 = vld [vmem:[#allocation10 + $0xcc] sm:$0xf]
    %v6022 = vld [vmem:[#allocation10 + $0xd0] sm:$0xf]
    %v6023 = vld [vmem:[#allocation10 + $0xd4] sm:$0xf]
    %v6024 = vld [vmem:[#allocation10 + $0xd8] sm:$0xf]
    %v6025 = vld [vmem:[#allocation10 + $0xdc] sm:$0xf]
    %v6026 = vld [vmem:[#allocation10 + $0xe0] sm:$0xf]
    %v6027 = vld [vmem:[#allocation10 + $0xe4] sm:$0xf]
    %v6028 = vld [vmem:[#allocation10 + $0xe8] sm:$0xf]
    %v6029 = vld [vmem:[#allocation10 + $0xec] sm:$0xf]
    %v6030 = vld [vmem:[#allocation10 + $0xf0] sm:$0xf]
    %v6031 = vld [vmem:[#allocation10 + $0xf4] sm:$0xf]
    %v6032 = vld [vmem:[#allocation10 + $0xf8] sm:$0xf]
    %v6033 = vld [vmem:[#allocation10 + $0xfc] sm:$0xf]
    %v6034 = vld [vmem:[#allocation10 + $0x100] sm:$0xf]
    %v6035 = vld [vmem:[#allocation10 + $0x104] sm:$0xf]
    %v6036 = vld [vmem:[#allocation10 + $0x108] sm:$0xf]
    %v6037 = vld [vmem:[#allocation10 + $0x10c] sm:$0xf]
    %v6038 = vld [vmem:[#allocation10 + $0x110] sm:$0xf]
    %v6039 = vld [vmem:[#allocation10 + $0x114] sm:$0xf]
    %v6040 = vld [vmem:[#allocation10 + $0x118] sm:$0xf]
    %v6041 = vld [vmem:[#allocation10 + $0x11c] sm:$0xf]
    %v6042 = vld [vmem:[#allocation10 + $0x120] sm:$0xf]
    %v6043 = vld [vmem:[#allocation10 + $0x124] sm:$0xf]
    %v6044 = vld [vmem:[#allocation10 + $0x128] sm:$0xf]
    %v6045 = vld [vmem:[#allocation10 + $0x12c] sm:$0xf]
    %v6046 = vld [vmem:[#allocation10 + $0x130] sm:$0xf]
    %v6047 = vld [vmem:[#allocation10 + $0x134] sm:$0xf]
    %v6048 = vld [vmem:[#allocation10 + $0x138] sm:$0xf]
    %v6049 = vld [vmem:[#allocation10 + $0x13c] sm:$0xf]
    %v6050 = vld [vmem:[#allocation10 + $0x140] sm:$0xf]
    %v6051 = vld [vmem:[#allocation10 + $0x144] sm:$0xf]
    %v6052 = vld [vmem:[#allocation10 + $0x148] sm:$0xf]
    %v6053 = vld [vmem:[#allocation10 + $0x14c] sm:$0xf]
    %v6054 = vld [vmem:[#allocation10 + $0x150] sm:$0xf]
    %v6055 = vld [vmem:[#allocation10 + $0x154] sm:$0xf]
    %v6056 = vld [vmem:[#allocation10 + $0x158] sm:$0xf]
    %v6057 = vld [vmem:[#allocation10 + $0x15c] sm:$0xf]
    %v6058 = vld [vmem:[#allocation10 + $0x160] sm:$0xf]
    %v6059 = vld [vmem:[#allocation10 + $0x164] sm:$0xf]
    %v6060 = vld [vmem:[#allocation10 + $0x168] sm:$0xf]
    %v6061 = vld [vmem:[#allocation10 + $0x16c] sm:$0xf]
    %v6062 = vld [vmem:[#allocation10 + $0x170] sm:$0xf]
    %v6063 = vld [vmem:[#allocation10 + $0x174] sm:$0xf]
    %v6064 = vld [vmem:[#allocation10 + $0x178] sm:$0xf]
    %v6065 = vld [vmem:[#allocation10 + $0x17c] sm:$0xf]
    %v6066 = vld [vmem:[#allocation10 + $0x180] sm:$0xf]
    %v6067 = vld [vmem:[#allocation10 + $0x184] sm:$0xf]
    %v6068 = vld [vmem:[#allocation10 + $0x188] sm:$0xf]
    %v6069 = vld [vmem:[#allocation10 + $0x18c] sm:$0xf]
    %v6070 = vld [vmem:[#allocation10 + $0x190] sm:$0xf]
    %v6071 = vld [vmem:[#allocation10 + $0x194] sm:$0xf]
    %v6072 = vld [vmem:[#allocation10 + $0x198] sm:$0xf]
    %v6073 = vld [vmem:[#allocation10 + $0x19c] sm:$0xf]
    %v6074 = vld [vmem:[#allocation10 + $0x1a0] sm:$0xf]
    %v6075 = vld [vmem:[#allocation10 + $0x1a4] sm:$0xf]
    %v6076 = vld [vmem:[#allocation10 + $0x1a8] sm:$0xf]
    %v6077 = vld [vmem:[#allocation10 + $0x1ac] sm:$0xf]
    %v6078 = vld [vmem:[#allocation10 + $0x1b0] sm:$0xf]
    %v6079 = vld [vmem:[#allocation10 + $0x1b4] sm:$0xf]
    %v6080 = vld [vmem:[#allocation10 + $0x1b8] sm:$0xf]
    %v6081 = vld [vmem:[#allocation10 + $0x1bc] sm:$0xf]
    %v6082 = vld [vmem:[#allocation10 + $0x1c0] sm:$0xf]
    %v6083 = vld [vmem:[#allocation10 + $0x1c4] sm:$0xf]
    %v6084 = vld [vmem:[#allocation10 + $0x1c8] sm:$0xf]
    %v6085 = vld [vmem:[#allocation10 + $0x1cc] sm:$0xf]
    %v6086 = vld [vmem:[#allocation10 + $0x1d0] sm:$0xf]
    %v6087 = vld [vmem:[#allocation10 + $0x1d4] sm:$0xf]
    %v6088 = vld [vmem:[#allocation10 + $0x1d8] sm:$0xf]
    %v6089 = vld [vmem:[#allocation10 + $0x1dc] sm:$0xf]
    %v6090 = vld [vmem:[#allocation10 + $0x1e0] sm:$0xf]
    %v6091 = vld [vmem:[#allocation10 + $0x1e4] sm:$0xf]
    %v6092 = vld [vmem:[#allocation10 + $0x1e8] sm:$0xf]
    %v6093 = vld [vmem:[#allocation10 + $0x1ec] sm:$0xf]
    %v6094 = vld [vmem:[#allocation10 + $0x1f0] sm:$0xf]
    %v6095 = vld [vmem:[#allocation10 + $0x1f4] sm:$0xf]
    %v6096 = vld [vmem:[#allocation10 + $0x1f8] sm:$0xf]
    %v6097 = vld [vmem:[#allocation10 + $0x1fc] sm:$0xf]
    %v6226 = vunpack.c.l.b16 %v5970
    %v6227 = vunpack.c.l.b16 %v5971
    %v6228 = vunpack.c.l.b16 %v5972
    %v6229 = vunpack.c.l.b16 %v5973
    %v6230 = vunpack.c.l.b16 %v5974
    %v6231 = vunpack.c.l.b16 %v5975
    %v6232 = vunpack.c.l.b16 %v5976
    %v6233 = vunpack.c.l.b16 %v5977
    %v6234 = vunpack.c.l.b16 %v5978
    %v6235 = vunpack.c.l.b16 %v5979
    %v6236 = vunpack.c.l.b16 %v5980
    %v6237 = vunpack.c.l.b16 %v5981
    %v6238 = vunpack.c.l.b16 %v5982
    %v6239 = vunpack.c.l.b16 %v5983
    %v6240 = vunpack.c.l.b16 %v5984
    %v6241 = vunpack.c.l.b16 %v5985
    %v6242 = vunpack.c.l.b16 %v5986
    %v6243 = vunpack.c.l.b16 %v5987
    %v6244 = vunpack.c.l.b16 %v5988
    %v6245 = vunpack.c.l.b16 %v5989
    %v6246 = vunpack.c.l.b16 %v5990
    %v6247 = vunpack.c.l.b16 %v5991
    %v6248 = vunpack.c.l.b16 %v5992
    %v6249 = vunpack.c.l.b16 %v5993
    %v6250 = vunpack.c.l.b16 %v5994
    %v6251 = vunpack.c.l.b16 %v5995
    %v6252 = vunpack.c.l.b16 %v5996
    %v6253 = vunpack.c.l.b16 %v5997
    %v6254 = vunpack.c.l.b16 %v5998
    %v6255 = vunpack.c.l.b16 %v5999
    %v6256 = vunpack.c.l.b16 %v6000
    %v6257 = vunpack.c.l.b16 %v6001
    %v6258 = vunpack.c.l.b16 %v6002
    %v6259 = vunpack.c.l.b16 %v6003
    %v6260 = vunpack.c.l.b16 %v6004
    %v6261 = vunpack.c.l.b16 %v6005
    %v6262 = vunpack.c.l.b16 %v6006
    %v6263 = vunpack.c.l.b16 %v6007
    %v6264 = vunpack.c.l.b16 %v6008
    %v6265 = vunpack.c.l.b16 %v6009
    %v6266 = vunpack.c.l.b16 %v6010
    %v6267 = vunpack.c.l.b16 %v6011
    %v6268 = vunpack.c.l.b16 %v6012
    %v6269 = vunpack.c.l.b16 %v6013
    %v6270 = vunpack.c.l.b16 %v6014
    %v6271 = vunpack.c.l.b16 %v6015
    %v6272 = vunpack.c.l.b16 %v6016
    %v6273 = vunpack.c.l.b16 %v6017
    %v6274 = vunpack.c.l.b16 %v6018
    %v6275 = vunpack.c.l.b16 %v6019
    %v6276 = vunpack.c.l.b16 %v6020
    %v6277 = vunpack.c.l.b16 %v6021
    %v6278 = vunpack.c.l.b16 %v6022
    %v6279 = vunpack.c.l.b16 %v6023
    %v6280 = vunpack.c.l.b16 %v6024
    %v6281 = vunpack.c.l.b16 %v6025
    %v6282 = vunpack.c.l.b16 %v6026
    %v6283 = vunpack.c.l.b16 %v6027
    %v6284 = vunpack.c.l.b16 %v6028
    %v6285 = vunpack.c.l.b16 %v6029
    %v6286 = vunpack.c.l.b16 %v6030
    %v6287 = vunpack.c.l.b16 %v6031
    %v6288 = vunpack.c.l.b16 %v6032
    %v6289 = vunpack.c.l.b16 %v6033
    %v6290 = vunpack.c.l.b16 %v6034
    %v6291 = vunpack.c.l.b16 %v6035
    %v6292 = vunpack.c.l.b16 %v6036
    %v6293 = vunpack.c.l.b16 %v6037
    %v6294 = vunpack.c.l.b16 %v6038
    %v6295 = vunpack.c.l.b16 %v6039
    %v6296 = vunpack.c.l.b16 %v6040
    %v6297 = vunpack.c.l.b16 %v6041
    %v6298 = vunpack.c.l.b16 %v6042
    %v6299 = vunpack.c.l.b16 %v6043
    %v6300 = vunpack.c.l.b16 %v6044
    %v6301 = vunpack.c.l.b16 %v6045
    %v6302 = vunpack.c.l.b16 %v6046
    %v6303 = vunpack.c.l.b16 %v6047
    %v6304 = vunpack.c.l.b16 %v6048
    %v6305 = vunpack.c.l.b16 %v6049
    %v6306 = vunpack.c.l.b16 %v6050
    %v6307 = vunpack.c.l.b16 %v6051
    %v6308 = vunpack.c.l.b16 %v6052
    %v6309 = vunpack.c.l.b16 %v6053
    %v6310 = vunpack.c.l.b16 %v6054
    %v6311 = vunpack.c.l.b16 %v6055
    %v6312 = vunpack.c.l.b16 %v6056
    %v6313 = vunpack.c.l.b16 %v6057
    %v6314 = vunpack.c.l.b16 %v6058
    %v6315 = vunpack.c.l.b16 %v6059
    %v6316 = vunpack.c.l.b16 %v6060
    %v6317 = vunpack.c.l.b16 %v6061
    %v6318 = vunpack.c.l.b16 %v6062
    %v6319 = vunpack.c.l.b16 %v6063
    %v6320 = vunpack.c.l.b16 %v6064
    %v6321 = vunpack.c.l.b16 %v6065
    %v6322 = vunpack.c.l.b16 %v6066
    %v6323 = vunpack.c.l.b16 %v6067
    %v6324 = vunpack.c.l.b16 %v6068
    %v6325 = vunpack.c.l.b16 %v6069
    %v6326 = vunpack.c.l.b16 %v6070
    %v6327 = vunpack.c.l.b16 %v6071
    %v6328 = vunpack.c.l.b16 %v6072
    %v6329 = vunpack.c.l.b16 %v6073
    %v6330 = vunpack.c.l.b16 %v6074
    %v6331 = vunpack.c.l.b16 %v6075
    %v6332 = vunpack.c.l.b16 %v6076
    %v6333 = vunpack.c.l.b16 %v6077
    %v6334 = vunpack.c.l.b16 %v6078
    %v6335 = vunpack.c.l.b16 %v6079
    %v6336 = vunpack.c.l.b16 %v6080
    %v6337 = vunpack.c.l.b16 %v6081
    %v6338 = vunpack.c.l.b16 %v6082
    %v6339 = vunpack.c.l.b16 %v6083
    %v6340 = vunpack.c.l.b16 %v6084
    %v6341 = vunpack.c.l.b16 %v6085
    %v6342 = vunpack.c.l.b16 %v6086
    %v6343 = vunpack.c.l.b16 %v6087
    %v6344 = vunpack.c.l.b16 %v6088
    %v6345 = vunpack.c.l.b16 %v6089
    %v6346 = vunpack.c.l.b16 %v6090
    %v6347 = vunpack.c.l.b16 %v6091
    %v6348 = vunpack.c.l.b16 %v6092
    %v6349 = vunpack.c.l.b16 %v6093
    %v6350 = vunpack.c.l.b16 %v6094
    %v6351 = vunpack.c.l.b16 %v6095
    %v6352 = vunpack.c.l.b16 %v6096
    %v6353 = vunpack.c.l.b16 %v6097
    %v6354 = vpack.c.b16 %v6227, %v6226
    %v6355 = vpack.c.b16 %v6229, %v6228
    %v6356 = vpack.c.b16 %v6231, %v6230
    %v6357 = vpack.c.b16 %v6233, %v6232
    %v6358 = vpack.c.b16 %v6235, %v6234
    %v6359 = vpack.c.b16 %v6237, %v6236
    %v6360 = vpack.c.b16 %v6239, %v6238
    %v6361 = vpack.c.b16 %v6241, %v6240
    %v6362 = vpack.c.b16 %v6243, %v6242
    %v6363 = vpack.c.b16 %v6245, %v6244
    %v6364 = vpack.c.b16 %v6247, %v6246
    %v6365 = vpack.c.b16 %v6249, %v6248
    %v6366 = vpack.c.b16 %v6251, %v6250
    %v6367 = vpack.c.b16 %v6253, %v6252
    %v6368 = vpack.c.b16 %v6255, %v6254
    %v6369 = vpack.c.b16 %v6257, %v6256
    %v6370 = vpack.c.b16 %v6259, %v6258
    %v6371 = vpack.c.b16 %v6261, %v6260
    %v6372 = vpack.c.b16 %v6263, %v6262
    %v6373 = vpack.c.b16 %v6265, %v6264
    %v6374 = vpack.c.b16 %v6267, %v6266
    %v6375 = vpack.c.b16 %v6269, %v6268
    %v6376 = vpack.c.b16 %v6271, %v6270
    %v6377 = vpack.c.b16 %v6273, %v6272
    %v6378 = vpack.c.b16 %v6275, %v6274
    %v6379 = vpack.c.b16 %v6277, %v6276
    %v6380 = vpack.c.b16 %v6279, %v6278
    %v6381 = vpack.c.b16 %v6281, %v6280
    %v6382 = vpack.c.b16 %v6283, %v6282
    %v6383 = vpack.c.b16 %v6285, %v6284
    %v6384 = vpack.c.b16 %v6287, %v6286
    %v6385 = vpack.c.b16 %v6289, %v6288
    %v6386 = vpack.c.b16 %v6291, %v6290
    %v6387 = vpack.c.b16 %v6293, %v6292
    %v6388 = vpack.c.b16 %v6295, %v6294
    %v6389 = vpack.c.b16 %v6297, %v6296
    %v6390 = vpack.c.b16 %v6299, %v6298
    %v6391 = vpack.c.b16 %v6301, %v6300
    %v6392 = vpack.c.b16 %v6303, %v6302
    %v6393 = vpack.c.b16 %v6305, %v6304
    %v6394 = vpack.c.b16 %v6307, %v6306
    %v6395 = vpack.c.b16 %v6309, %v6308
    %v6396 = vpack.c.b16 %v6311, %v6310
    %v6397 = vpack.c.b16 %v6313, %v6312
    %v6398 = vpack.c.b16 %v6315, %v6314
    %v6399 = vpack.c.b16 %v6317, %v6316
    %v6400 = vpack.c.b16 %v6319, %v6318
    %v6401 = vpack.c.b16 %v6321, %v6320
    %v6402 = vpack.c.b16 %v6323, %v6322
    %v6403 = vpack.c.b16 %v6325, %v6324
    %v6404 = vpack.c.b16 %v6327, %v6326
    %v6405 = vpack.c.b16 %v6329, %v6328
    %v6406 = vpack.c.b16 %v6331, %v6330
    %v6407 = vpack.c.b16 %v6333, %v6332
    %v6408 = vpack.c.b16 %v6335, %v6334
    %v6409 = vpack.c.b16 %v6337, %v6336
    %v6410 = vpack.c.b16 %v6339, %v6338
    %v6411 = vpack.c.b16 %v6341, %v6340
    %v6412 = vpack.c.b16 %v6343, %v6342
    %v6413 = vpack.c.b16 %v6345, %v6344
    %v6414 = vpack.c.b16 %v6347, %v6346
    %v6415 = vpack.c.b16 %v6349, %v6348
    %v6416 = vpack.c.b16 %v6351, %v6350
    %v6417 = vpack.c.b16 %v6353, %v6352
    %6482 = vmatprep.subr.bf16.mxu0 0
    %6483 = vmatpush1.bf16.msra.mxu0 %v6354
    %6484 = vmatprep.subr.bf16.mxu0 0
    %6485 = vmatpush1.bf16.msra.mxu0 %v6355
    %6486 = vmatprep.subr.bf16.mxu0 0
    %6487 = vmatpush1.bf16.msra.mxu0 %v6356
    %6488 = vmatprep.subr.bf16.mxu0 0
    %6489 = vmatpush1.bf16.msra.mxu0 %v6357
    %6490 = vmatprep.subr.bf16.mxu0 0
    %6491 = vmatpush1.bf16.msra.mxu0 %v6358
    %6492 = vmatprep.subr.bf16.mxu0 0
    %6493 = vmatpush1.bf16.msra.mxu0 %v6359
    %6494 = vmatprep.subr.bf16.mxu0 0
    %6495 = vmatpush1.bf16.msra.mxu0 %v6360
    %6496 = vmatprep.subr.bf16.mxu0 0
    %6497 = vmatpush1.bf16.msra.mxu0 %v6361
    %6498 = vmatprep.subr.bf16.mxu0 0
    %6499 = vmatpush1.bf16.msra.mxu0 %v6362
    %6500 = vmatprep.subr.bf16.mxu0 0
    %6501 = vmatpush1.bf16.msra.mxu0 %v6363
    %6502 = vmatprep.subr.bf16.mxu0 0
    %6503 = vmatpush1.bf16.msra.mxu0 %v6364
    %6504 = vmatprep.subr.bf16.mxu0 0
    %6505 = vmatpush1.bf16.msra.mxu0 %v6365
    %6506 = vmatprep.subr.bf16.mxu0 0
    %6507 = vmatpush1.bf16.msra.mxu0 %v6366
    %6508 = vmatprep.subr.bf16.mxu0 0
    %6509 = vmatpush1.bf16.msra.mxu0 %v6367
    %6510 = vmatprep.subr.bf16.mxu0 0
    %6511 = vmatpush1.bf16.msra.mxu0 %v6368
    %6512 = vmatprep.subr.bf16.mxu0 0
    %6513 = vmatpush1.bf16.msra.mxu0 %v6369
    %6514 = vmatprep.mubr.bf16.mxu0 %v5963
    %6515 = vmatmul.mubr.bf16.gmra.mrb[0].mxu0 %v5962
    %v6516 = vpop.f32.mrb[0].mxu0
    %v6517 = vadd.f32 0.0, %v6516
    %v6518 = vpop.f32.mrb[0].mxu0
    %v6519 = vpop.f32.mrb[0].mxu0
    %v6520 = vadd.f32 0.0, %v6519
    %v6521 = vpop.f32.mrb[0].mxu0
    %6522 = vdwg.mxu0
    %6523 = vmatprep.subr.bf16.mxu0 0
    %6524 = vmatpush1.bf16.msra.mxu0 %v6370
    %6525 = vmatprep.subr.bf16.mxu0 0
    %6526 = vmatpush1.bf16.msra.mxu0 %v6371
    %6527 = vmatprep.subr.bf16.mxu0 0
    %6528 = vmatpush1.bf16.msra.mxu0 %v6372
    %6529 = vmatprep.subr.bf16.mxu0 0
    %6530 = vmatpush1.bf16.msra.mxu0 %v6373
    %6531 = vmatprep.subr.bf16.mxu0 0
    %6532 = vmatpush1.bf16.msra.mxu0 %v6374
    %6533 = vmatprep.subr.bf16.mxu0 0
    %6534 = vmatpush1.bf16.msra.mxu0 %v6375
    %6535 = vmatprep.subr.bf16.mxu0 0
    %6536 = vmatpush1.bf16.msra.mxu0 %v6376
    %6537 = vmatprep.subr.bf16.mxu0 0
    %6538 = vmatpush1.bf16.msra.mxu0 %v6377
    %6539 = vmatprep.subr.bf16.mxu0 0
    %6540 = vmatpush1.bf16.msra.mxu0 %v6378
    %6541 = vmatprep.subr.bf16.mxu0 0
    %6542 = vmatpush1.bf16.msra.mxu0 %v6379
    %6543 = vmatprep.subr.bf16.mxu0 0
    %6544 = vmatpush1.bf16.msra.mxu0 %v6380
    %6545 = vmatprep.subr.bf16.mxu0 0
    %6546 = vmatpush1.bf16.msra.mxu0 %v6381
    %6547 = vmatprep.subr.bf16.mxu0 0
    %6548 = vmatpush1.bf16.msra.mxu0 %v6382
    %6549 = vmatprep.subr.bf16.mxu0 0
    %6550 = vmatpush1.bf16.msra.mxu0 %v6383
    %6551 = vmatprep.subr.bf16.mxu0 0
    %6552 = vmatpush1.bf16.msra.mxu0 %v6384
    %6553 = vmatprep.subr.bf16.mxu0 0
    %6554 = vmatpush1.bf16.msra.mxu0 %v6385
    %6555 = vmatprep.mubr.bf16.mxu0 %v5965
    %6556 = vmatmul.mubr.bf16.gmra.mrb[0].mxu0 %v5964
    %v6557 = vpop.f32.mrb[0].mxu0
    %v6558 = vadd.f32 %v6517, %v6557
    %v6559 = vpop.f32.mrb[0].mxu0
    %v6560 = vpop.f32.mrb[0].mxu0
    %v6561 = vadd.f32 %v6520, %v6560
    %v6562 = vpop.f32.mrb[0].mxu0
    %6563 = vdwg.mxu0
    %6564 = vmatprep.subr.bf16.mxu0 0
    %6565 = vmatpush1.bf16.msra.mxu0 %v6386
    %6566 = vmatprep.subr.bf16.mxu0 0
    %6567 = vmatpush1.bf16.msra.mxu0 %v6387
    %6568 = vmatprep.subr.bf16.mxu0 0
    %6569 = vmatpush1.bf16.msra.mxu0 %v6388
    %6570 = vmatprep.subr.bf16.mxu0 0
    %6571 = vmatpush1.bf16.msra.mxu0 %v6389
    %6572 = vmatprep.subr.bf16.mxu0 0
    %6573 = vmatpush1.bf16.msra.mxu0 %v6390
    %6574 = vmatprep.subr.bf16.mxu0 0
    %6575 = vmatpush1.bf16.msra.mxu0 %v6391
    %6576 = vmatprep.subr.bf16.mxu0 0
    %6577 = vmatpush1.bf16.msra.mxu0 %v6392
    %6578 = vmatprep.subr.bf16.mxu0 0
    %6579 = vmatpush1.bf16.msra.mxu0 %v6393
    %6580 = vmatprep.subr.bf16.mxu0 0
    %6581 = vmatpush1.bf16.msra.mxu0 %v6394
    %6582 = vmatprep.subr.bf16.mxu0 0
    %6583 = vmatpush1.bf16.msra.mxu0 %v6395
    %6584 = vmatprep.subr.bf16.mxu0 0
    %6585 = vmatpush1.bf16.msra.mxu0 %v6396
    %6586 = vmatprep.subr.bf16.mxu0 0
    %6587 = vmatpush1.bf16.msra.mxu0 %v6397
    %6588 = vmatprep.subr.bf16.mxu0 0
    %6589 = vmatpush1.bf16.msra.mxu0 %v6398
    %6590 = vmatprep.subr.bf16.mxu0 0
    %6591 = vmatpush1.bf16.msra.mxu0 %v6399
    %6592 = vmatprep.subr.bf16.mxu0 0
    %6593 = vmatpush1.bf16.msra.mxu0 %v6400
    %6594 = vmatprep.subr.bf16.mxu0 0
    %6595 = vmatpush1.bf16.msra.mxu0 %v6401
    %6596 = vmatprep.mubr.bf16.mxu0 %v5967
    %6597 = vmatmul.mubr.bf16.gmra.mrb[0].mxu0 %v5966
    %v6598 = vpop.f32.mrb[0].mxu0
    %v6599 = vadd.f32 %v6558, %v6598
    %v6600 = vpop.f32.mrb[0].mxu0
    %v6601 = vpop.f32.mrb[0].mxu0
    %v6602 = vadd.f32 %v6561, %v6601
    %v6603 = vpop.f32.mrb[0].mxu0
    %6604 = vdwg.mxu0
    %6605 = vmatprep.subr.bf16.mxu0 0
    %6606 = vmatpush1.bf16.msra.mxu0 %v6402
    %6607 = vmatprep.subr.bf16.mxu0 0
    %6608 = vmatpush1.bf16.msra.mxu0 %v6403
    %6609 = vmatprep.subr.bf16.mxu0 0
    %6610 = vmatpush1.bf16.msra.mxu0 %v6404
    %6611 = vmatprep.subr.bf16.mxu0 0
    %6612 = vmatpush1.bf16.msra.mxu0 %v6405
    %6613 = vmatprep.subr.bf16.mxu0 0
    %6614 = vmatpush1.bf16.msra.mxu0 %v6406
    %6615 = vmatprep.subr.bf16.mxu0 0
    %6616 = vmatpush1.bf16.msra.mxu0 %v6407
    %6617 = vmatprep.subr.bf16.mxu0 0
    %6618 = vmatpush1.bf16.msra.mxu0 %v6408
    %6619 = vmatprep.subr.bf16.mxu0 0
    %6620 = vmatpush1.bf16.msra.mxu0 %v6409
    %6621 = vmatprep.subr.bf16.mxu0 0
    %6622 = vmatpush1.bf16.msra.mxu0 %v6410
    %6623 = vmatprep.subr.bf16.mxu0 0
    %6624 = vmatpush1.bf16.msra.mxu0 %v6411
    %6625 = vmatprep.subr.bf16.mxu0 0
    %6626 = vmatpush1.bf16.msra.mxu0 %v6412
    %6627 = vmatprep.subr.bf16.mxu0 0
    %6628 = vmatpush1.bf16.msra.mxu0 %v6413
    %6629 = vmatprep.subr.bf16.mxu0 0
    %6630 = vmatpush1.bf16.msra.mxu0 %v6414
    %6631 = vmatprep.subr.bf16.mxu0 0
    %6632 = vmatpush1.bf16.msra.mxu0 %v6415
    %6633 = vmatprep.subr.bf16.mxu0 0
    %6634 = vmatpush1.bf16.msra.mxu0 %v6416
    %6635 = vmatprep.subr.bf16.mxu0 0
    %6636 = vmatpush1.bf16.msra.mxu0 %v6417
    %6637 = vmatprep.mubr.bf16.mxu0 %v5969
    %6638 = vmatmul.mubr.bf16.gmra.mrb[0].mxu0 %v5968
    %v6639 = vpop.f32.mrb[0].mxu0
    %v6640 = vadd.f32 %v6599, %v6639
    %v6641 = vpop.f32.mrb[0].mxu0
    %v6642 = vpop.f32.mrb[0].mxu0
    %v6643 = vadd.f32 %v6602, %v6642
    %v6644 = vpop.f32.mrb[0].mxu0
    %6645 = vdwg.mxu0
    %6646 = vst [vmem:[#allocation11] sm:$0xff] %v6640
    %6647 = vst [vmem:[#allocation11 + $0x8] sm:$0xff] %v6643
    // Predicated region
    $region42: #{tpu_custom_call.1} parent=1 // pred_check
      _
    $region43: #{tpu_custom_call.1} parent=1 // pred_check_branch
      %6649 = sbr.rel (0) target = $region45
    $region44: #{tpu_custom_call.1} parent=1 // pred_region
      %s6651 = ssub.s32 256, 256
      %6652 = vsyncadd [#allocation4], %s6651
      %s6653 = sshll.u32 [#allocation11], 4
      %s6654 = int_to_ptr.vmem [resolvable:$true] %s6653
      %6659 = dma.vmem_to_hbm [thread:$0]  %s6654, 256, %s5, [#allocation4], 128, 128, 8
    $region45: #{tpu_custom_call.1} parent=1 // pred_fallthru
      _
    // Predicated region
    $region46: #{tpu_custom_call.1} parent=1 // pred_check
      _
    $region47: #{tpu_custom_call.1} parent=1 // pred_check_branch
      %6661 = sbr.rel (0) target = $region49
    $region48: #{tpu_custom_call.1} parent=1 // pred_region
      %6662 = dma.done [#allocation4], 256
    $region49: #{tpu_custom_call.1} parent=1 // pred_fallthru
      _
    %6663 = vsyncpa [#allocation3], 1
    %6664 = vsyncpa [#allocation6], 1
    %6665 = vsyncpa [#allocation9], 1
    %6666 = vsyncpa [#allocation4], 1

</llo_original>
